<compile_context>
chip_gen: v6e
topology: v6e:2x2x1
jax: 0.10.0
libtpu: 0.0.40
codegen_flags: <defaults>
</compile_context>

<pallas_src>
import jax
import jax.numpy as jnp
from jax import lax
from jax.experimental import pallas as pl
from jax.experimental.pallas import tpu as pltpu


# ----------------------------------------------------------------------------
# Fused bottleneck kernel (one grid step = one image, NHWC)
# ----------------------------------------------------------------------------
def _bottleneck_kernel(xp_ref, m_ref, w1_ref, b1_ref, w2_ref, b2_ref,
                       w3_ref, b3_ref, o_ref):
    # xp_ref: (1, Hp, Wp, Cin) bf16  spatially zero-padded input (3x3 halo)
    # m_ref : (Hp*Wp, 1)       f32   1 on interior pixels, 0 on the halo ring
    # w1_ref: (Cin, Cm)  bf16, b1_ref: (1, Cm)  f32   (BN1 scale folded into w1)
    # w2_ref: (9*Cm, Cm) bf16, b2_ref: (1, Cm)  f32   (im2col-flattened 3x3, BN2 folded)
    # w3_ref: (Cm, Cout) bf16, b3_ref: (1, Cout) f32  (BN3 folded)
    # o_ref : (1, H, W, Cout)  f32
    _, H, W, Cout = o_ref.shape
    _, Hp, Wp, Cin = xp_ref.shape
    Cm = w1_ref.shape[1]

    # Upcast once; values are already bf16-rounded, f32 keeps every in-kernel
    # slice/reshape on the well-supported (8,128) f32 layout.
    xpf = xp_ref[0].astype(jnp.float32)                      # (Hp, Wp, Cin)
    x2d = xpf.reshape(Hp * Wp, Cin)

    # ---- conv1 (1x1) + bn1 + relu, computed on the padded pixel grid --------
    y1 = jnp.dot(x2d.astype(jnp.bfloat16), w1_ref[...],
                 preferred_element_type=jnp.float32)         # (Hp*Wp, Cm)
    # relu + zero the halo ring so the 3x3 below sees true zero padding.
    a1 = (jnp.maximum(y1 + b1_ref[...], 0.0) * m_ref[...]).reshape(Hp, Wp, Cm)

    # ---- conv2 (3x3, pad=1) as a single im2col matmul, K = 9*Cm -------------
    xs = jnp.concatenate([a1[:, dx:dx + W, :] for dx in range(3)], axis=-1)   # (Hp, W, 3Cm)
    patches = jnp.concatenate([xs[dy:dy + H] for dy in range(3)], axis=-1)    # (H, W, 9Cm)
    y2 = jnp.dot(patches.reshape(H * W, 9 * Cm).astype(jnp.bfloat16),
                 w2_ref[...], preferred_element_type=jnp.float32)             # (H*W, Cm)
    a2 = jnp.maximum(y2 + b2_ref[...], 0.0).astype(jnp.bfloat16)

    # ---- conv3 (1x1) + bn3 + residual add + relu ----------------------------
    res = xpf[1:H + 1, 1:W + 1, :].reshape(H * W, Cin)       # residual (f32)
    y3 = jnp.dot(a2, w3_ref[...], preferred_element_type=jnp.float32)
    y3 = y3 + b3_ref[...] + res
    o_ref[0] = jnp.maximum(y3, 0.0).reshape(H, W, Cout).astype(o_ref.dtype)


# ----------------------------------------------------------------------------
# Parameter preparation: fold BN scale into weights, pad mid channels to 128
# ----------------------------------------------------------------------------
def _fold_bn(gamma, beta, mean, var, eps=1e-5):
    scale = gamma / jnp.sqrt(var + eps)
    bias = beta - mean * scale
    return scale, bias


def _prepare_params(params, cmid_pad):
    s1, b1 = _fold_bn(*params["bn1"])
    s2, b2 = _fold_bn(*params["bn2"])
    s3, b3 = _fold_bn(*params["bn3"])
    w1 = params["w1"] * s1[None, :]                    # (Cin, Cm)
    w2 = params["w2"] * s2[None, None, None, :]        # (3, 3, Cm, Cm)
    w3 = params["w3"] * s3[None, :]                    # (Cm, Cout)
    cm = w1.shape[1]
    p = cmid_pad - cm
    w1 = jnp.pad(w1, ((0, 0), (0, p)))
    b1 = jnp.pad(b1, (0, p))
    w2 = jnp.pad(w2, ((0, 0), (0, 0), (0, p), (0, p)))
    b2 = jnp.pad(b2, (0, p))
    w3 = jnp.pad(w3, ((0, p), (0, 0)))
    return (w1.astype(jnp.bfloat16),
            b1.reshape(1, -1).astype(jnp.float32),
            w2.reshape(9 * cmid_pad, cmid_pad).astype(jnp.bfloat16),
            b2.reshape(1, -1).astype(jnp.float32),
            w3.astype(jnp.bfloat16),
            b3.reshape(1, -1).astype(jnp.float32))


# ----------------------------------------------------------------------------
# Wrappers
# ----------------------------------------------------------------------------
def bottleneck_forward_nhwc(x_nhwc, params):
    """Fused Bottleneck (stride=1, identity shortcut). NHWC in, NHWC f32 out."""
    N, H, W, Cin = x_nhwc.shape
    cmid = params["w1"].shape[1]
    cout = params["w3"].shape[1]
    assert cout == Cin, "identity shortcut requires Cin == Cout"
    cmid_p = max(128, ((cmid + 127) // 128) * 128)     # lane-dense mid channels
    w1, b1, w2, b2, w3, b3 = _prepare_params(params, cmid_p)

    # Spatial zero-pad fused with the f32->bf16 cast; right-pad W so the padded
    # width is a multiple of 8 (clean sublane layout for in-kernel reshapes).
    Hp = H + 2
    Wp = ((W + 2 + 7) // 8) * 8
    xp = jnp.pad(x_nhwc.astype(jnp.bfloat16),
                 ((0, 0), (1, 1), (1, Wp - W - 1), (0, 0)))

    # Interior mask (0 on the halo ring / extra pad columns, 1 elsewhere).
    r = jnp.arange(Hp)[:, None]
    c = jnp.arange(Wp)[None, :]
    mask = (((r >= 1) & (r <= H) & (c >= 1) & (c <= W))
            .astype(jnp.float32).reshape(Hp * Wp, 1))

    out = pl.pallas_call(
        _bottleneck_kernel,
        out_shape=jax.ShapeDtypeStruct((N, H, W, cout), jnp.float32),
        grid=(N,),
        in_specs=[
            pl.BlockSpec((1, Hp, Wp, Cin), lambda n: (n, 0, 0, 0)),
            pl.BlockSpec((Hp * Wp, 1), lambda n: (0, 0)),
            pl.BlockSpec((Cin, cmid_p), lambda n: (0, 0)),
            pl.BlockSpec((1, cmid_p), lambda n: (0, 0)),
            pl.BlockSpec((9 * cmid_p, cmid_p), lambda n: (0, 0)),
            pl.BlockSpec((1, cmid_p), lambda n: (0, 0)),
            pl.BlockSpec((cmid_p, cout), lambda n: (0, 0)),
            pl.BlockSpec((1, cout), lambda n: (0, 0)),
        ],
        out_specs=pl.BlockSpec((1, H, W, cout), lambda n: (n, 0, 0, 0)),
        compiler_params=pltpu.CompilerParams(
            dimension_semantics=("parallel",),
            vmem_limit_bytes=32 * 1024 * 1024),
    )(xp, mask, w1, b1, w2, b2, w3, b3)
    return out


def bottleneck_forward(x_nchw, params):
    """PyTorch-convention adapter (NCHW in/out). The Pallas path is NHWC-native;
    in a full network the layout conversion happens once at the ends."""
    x_nhwc = jnp.transpose(x_nchw, (0, 2, 3, 1))
    out = bottleneck_forward_nhwc(x_nhwc, params)
    return jnp.transpose(out, (0, 3, 1, 2))


# ----------------------------------------------------------------------------
# Pure-JAX references (NCHW, PyTorch-style) for verification
# ----------------------------------------------------------------------------
def _conv_nchw(x, w_oihw, pad=0, prefer=None):
    return lax.conv_general_dilated(
        x, w_oihw, (1, 1), [(pad, pad), (pad, pad)],
        dimension_numbers=("NCHW", "OIHW", "NCHW"),
        preferred_element_type=prefer)


def _ref_forward(x, params):
    """Full-f32 reference (mirrors nn.Conv2d + eval-mode nn.BatchNorm2d + ReLU)."""
    def bn(y, g, b, m, v, eps=1e-5):
        s = g / jnp.sqrt(v + eps)
        return y * s[None, :, None, None] + (b - m * s)[None, :, None, None]

    w1 = jnp.transpose(params["w1"], (1, 0))[:, :, None, None]
    w2 = jnp.transpose(params["w2"], (3, 2, 0, 1))
    w3 = jnp.transpose(params["w3"], (1, 0))[:, :, None, None]
    out = jax.nn.relu(bn(_conv_nchw(x, w1), *params["bn1"]))
    out = jax.nn.relu(bn(_conv_nchw(out, w2, pad=1), *params["bn2"]))
    out = bn(_conv_nchw(out, w3), *params["bn3"])
    return jax.nn.relu(out + x)


def _ref_forward_mixed(x, params):
    """bf16-operand / f32-accumulate reference mirroring the kernel's numerics."""
    def q(a):
        return a.astype(jnp.bfloat16)

    s1, b1 = _fold_bn(*params["bn1"])
    s2, b2 = _fold_bn(*params["bn2"])
    s3, b3 = _fold_bn(*params["bn3"])
    w1 = jnp.transpose(q(params["w1"] * s1[None, :]), (1, 0))[:, :, None, None]
    w2 = jnp.transpose(q(params["w2"] * s2[None, None, None, :]), (3, 2, 0, 1))
    w3 = jnp.transpose(q(params["w3"] * s3[None, :]), (1, 0))[:, :, None, None]
    xq = q(x)
    f32 = jnp.float32
    a1 = q(jax.nn.relu(_conv_nchw(xq, w1, prefer=f32) + b1[None, :, None, None]))
    a2 = q(jax.nn.relu(_conv_nchw(a1, w2, pad=1, prefer=f32) + b2[None, :, None, None]))
    y3 = _conv_nchw(a2, w3, prefer=f32) + b3[None, :, None, None] + xq.astype(f32)
    return jax.nn.relu(y3)


# ----------------------------------------------------------------------------
# Main
# ----------------------------------------------------------------------------
if __name__ == "__main__":
    key = jax.random.PRNGKey(0)
    planes, expansion = 64, 4
    inplanes = planes * expansion          # 256: identity shortcut (Cin == Cout)
    N, H, W = 8, 16, 16

    keys = jax.random.split(key, 8)
    x = jax.random.normal(keys[0], (N, inplanes, H, W), jnp.float32)

    def bn_params(k, c):
        k1, k2, k3, k4 = jax.random.split(k, 4)
        gamma = jax.random.uniform(k1, (c,), jnp.float32, 0.8, 1.2)
        beta = 0.1 * jax.random.normal(k2, (c,), jnp.float32)
        mean = 0.1 * jax.random.normal(k3, (c,), jnp.float32)
        var = jax.random.uniform(k4, (c,), jnp.float32, 0.8, 1.2)
        return (gamma, beta, mean, var)

    params = {
        # 1x1 convs stored as (Cin, Cout); the 3x3 as (3, 3, Cin, Cout)
        "w1": 0.1 * jax.random.normal(keys[1], (inplanes, planes), jnp.float32),
        "w2": 0.1 * jax.random.normal(keys[2], (3, 3, planes, planes), jnp.float32),
        "w3": 0.1 * jax.random.normal(keys[3], (planes, inplanes), jnp.float32),
        "bn1": bn_params(keys[4], planes),
        "bn2": bn_params(keys[5], planes),
        "bn3": bn_params(keys[6], inplanes),
    }

    out = jax.block_until_ready(bottleneck_forward(x, params))
    assert out.shape == (N, inplanes, H, W)

    # Strict check against a reference with identical bf16 operand quantization.
    ref_mixed = jax.block_until_ready(_ref_forward_mixed(x, params))
    err_mixed = float(jnp.max(jnp.abs(out - ref_mixed)))
    assert jnp.allclose(out, ref_mixed, atol=5e-3, rtol=5e-3), err_mixed

    # Loose sanity check against the full-f32 PyTorch-style semantics
    # (difference bounded by the bf16 operand rounding of the mixed-precision path).
    ref_f32 = jax.block_until_ready(_ref_forward(x, params))
    err_f32 = float(jnp.max(jnp.abs(out - ref_f32)))
    assert jnp.allclose(out, ref_f32, atol=0.3, rtol=0.03), err_f32

    print("KERNEL_OK")
</pallas_src>

<mosaic_0001>
module attributes {stable_mosaic.version = 11 : i64} {
  func.func @_bottleneck_kernel(%arg0: i32, %arg1: memref<1x18x24x256xbf16, #tpu.memory_space<vmem>>, %arg2: memref<432x1xf32, #tpu.memory_space<vmem>>, %arg3: memref<256x128xbf16, #tpu.memory_space<vmem>>, %arg4: memref<1x128xf32, #tpu.memory_space<vmem>>, %arg5: memref<1152x128xbf16, #tpu.memory_space<vmem>>, %arg6: memref<1x128xf32, #tpu.memory_space<vmem>>, %arg7: memref<128x256xbf16, #tpu.memory_space<vmem>>, %arg8: memref<1x256xf32, #tpu.memory_space<vmem>>, %arg9: memref<1x16x16x256xf32, #tpu.memory_space<vmem>>) attributes {dimension_semantics = [#tpu.dimension_semantics<parallel>], iteration_bounds = array<i64: 8>, scalar_prefetch = 0 : i64, scratch_operands = 0 : i64, tpu.core_type = #tpu.core_type<tc>, window_params = [{transform_indices = @transform_0, window_bounds = array<i64: 1, 18, 24, 256>}, {pipeline_mode = #tpu.pipeline_mode<synchronous>, transform_indices = @transform_1, window_bounds = array<i64: 432, 1>}, {pipeline_mode = #tpu.pipeline_mode<synchronous>, transform_indices = @transform_2, window_bounds = array<i64: 256, 128>}, {pipeline_mode = #tpu.pipeline_mode<synchronous>, transform_indices = @transform_3, window_bounds = array<i64: 1, 128>}, {pipeline_mode = #tpu.pipeline_mode<synchronous>, transform_indices = @transform_4, window_bounds = array<i64: 1152, 128>}, {pipeline_mode = #tpu.pipeline_mode<synchronous>, transform_indices = @transform_5, window_bounds = array<i64: 1, 128>}, {pipeline_mode = #tpu.pipeline_mode<synchronous>, transform_indices = @transform_6, window_bounds = array<i64: 128, 256>}, {pipeline_mode = #tpu.pipeline_mode<synchronous>, transform_indices = @transform_7, window_bounds = array<i64: 1, 256>}, {transform_indices = @transform_8, window_bounds = array<i64: 1, 16, 16, 256>}]} {
    %c0 = arith.constant 0 : index
    %c0_0 = arith.constant 0 : index
    %c0_1 = arith.constant 0 : index
    %c0_2 = arith.constant 0 : index
    %0 = vector.load %arg1[%c0, %c0_0, %c0_1, %c0_2] : memref<1x18x24x256xbf16, #tpu.memory_space<vmem>>, vector<1x18x24x256xbf16>
    %1 = vector.shape_cast %0 : vector<1x18x24x256xbf16> to vector<18x24x256xbf16>
    %2 = arith.extf %1 : vector<18x24x256xbf16> to vector<18x24x256xf32>
    %3 = vector.shape_cast %2 : vector<18x24x256xf32> to vector<432x256xf32>
    %4 = arith.truncf %3 : vector<432x256xf32> to vector<432x256xbf16>
    %c0_3 = arith.constant 0 : index
    %c0_4 = arith.constant 0 : index
    %5 = vector.load %arg3[%c0_3, %c0_4] : memref<256x128xbf16, #tpu.memory_space<vmem>>, vector<256x128xbf16>
    %cst = arith.constant dense<0.000000e+00> : vector<432x128xf32>
    %6 = tpu.matmul %4, %5, %cst {dimension_numbers = #tpu.dot_dimension_numbers<[1], [0], [0], [1], [0, 0, 1, 1], [], []>} : vector<432x256xbf16>, vector<256x128xbf16>, vector<432x128xf32> -> vector<432x128xf32>
    %c0_5 = arith.constant 0 : index
    %c0_6 = arith.constant 0 : index
    %7 = vector.load %arg4[%c0_5, %c0_6] : memref<1x128xf32, #tpu.memory_space<vmem>>, vector<1x128xf32>
    %8 = vector.broadcast %7 : vector<1x128xf32> to vector<432x128xf32>
    %9 = arith.addf %6, %8 : vector<432x128xf32>
    %cst_7 = arith.constant 0.000000e+00 : f32
    %10 = vector.broadcast %cst_7 : f32 to vector<432x128xf32>
    %11 = arith.maximumf %9, %10 : vector<432x128xf32>
    %c0_8 = arith.constant 0 : index
    %c0_9 = arith.constant 0 : index
    %12 = vector.load %arg2[%c0_8, %c0_9] : memref<432x1xf32, #tpu.memory_space<vmem>>, vector<432x1xf32>
    %13 = vector.broadcast %12 : vector<432x1xf32> to vector<432x128xf32>
    %14 = arith.mulf %11, %13 : vector<432x128xf32>
    %15 = vector.shape_cast %14 : vector<432x128xf32> to vector<18x24x128xf32>
    %16 = vector.extract_strided_slice %15 {offsets = [0, 0, 0], sizes = [18, 16, 128], strides = [1, 1, 1]} : vector<18x24x128xf32> to vector<18x16x128xf32>
    %17 = vector.extract_strided_slice %15 {offsets = [0, 1, 0], sizes = [18, 16, 128], strides = [1, 1, 1]} : vector<18x24x128xf32> to vector<18x16x128xf32>
    %18 = vector.extract_strided_slice %15 {offsets = [0, 2, 0], sizes = [18, 16, 128], strides = [1, 1, 1]} : vector<18x24x128xf32> to vector<18x16x128xf32>
    %19 = tpu.concatenate %16, %17, %18 in 2 : vector<18x16x128xf32>, vector<18x16x128xf32>, vector<18x16x128xf32> -> vector<18x16x384xf32>
    %20 = vector.extract_strided_slice %19 {offsets = [0, 0, 0], sizes = [16, 16, 384], strides = [1, 1, 1]} : vector<18x16x384xf32> to vector<16x16x384xf32>
    %21 = vector.extract_strided_slice %19 {offsets = [1, 0, 0], sizes = [16, 16, 384], strides = [1, 1, 1]} : vector<18x16x384xf32> to vector<16x16x384xf32>
    %22 = vector.extract_strided_slice %19 {offsets = [2, 0, 0], sizes = [16, 16, 384], strides = [1, 1, 1]} : vector<18x16x384xf32> to vector<16x16x384xf32>
    %23 = tpu.concatenate %20, %21, %22 in 2 : vector<16x16x384xf32>, vector<16x16x384xf32>, vector<16x16x384xf32> -> vector<16x16x1152xf32>
    %24 = vector.shape_cast %23 : vector<16x16x1152xf32> to vector<256x1152xf32>
    %25 = arith.truncf %24 : vector<256x1152xf32> to vector<256x1152xbf16>
    %c0_10 = arith.constant 0 : index
    %c0_11 = arith.constant 0 : index
    %26 = vector.load %arg5[%c0_10, %c0_11] : memref<1152x128xbf16, #tpu.memory_space<vmem>>, vector<1152x128xbf16>
    %cst_12 = arith.constant dense<0.000000e+00> : vector<256x128xf32>
    %27 = tpu.matmul %25, %26, %cst_12 {dimension_numbers = #tpu.dot_dimension_numbers<[1], [0], [0], [1], [0, 0, 1, 1], [], []>} : vector<256x1152xbf16>, vector<1152x128xbf16>, vector<256x128xf32> -> vector<256x128xf32>
    %c0_13 = arith.constant 0 : index
    %c0_14 = arith.constant 0 : index
    %28 = vector.load %arg6[%c0_13, %c0_14] : memref<1x128xf32, #tpu.memory_space<vmem>>, vector<1x128xf32>
    %29 = vector.broadcast %28 : vector<1x128xf32> to vector<256x128xf32>
    %30 = arith.addf %27, %29 : vector<256x128xf32>
    %cst_15 = arith.constant 0.000000e+00 : f32
    %31 = vector.broadcast %cst_15 : f32 to vector<256x128xf32>
    %32 = arith.maximumf %30, %31 : vector<256x128xf32>
    %33 = arith.truncf %32 : vector<256x128xf32> to vector<256x128xbf16>
    %34 = vector.extract_strided_slice %2 {offsets = [1, 1, 0], sizes = [16, 16, 256], strides = [1, 1, 1]} : vector<18x24x256xf32> to vector<16x16x256xf32>
    %35 = vector.shape_cast %34 : vector<16x16x256xf32> to vector<256x256xf32>
    %c0_16 = arith.constant 0 : index
    %c0_17 = arith.constant 0 : index
    %36 = vector.load %arg7[%c0_16, %c0_17] : memref<128x256xbf16, #tpu.memory_space<vmem>>, vector<128x256xbf16>
    %cst_18 = arith.constant dense<0.000000e+00> : vector<256x256xf32>
    %37 = tpu.matmul %33, %36, %cst_18 {dimension_numbers = #tpu.dot_dimension_numbers<[1], [0], [0], [1], [0, 0, 1, 1], [], []>} : vector<256x128xbf16>, vector<128x256xbf16>, vector<256x256xf32> -> vector<256x256xf32>
    %c0_19 = arith.constant 0 : index
    %c0_20 = arith.constant 0 : index
    %38 = vector.load %arg8[%c0_19, %c0_20] : memref<1x256xf32, #tpu.memory_space<vmem>>, vector<1x256xf32>
    %39 = vector.broadcast %38 : vector<1x256xf32> to vector<256x256xf32>
    %40 = arith.addf %37, %39 : vector<256x256xf32>
    %41 = arith.addf %40, %35 : vector<256x256xf32>
    %cst_21 = arith.constant 0.000000e+00 : f32
    %42 = vector.broadcast %cst_21 : f32 to vector<256x256xf32>
    %43 = arith.maximumf %41, %42 : vector<256x256xf32>
    %44 = vector.shape_cast %43 : vector<256x256xf32> to vector<16x16x256xf32>
    %c0_22 = arith.constant 0 : index
    %c0_23 = arith.constant 0 : index
    %c0_24 = arith.constant 0 : index
    %c0_25 = arith.constant 0 : index
    %45 = vector.load %arg9[%c0_22, %c0_23, %c0_24, %c0_25] : memref<1x16x16x256xf32, #tpu.memory_space<vmem>>, vector<1x16x16x256xf32>
    %46 = vector.shape_cast %45 : vector<1x16x16x256xf32> to vector<16x16x256xf32>
    %47 = vector.shape_cast %44 : vector<16x16x256xf32> to vector<1x16x16x256xf32>
    tpu.vector_store %arg9[%c0_22, %c0_23, %c0_24, %c0_25], %47 {strides = array<i32>} : memref<1x16x16x256xf32, #tpu.memory_space<vmem>>, vector<1x16x16x256xf32>,
    return
  }
  func.func @transform_0(%arg0: i32) -> (i32, i32, i32, i32) {
    %c0_i32 = arith.constant 0 : i32
    %c0_i32_0 = arith.constant 0 : i32
    %c0_i32_1 = arith.constant 0 : i32
    %c0_i32_2 = arith.constant 0 : i32
    return %arg0, %c0_i32, %c0_i32_0, %c0_i32_1 : i32, i32, i32, i32
  }
  func.func @transform_1(%arg0: i32) -> (i32, i32) {
    %c0_i32 = arith.constant 0 : i32
    %c0_i32_0 = arith.constant 0 : i32
    %c0_i32_1 = arith.constant 0 : i32
    return %c0_i32, %c0_i32_0 : i32, i32
  }
  func.func @transform_2(%arg0: i32) -> (i32, i32) {
    %c0_i32 = arith.constant 0 : i32
    %c0_i32_0 = arith.constant 0 : i32
    %c0_i32_1 = arith.constant 0 : i32
    return %c0_i32, %c0_i32_0 : i32, i32
  }
  func.func @transform_3(%arg0: i32) -> (i32, i32) {
    %c0_i32 = arith.constant 0 : i32
    %c0_i32_0 = arith.constant 0 : i32
    %c0_i32_1 = arith.constant 0 : i32
    return %c0_i32, %c0_i32_0 : i32, i32
  }
  func.func @transform_4(%arg0: i32) -> (i32, i32) {
    %c0_i32 = arith.constant 0 : i32
    %c0_i32_0 = arith.constant 0 : i32
    %c0_i32_1 = arith.constant 0 : i32
    return %c0_i32, %c0_i32_0 : i32, i32
  }
  func.func @transform_5(%arg0: i32) -> (i32, i32) {
    %c0_i32 = arith.constant 0 : i32
    %c0_i32_0 = arith.constant 0 : i32
    %c0_i32_1 = arith.constant 0 : i32
    return %c0_i32, %c0_i32_0 : i32, i32
  }
  func.func @transform_6(%arg0: i32) -> (i32, i32) {
    %c0_i32 = arith.constant 0 : i32
    %c0_i32_0 = arith.constant 0 : i32
    %c0_i32_1 = arith.constant 0 : i32
    return %c0_i32, %c0_i32_0 : i32, i32
  }
  func.func @transform_7(%arg0: i32) -> (i32, i32) {
    %c0_i32 = arith.constant 0 : i32
    %c0_i32_0 = arith.constant 0 : i32
    %c0_i32_1 = arith.constant 0 : i32
    return %c0_i32, %c0_i32_0 : i32, i32
  }
  func.func @transform_8(%arg0: i32) -> (i32, i32, i32, i32) {
    %c0_i32 = arith.constant 0 : i32
    %c0_i32_0 = arith.constant 0 : i32
    %c0_i32_1 = arith.constant 0 : i32
    %c0_i32_2 = arith.constant 0 : i32
    return %arg0, %c0_i32, %c0_i32_0, %c0_i32_1 : i32, i32, i32, i32
  }
}

</mosaic_0001>

<llo_original>
// kernel: tpu_custom_call.1
$region0: #{tpu_custom_call.1}
  #allocation0 [shape = 'u32[]', space=smem, size = 0x4, offset = 0x4, fixed_abs, tag = 'smem constant byte address 0x4 - core index']
  #allocation1 [shape = 'u32[144,128]{1,0:T(1,128)}', space=vmem, size = 0x12000, scoped, tag = 'internal scratch']
  %s0 = inlined_call_operand.hbm [shape: bf16[8,18,24,256], index: 0, kind: input, shape index: {}]
  %s1 = inlined_call_operand.vmem [shape: f32[432,1], index: 1, kind: input, shape index: {}]
  %s2 = inlined_call_operand.hbm [shape: bf16[256,128], index: 2, kind: input, shape index: {}]
  %s3 = inlined_call_operand.hbm [shape: f32[1,128], index: 3, kind: input, shape index: {}]
  %s4 = inlined_call_operand.hbm [shape: bf16[1152,128], index: 4, kind: input, shape index: {}]
  %s5 = inlined_call_operand.hbm [shape: f32[1,128], index: 5, kind: input, shape index: {}]
  %s6 = inlined_call_operand.hbm [shape: bf16[128,256], index: 6, kind: input, shape index: {}]
  %s7 = inlined_call_operand.hbm [shape: f32[1,256], index: 7, kind: input, shape index: {}]
  %s8 = inlined_call_operand.hbm [shape: f32[8,16,16,256], index: 8, kind: output, shape index: {}]
  %s9 = sld [smem:[#allocation0]]
  $region93: #{tpu_custom_call.1} parent=0
    _
  %s11 = ssub.s32 1, %s9
  %s12 = scalar_select 0, %s11, %s9
  $region1: #{tpu_custom_call.1} parent=0
    #allocation2 [shape = 'u8[442368]{0}', space=vmem, size = 0x6c000, scoped, tag = 'input window, operand 0']
    #allocation3 [shape = 's32[2]{0}', space=sflag, size = 0x8, scoped, tag = 'scoped memory for tpu_custom_call.1']
    #allocation4 [shape = 's32[2]{0}', space=sflag, size = 0x8, scoped, tag = 'scoped memory for tpu_custom_call.1']
    #allocation5 [shape = 'u8[65536]{0}', space=vmem, size = 0x10000, scoped, tag = 'input window, operand 2, single buffered']
    #allocation6 [shape = 's32[1]{0}', space=sflag, size = 0x4, scoped, tag = 'scoped memory for tpu_custom_call.1']
    #allocation7 [shape = 'u8[512]{0}', space=vmem, size = 0x400, scoped, tag = 'input window, operand 3, single buffered']
    #allocation8 [shape = 'u8[294912]{0}', space=vmem, size = 0x48000, scoped, tag = 'input window, operand 4, single buffered']
    #allocation9 [shape = 's32[1]{0}', space=sflag, size = 0x4, scoped, tag = 'scoped memory for tpu_custom_call.1']
    #allocation10 [shape = 'u8[512]{0}', space=vmem, size = 0x400, scoped, tag = 'input window, operand 5, single buffered']
    #allocation11 [shape = 'u8[65536]{0}', space=vmem, size = 0x10000, scoped, tag = 'input window, operand 6, single buffered']
    #allocation12 [shape = 's32[1]{0}', space=sflag, size = 0x4, scoped, tag = 'scoped memory for tpu_custom_call.1']
    #allocation13 [shape = 'u8[1024]{0}', space=vmem, size = 0x400, scoped, tag = 'input window, operand 7, single buffered']
    #allocation14 [shape = 'u8[524288]{0}', space=vmem, size = 0x80000, scoped, tag = 'output window, operand 0']
    %13 = vsyncpa [#allocation3], 0
    %s14 = scalar_lea.sflag [#allocation3], 1
    %15 = vsyncpa %s14, 0
    %16 = vsyncpa [#allocation6], 0
    %17 = vsyncpa [#allocation9], 0
    %18 = vsyncpa [#allocation12], 0
    %19 = vsyncpa [#allocation4], 0
    %s20 = scalar_lea.sflag [#allocation4], 1
    %21 = vsyncpa %s20, 0
    loop: start=0, step=1, limit=10
    $region2: #{tpu_custom_call.1} parent=1 // loop_pre_header
      _
    $region3: #{tpu_custom_call.1} parent=1 // loop_header
      %s23 = sphi 0, %s27
      %p24 = scmp.ge.s32.totalorder %s23, 10
      %s33 = sphi 0, %s35
      %s36 = sphi 0, %s33
      %s37 = sphi 0, %s36
      %s53 = sphi 0, %s37
      %s57 = sphi 0, %s57
      %s59 = sphi 0, %s57
      %s60 = sphi 0, %s59
      %s74 = sphi 0, %s60
      %s78 = sphi 0, %s78
      %s80 = sphi 0, %s78
      %s81 = sphi 0, %s80
      %s95 = sphi 0, %s81
      %s99 = sphi 0, %s99
      %s101 = sphi 0, %s99
      %s102 = sphi 0, %s101
      %s116 = sphi 0, %s102
      %s120 = sphi 0, %s120
      %s122 = sphi 0, %s120
      %s123 = sphi 0, %s122
      %s137 = sphi 0, %s123
      %s141 = sphi 0, %s141
      %s143 = sphi 0, %s141
      %s144 = sphi 0, %s143
      %s158 = sphi 0, %s144
      %s162 = sphi 0, %s162
      %s164 = sphi 0, %s162
      %s165 = sphi 0, %s164
      %s179 = sphi 0, %s165
      %s183 = sphi 0, %s183
      %s185 = sphi 0, %s183
      %s186 = sphi 0, %s185
      %s200 = sphi 0, %s186
      %s206 = sphi 0, %s208
      %s209 = sphi 0, %s206
      %s210 = sphi 0, %s209
      %s226 = sphi 0, %s210
    $region4: #{tpu_custom_call.1} parent=1 // loop_header_branch
      %26 = sbr.rel (%p24) target = $region8
    $region5: #{tpu_custom_call.1} parent=1 // loop_body
      %s28 = ssub.s32 %s23, 1
      %s29 = ssub.s32 %s23, 2
      %s30 = sadd.s32 %s23, 1
      %s31 = ssub.s32 %s23, %s30
      %p32 = scmp.eq.s32.totalorder %s31, 0
      %s34 = sadd.s32 %s33, 1
      %s35 = scalar_select %p32, %s33, %s34
      %p38 = pneg %p32
      %p39 = scmp.eq.s32.totalorder %s23, 7
      %p40 = por %p38, %p39
      %p41 = scmp.ne.s32.totalorder %s33, %s36
      %p42 = scmp.eq.s32.totalorder %s23, 0
      %p43 = por %p41, %p42
      %p44 = scmp.ne.s32.totalorder %s33, %s36
      %p45 = scmp.eq.s32.totalorder %s28, 7
      %p46 = por %p44, %p45
      %p47 = scmp.ne.s32.totalorder %s36, %s37
      %p48 = scmp.eq.s32.totalorder %s28, 0
      %p49 = por %p47, %p48
      %p50 = scmp.ne.s32.totalorder %s36, %s37
      %p51 = scmp.eq.s32.totalorder %s29, 7
      %p52 = por %p50, %p51
      %p54 = scmp.ne.s32.totalorder %s37, %s53
      %p55 = scmp.eq.s32.totalorder %s29, 0
      %p56 = por %p54, %p55
      %s58 = sadd.s32 %s57, 1
      %p61 = scmp.eq.s32.totalorder %s23, 7
      %p62 = scmp.ne.s32.totalorder %s57, %s59
      %p63 = scmp.eq.s32.totalorder %s23, 0
      %p64 = por %p62, %p63
      %p65 = scmp.ne.s32.totalorder %s57, %s59
      %p66 = scmp.eq.s32.totalorder %s28, 7
      %p67 = por %p65, %p66
      %p68 = scmp.ne.s32.totalorder %s59, %s60
      %p69 = scmp.eq.s32.totalorder %s28, 0
      %p70 = por %p68, %p69
      %p71 = scmp.ne.s32.totalorder %s59, %s60
      %p72 = scmp.eq.s32.totalorder %s29, 7
      %p73 = por %p71, %p72
      %p75 = scmp.ne.s32.totalorder %s60, %s74
      %p76 = scmp.eq.s32.totalorder %s29, 0
      %p77 = por %p75, %p76
      %s79 = sadd.s32 %s78, 1
      %p82 = scmp.eq.s32.totalorder %s23, 7
      %p83 = scmp.ne.s32.totalorder %s78, %s80
      %p84 = scmp.eq.s32.totalorder %s23, 0
      %p85 = por %p83, %p84
      %p86 = scmp.ne.s32.totalorder %s78, %s80
      %p87 = scmp.eq.s32.totalorder %s28, 7
      %p88 = por %p86, %p87
      %p89 = scmp.ne.s32.totalorder %s80, %s81
      %p90 = scmp.eq.s32.totalorder %s28, 0
      %p91 = por %p89, %p90
      %p92 = scmp.ne.s32.totalorder %s80, %s81
      %p93 = scmp.eq.s32.totalorder %s29, 7
      %p94 = por %p92, %p93
      %p96 = scmp.ne.s32.totalorder %s81, %s95
      %p97 = scmp.eq.s32.totalorder %s29, 0
      %p98 = por %p96, %p97
      %s100 = sadd.s32 %s99, 1
      %p103 = scmp.eq.s32.totalorder %s23, 7
      %p104 = scmp.ne.s32.totalorder %s99, %s101
      %p105 = scmp.eq.s32.totalorder %s23, 0
      %p106 = por %p104, %p105
      %p107 = scmp.ne.s32.totalorder %s99, %s101
      %p108 = scmp.eq.s32.totalorder %s28, 7
      %p109 = por %p107, %p108
      %p110 = scmp.ne.s32.totalorder %s101, %s102
      %p111 = scmp.eq.s32.totalorder %s28, 0
      %p112 = por %p110, %p111
      %p113 = scmp.ne.s32.totalorder %s101, %s102
      %p114 = scmp.eq.s32.totalorder %s29, 7
      %p115 = por %p113, %p114
      %p117 = scmp.ne.s32.totalorder %s102, %s116
      %p118 = scmp.eq.s32.totalorder %s29, 0
      %p119 = por %p117, %p118
      %s121 = sadd.s32 %s120, 1
      %p124 = scmp.eq.s32.totalorder %s23, 7
      %p125 = scmp.ne.s32.totalorder %s120, %s122
      %p126 = scmp.eq.s32.totalorder %s23, 0
      %p127 = por %p125, %p126
      %p128 = scmp.ne.s32.totalorder %s120, %s122
      %p129 = scmp.eq.s32.totalorder %s28, 7
      %p130 = por %p128, %p129
      %p131 = scmp.ne.s32.totalorder %s122, %s123
      %p132 = scmp.eq.s32.totalorder %s28, 0
      %p133 = por %p131, %p132
      %p134 = scmp.ne.s32.totalorder %s122, %s123
      %p135 = scmp.eq.s32.totalorder %s29, 7
      %p136 = por %p134, %p135
      %p138 = scmp.ne.s32.totalorder %s123, %s137
      %p139 = scmp.eq.s32.totalorder %s29, 0
      %p140 = por %p138, %p139
      %s142 = sadd.s32 %s141, 1
      %p145 = scmp.eq.s32.totalorder %s23, 7
      %p146 = scmp.ne.s32.totalorder %s141, %s143
      %p147 = scmp.eq.s32.totalorder %s23, 0
      %p148 = por %p146, %p147
      %p149 = scmp.ne.s32.totalorder %s141, %s143
      %p150 = scmp.eq.s32.totalorder %s28, 7
      %p151 = por %p149, %p150
      %p152 = scmp.ne.s32.totalorder %s143, %s144
      %p153 = scmp.eq.s32.totalorder %s28, 0
      %p154 = por %p152, %p153
      %p155 = scmp.ne.s32.totalorder %s143, %s144
      %p156 = scmp.eq.s32.totalorder %s29, 7
      %p157 = por %p155, %p156
      %p159 = scmp.ne.s32.totalorder %s144, %s158
      %p160 = scmp.eq.s32.totalorder %s29, 0
      %p161 = por %p159, %p160
      %s163 = sadd.s32 %s162, 1
      %p166 = scmp.eq.s32.totalorder %s23, 7
      %p167 = scmp.ne.s32.totalorder %s162, %s164
      %p168 = scmp.eq.s32.totalorder %s23, 0
      %p169 = por %p167, %p168
      %p170 = scmp.ne.s32.totalorder %s162, %s164
      %p171 = scmp.eq.s32.totalorder %s28, 7
      %p172 = por %p170, %p171
      %p173 = scmp.ne.s32.totalorder %s164, %s165
      %p174 = scmp.eq.s32.totalorder %s28, 0
      %p175 = por %p173, %p174
      %p176 = scmp.ne.s32.totalorder %s164, %s165
      %p177 = scmp.eq.s32.totalorder %s29, 7
      %p178 = por %p176, %p177
      %p180 = scmp.ne.s32.totalorder %s165, %s179
      %p181 = scmp.eq.s32.totalorder %s29, 0
      %p182 = por %p180, %p181
      %s184 = sadd.s32 %s183, 1
      %p187 = scmp.eq.s32.totalorder %s23, 7
      %p188 = scmp.ne.s32.totalorder %s183, %s185
      %p189 = scmp.eq.s32.totalorder %s23, 0
      %p190 = por %p188, %p189
      %p191 = scmp.ne.s32.totalorder %s183, %s185
      %p192 = scmp.eq.s32.totalorder %s28, 7
      %p193 = por %p191, %p192
      %p194 = scmp.ne.s32.totalorder %s185, %s186
      %p195 = scmp.eq.s32.totalorder %s28, 0
      %p196 = por %p194, %p195
      %p197 = scmp.ne.s32.totalorder %s185, %s186
      %p198 = scmp.eq.s32.totalorder %s29, 7
      %p199 = por %p197, %p198
      %p201 = scmp.ne.s32.totalorder %s186, %s200
      %p202 = scmp.eq.s32.totalorder %s29, 0
      %p203 = por %p201, %p202
      %s204 = ssub.s32 %s23, %s30
      %p205 = scmp.eq.s32.totalorder %s204, 0
      %s207 = sadd.s32 %s206, 1
      %s208 = scalar_select %p205, %s206, %s207
      %p211 = pneg %p205
      %p212 = scmp.eq.s32.totalorder %s23, 7
      %p213 = por %p211, %p212
      %p214 = scmp.ne.s32.totalorder %s206, %s209
      %p215 = scmp.eq.s32.totalorder %s23, 0
      %p216 = por %p214, %p215
      %p217 = scmp.ne.s32.totalorder %s206, %s209
      %p218 = scmp.eq.s32.totalorder %s28, 7
      %p219 = por %p217, %p218
      %p220 = scmp.ne.s32.totalorder %s209, %s210
      %p221 = scmp.eq.s32.totalorder %s28, 0
      %p222 = por %p220, %p221
      %p223 = scmp.ne.s32.totalorder %s209, %s210
      %p224 = scmp.eq.s32.totalorder %s29, 7
      %p225 = por %p223, %p224
      %p227 = scmp.ne.s32.totalorder %s210, %s226
      %p228 = scmp.eq.s32.totalorder %s29, 0
      %p229 = por %p227, %p228
      %p230 = scmp.le.s32.totalorder 1, %s23
      %p231 = scmp.lt.s32.totalorder %s23, 9
      %p232 = pnand %p230, %p231
      %p233 = pneg %p232
      // Predicated region
      $region9: #{tpu_custom_call.1} parent=5 // pred_check
        _
      $region10: #{tpu_custom_call.1} parent=5 // pred_check_branch
        %235 = sbr.rel (%p232) target = $region12
      $region11: #{tpu_custom_call.1} parent=5 // pred_region
        %s236 = ssub.s32 %s23, 1
        // Predicated region
        $region13: #{tpu_custom_call.1} parent=11 // pred_check
          %p237 = pneg %p70
        $region14: #{tpu_custom_call.1} parent=11 // pred_check_branch
          %239 = sbr.rel (%p237) target = $region16
        $region15: #{tpu_custom_call.1} parent=11 // pred_region
          _
        $region16: #{tpu_custom_call.1} parent=11 // pred_fallthru
          _
        // Predicated region
        $region17: #{tpu_custom_call.1} parent=11 // pred_check
          %p240 = pneg %p91
        $region18: #{tpu_custom_call.1} parent=11 // pred_check_branch
          %242 = sbr.rel (%p240) target = $region20
        $region19: #{tpu_custom_call.1} parent=11 // pred_region
          %s244 = ssub.s32 2048, 2048
          %245 = vsyncadd [#allocation6], %s244
          %s246 = sshll.u32 [#allocation5], 4
          %s247 = int_to_ptr.vmem [resolvable:$true] %s246
          %252 = dma.hbm_to_vmem [thread:$0]  %s2, 2048, %s247, [#allocation6], 64, 64, 4
        $region20: #{tpu_custom_call.1} parent=11 // pred_fallthru
          _
        // Predicated region
        $region21: #{tpu_custom_call.1} parent=11 // pred_check
          %p253 = pneg %p112
        $region22: #{tpu_custom_call.1} parent=11 // pred_check_branch
          %255 = sbr.rel (%p253) target = $region24
        $region23: #{tpu_custom_call.1} parent=11 // pred_region
          %s257 = ssub.s32 16, 16
          %258 = vsyncadd [#allocation6], %s257
          %s260 = sshll.u32 [#allocation7], 4
          %s261 = int_to_ptr.vmem [resolvable:$true] %s260
          %263 = dma.hbm_to_vmem [thread:$0]  %s3, 16, %s261, [#allocation6]
        $region24: #{tpu_custom_call.1} parent=11 // pred_fallthru
          _
        // Predicated region
        $region25: #{tpu_custom_call.1} parent=11 // pred_check
          %p264 = pneg %p133
        $region26: #{tpu_custom_call.1} parent=11 // pred_check_branch
          %266 = sbr.rel (%p264) target = $region28
        $region27: #{tpu_custom_call.1} parent=11 // pred_region
          %s268 = ssub.s32 9216, 9216
          %269 = vsyncadd [#allocation9], %s268
          %s270 = sshll.u32 [#allocation8], 4
          %s271 = int_to_ptr.vmem [resolvable:$true] %s270
          %276 = dma.hbm_to_vmem [thread:$0]  %s4, 9216, %s271, [#allocation9], 64, 64, 4
        $region28: #{tpu_custom_call.1} parent=11 // pred_fallthru
          _
        // Predicated region
        $region29: #{tpu_custom_call.1} parent=11 // pred_check
          %p277 = pneg %p154
        $region30: #{tpu_custom_call.1} parent=11 // pred_check_branch
          %279 = sbr.rel (%p277) target = $region32
        $region31: #{tpu_custom_call.1} parent=11 // pred_region
          %s281 = ssub.s32 16, 16
          %282 = vsyncadd [#allocation9], %s281
          %s284 = sshll.u32 [#allocation10], 4
          %s285 = int_to_ptr.vmem [resolvable:$true] %s284
          %287 = dma.hbm_to_vmem [thread:$0]  %s5, 16, %s285, [#allocation9]
        $region32: #{tpu_custom_call.1} parent=11 // pred_fallthru
          _
        // Predicated region
        $region33: #{tpu_custom_call.1} parent=11 // pred_check
          %p288 = pneg %p175
        $region34: #{tpu_custom_call.1} parent=11 // pred_check_branch
          %290 = sbr.rel (%p288) target = $region36
        $region35: #{tpu_custom_call.1} parent=11 // pred_region
          %s292 = ssub.s32 2048, 2048
          %293 = vsyncadd [#allocation12], %s292
          %s294 = sshll.u32 [#allocation11], 4
          %s295 = int_to_ptr.vmem [resolvable:$true] %s294
          %300 = dma.hbm_to_vmem [thread:$0]  %s6, 2048, %s295, [#allocation12], 128, 128, 8
        $region36: #{tpu_custom_call.1} parent=11 // pred_fallthru
          _
        // Predicated region
        $region37: #{tpu_custom_call.1} parent=11 // pred_check
          %p301 = pneg %p196
        $region38: #{tpu_custom_call.1} parent=11 // pred_check_branch
          %303 = sbr.rel (%p301) target = $region40
        $region39: #{tpu_custom_call.1} parent=11 // pred_region
          %s305 = ssub.s32 32, 32
          %306 = vsyncadd [#allocation12], %s305
          %s308 = sshll.u32 [#allocation13], 4
          %s309 = int_to_ptr.vmem [resolvable:$true] %s308
          %311 = dma.hbm_to_vmem [thread:$0]  %s7, 32, %s309, [#allocation12]
        $region40: #{tpu_custom_call.1} parent=11 // pred_fallthru
          _
      $region12: #{tpu_custom_call.1} parent=5 // pred_fallthru
        _
      %p312 = scmp.lt.s32.totalorder %s23, 8
      // Predicated region
      $region41: #{tpu_custom_call.1} parent=5 // pred_check
        %p313 = pneg %p312
      $region42: #{tpu_custom_call.1} parent=5 // pred_check_branch
        %315 = sbr.rel (%p313) target = $region44
      $region43: #{tpu_custom_call.1} parent=5 // pred_region
        // Predicated region
        $region45: #{tpu_custom_call.1} parent=43 // pred_check
          %p316 = pneg %p43
        $region46: #{tpu_custom_call.1} parent=43 // pred_check_branch
          %318 = sbr.rel (%p316) target = $region48
        $region47: #{tpu_custom_call.1} parent=43 // pred_region
          %s319 = sand.u32 %s33, 1
          %s320 = scalar_lea.sflag [#allocation3], %s319
          %s321 = sand.u32 %s33, 1
          %s322 = smul.addr %s321, 432
          %s323 = scalar_lea.vmem [#allocation2], %s322
          %s325 = ssub.s32 6912, 6912
          %326 = vsyncadd %s320, %s325
          %s327 = smul.addr %s23, 108
          %s328 = smul.addr %s327, 64
          %s329 = scalar_lea.hbm %s0, %s328
          %s330 = sshll.u32 %s323, 4
          %s331 = int_to_ptr.vmem [resolvable:$true] %s330
          %336 = dma.hbm_to_vmem [thread:$0]  %s329, 6912, %s331, %s320, 128, 128, 8
        $region48: #{tpu_custom_call.1} parent=43 // pred_fallthru
          _
      $region44: #{tpu_custom_call.1} parent=5 // pred_fallthru
        _
      %p337 = scmp.le.s32.totalorder 1, %s23
      %p338 = scmp.lt.s32.totalorder %s23, 9
      %p339 = pnand %p337, %p338
      %p340 = pneg %p339
      // Predicated region
      $region49: #{tpu_custom_call.1} parent=5 // pred_check
        _
      $region50: #{tpu_custom_call.1} parent=5 // pred_check_branch
        %342 = sbr.rel (%p339) target = $region52
      $region51: #{tpu_custom_call.1} parent=5 // pred_region
        %s343 = ssub.s32 %s23, 1
        %s344 = sand.u32 %s36, 1
        %s345 = scalar_lea.sflag [#allocation3], %s344
        %s346 = sand.u32 %s36, 1
        %s347 = smul.addr %s346, 432
        %s348 = scalar_lea.vmem [#allocation2], %s347
        // Predicated region
        $region53: #{tpu_custom_call.1} parent=51 // pred_check
          %p349 = pneg %p49
        $region54: #{tpu_custom_call.1} parent=51 // pred_check_branch
          %351 = sbr.rel (%p349) target = $region56
        $region55: #{tpu_custom_call.1} parent=51 // pred_region
          %352 = dma.done %s345, 6912
        $region56: #{tpu_custom_call.1} parent=51 // pred_fallthru
          _
        // Predicated region
        $region57: #{tpu_custom_call.1} parent=51 // pred_check
          %p353 = pneg %p91
        $region58: #{tpu_custom_call.1} parent=51 // pred_check_branch
          %355 = sbr.rel (%p353) target = $region60
        $region59: #{tpu_custom_call.1} parent=51 // pred_region
          %356 = dma.done [#allocation6], 2048
        $region60: #{tpu_custom_call.1} parent=51 // pred_fallthru
          _
        // Predicated region
        $region61: #{tpu_custom_call.1} parent=51 // pred_check
          %p357 = pneg %p112
        $region62: #{tpu_custom_call.1} parent=51 // pred_check_branch
          %359 = sbr.rel (%p357) target = $region64
        $region63: #{tpu_custom_call.1} parent=51 // pred_region
          %360 = dma.done [#allocation6], 16
        $region64: #{tpu_custom_call.1} parent=51 // pred_fallthru
          _
        // Predicated region
        $region65: #{tpu_custom_call.1} parent=51 // pred_check
          %p361 = pneg %p133
        $region66: #{tpu_custom_call.1} parent=51 // pred_check_branch
          %363 = sbr.rel (%p361) target = $region68
        $region67: #{tpu_custom_call.1} parent=51 // pred_region
          %364 = dma.done [#allocation9], 9216
        $region68: #{tpu_custom_call.1} parent=51 // pred_fallthru
          _
        // Predicated region
        $region69: #{tpu_custom_call.1} parent=51 // pred_check
          %p365 = pneg %p154
        $region70: #{tpu_custom_call.1} parent=51 // pred_check_branch
          %367 = sbr.rel (%p365) target = $region72
        $region71: #{tpu_custom_call.1} parent=51 // pred_region
          %368 = dma.done [#allocation9], 16
        $region72: #{tpu_custom_call.1} parent=51 // pred_fallthru
          _
        // Predicated region
        $region73: #{tpu_custom_call.1} parent=51 // pred_check
          %p369 = pneg %p175
        $region74: #{tpu_custom_call.1} parent=51 // pred_check_branch
          %371 = sbr.rel (%p369) target = $region76
        $region75: #{tpu_custom_call.1} parent=51 // pred_region
          %372 = dma.done [#allocation12], 2048
        $region76: #{tpu_custom_call.1} parent=51 // pred_fallthru
          _
        // Predicated region
        $region77: #{tpu_custom_call.1} parent=51 // pred_check
          %p373 = pneg %p196
        $region78: #{tpu_custom_call.1} parent=51 // pred_check_branch
          %375 = sbr.rel (%p373) target = $region80
        $region79: #{tpu_custom_call.1} parent=51 // pred_region
          %376 = dma.done [#allocation12], 32
        $region80: #{tpu_custom_call.1} parent=51 // pred_fallthru
          _
        %s377 = sand.u32 %s36, 1
        %s378 = scalar_lea.sflag [#allocation3], %s377
        %s379 = sand.u32 %s36, 1
        %s380 = smul.addr %s379, 432
        %s381 = scalar_lea.vmem [#allocation2], %s380
        %p382 = pneg %p49
        %p383 = pneg %p46
        %p384 = pneg %p70
        %p385 = pneg %p67
        %p386 = pneg %p91
        %p387 = pneg %p88
        %p388 = pneg %p112
        %p389 = pneg %p109
        %p390 = pneg %p133
        %p391 = pneg %p130
        %p392 = pneg %p154
        %p393 = pneg %p151
        %p394 = pneg %p175
        %p395 = pneg %p172
        %p396 = pneg %p196
        %p397 = pneg %p193
        %p398 = pneg %p222
        %p399 = pneg %p219
        %s400 = sand.u32 %s209, 1
        %s401 = scalar_lea.sflag [#allocation4], %s400
        %s402 = sand.u32 %s209, 1
        %s403 = smul.addr %s402, 512
        %s404 = scalar_lea.vmem [#allocation14], %s403
        %v406 = vld [vmem:[%s348] sm:$0xff]
        %v407 = vld [vmem:[%s348 + $0x8] sm:$0xff]
        %v408 = vld [vmem:[%s348 + $0x10] sm:$0xff]
        %v409 = vld [vmem:[%s348 + $0x18] sm:$0xff]
        %v410 = vld [vmem:[%s348 + $0x20] sm:$0xff]
        %v411 = vld [vmem:[%s348 + $0x28] sm:$0xff]
        %v412 = vld [vmem:[%s348 + $0x30] sm:$0xff]
        %v413 = vld [vmem:[%s348 + $0x38] sm:$0xff]
        %v414 = vld [vmem:[%s348 + $0x40] sm:$0xff]
        %v415 = vld [vmem:[%s348 + $0x48] sm:$0xff]
        %v416 = vld [vmem:[%s348 + $0x50] sm:$0xff]
        %v417 = vld [vmem:[%s348 + $0x58] sm:$0xff]
        %v418 = vld [vmem:[%s348 + $0x60] sm:$0xff]
        %v419 = vld [vmem:[%s348 + $0x68] sm:$0xff]
        %v420 = vld [vmem:[%s348 + $0x70] sm:$0xff]
        %v421 = vld [vmem:[%s348 + $0x78] sm:$0xff]
        %v422 = vld [vmem:[%s348 + $0x80] sm:$0xff]
        %v423 = vld [vmem:[%s348 + $0x88] sm:$0xff]
        %v424 = vld [vmem:[%s348 + $0x90] sm:$0xff]
        %v425 = vld [vmem:[%s348 + $0x98] sm:$0xff]
        %v426 = vld [vmem:[%s348 + $0xa0] sm:$0xff]
        %v427 = vld [vmem:[%s348 + $0xa8] sm:$0xff]
        %v428 = vld [vmem:[%s348 + $0xb0] sm:$0xff]
        %v429 = vld [vmem:[%s348 + $0xb8] sm:$0xff]
        %v430 = vld [vmem:[%s348 + $0xc0] sm:$0xff]
        %v431 = vld [vmem:[%s348 + $0xc8] sm:$0xff]
        %v432 = vld [vmem:[%s348 + $0xd0] sm:$0xff]
        %v433 = vld [vmem:[%s348 + $0xd8] sm:$0xff]
        %v434 = vld [vmem:[%s348 + $0xe0] sm:$0xff]
        %v435 = vld [vmem:[%s348 + $0xe8] sm:$0xff]
        %v436 = vld [vmem:[%s348 + $0xf0] sm:$0xff]
        %v437 = vld [vmem:[%s348 + $0xf8] sm:$0xff]
        %v438 = vld [vmem:[%s348 + $0x100] sm:$0xff]
        %v439 = vld [vmem:[%s348 + $0x108] sm:$0xff]
        %v440 = vld [vmem:[%s348 + $0x110] sm:$0xff]
        %v441 = vld [vmem:[%s348 + $0x118] sm:$0xff]
        %v442 = vld [vmem:[%s348 + $0x120] sm:$0xff]
        %v443 = vld [vmem:[%s348 + $0x128] sm:$0xff]
        %v444 = vld [vmem:[%s348 + $0x130] sm:$0xff]
        %v445 = vld [vmem:[%s348 + $0x138] sm:$0xff]
        %v446 = vld [vmem:[%s348 + $0x140] sm:$0xff]
        %v447 = vld [vmem:[%s348 + $0x148] sm:$0xff]
        %v448 = vld [vmem:[%s348 + $0x150] sm:$0xff]
        %v449 = vld [vmem:[%s348 + $0x158] sm:$0xff]
        %v450 = vld [vmem:[%s348 + $0x160] sm:$0xff]
        %v451 = vld [vmem:[%s348 + $0x168] sm:$0xff]
        %v452 = vld [vmem:[%s348 + $0x170] sm:$0xff]
        %v453 = vld [vmem:[%s348 + $0x178] sm:$0xff]
        %v454 = vld [vmem:[%s348 + $0x180] sm:$0xff]
        %v455 = vld [vmem:[%s348 + $0x188] sm:$0xff]
        %v456 = vld [vmem:[%s348 + $0x190] sm:$0xff]
        %v457 = vld [vmem:[%s348 + $0x198] sm:$0xff]
        %v458 = vld [vmem:[%s348 + $0x1a0] sm:$0xff]
        %v459 = vld [vmem:[%s348 + $0x1a8] sm:$0xff]
        %v460 = vunpack.c.l.bf16 %v406
        %v461 = vunpack.c.h.bf16 %v406
        %v462 = vunpack.c.l.bf16 %v407
        %v463 = vunpack.c.h.bf16 %v407
        %v464 = vunpack.c.l.bf16 %v408
        %v465 = vunpack.c.h.bf16 %v408
        %v466 = vunpack.c.l.bf16 %v409
        %v467 = vunpack.c.h.bf16 %v409
        %v468 = vunpack.c.l.bf16 %v410
        %v469 = vunpack.c.h.bf16 %v410
        %v470 = vunpack.c.l.bf16 %v411
        %v471 = vunpack.c.h.bf16 %v411
        %v472 = vunpack.c.l.bf16 %v412
        %v473 = vunpack.c.h.bf16 %v412
        %v474 = vunpack.c.l.bf16 %v413
        %v475 = vunpack.c.h.bf16 %v413
        %v476 = vunpack.c.l.bf16 %v414
        %v477 = vunpack.c.h.bf16 %v414
        %v478 = vunpack.c.l.bf16 %v415
        %v479 = vunpack.c.h.bf16 %v415
        %v480 = vunpack.c.l.bf16 %v416
        %v481 = vunpack.c.h.bf16 %v416
        %v482 = vunpack.c.l.bf16 %v417
        %v483 = vunpack.c.h.bf16 %v417
        %v484 = vunpack.c.l.bf16 %v418
        %v485 = vunpack.c.h.bf16 %v418
        %v486 = vunpack.c.l.bf16 %v419
        %v487 = vunpack.c.h.bf16 %v419
        %v488 = vunpack.c.l.bf16 %v420
        %v489 = vunpack.c.h.bf16 %v420
        %v490 = vunpack.c.l.bf16 %v421
        %v491 = vunpack.c.h.bf16 %v421
        %v492 = vunpack.c.l.bf16 %v422
        %v493 = vunpack.c.h.bf16 %v422
        %v494 = vunpack.c.l.bf16 %v423
        %v495 = vunpack.c.h.bf16 %v423
        %v496 = vunpack.c.l.bf16 %v424
        %v497 = vunpack.c.h.bf16 %v424
        %v498 = vunpack.c.l.bf16 %v425
        %v499 = vunpack.c.h.bf16 %v425
        %v500 = vunpack.c.l.bf16 %v426
        %v501 = vunpack.c.h.bf16 %v426
        %v502 = vunpack.c.l.bf16 %v427
        %v503 = vunpack.c.h.bf16 %v427
        %v504 = vunpack.c.l.bf16 %v428
        %v505 = vunpack.c.h.bf16 %v428
        %v506 = vunpack.c.l.bf16 %v429
        %v507 = vunpack.c.h.bf16 %v429
        %v508 = vunpack.c.l.bf16 %v430
        %v509 = vunpack.c.h.bf16 %v430
        %v510 = vunpack.c.l.bf16 %v431
        %v511 = vunpack.c.h.bf16 %v431
        %v512 = vunpack.c.l.bf16 %v432
        %v513 = vunpack.c.h.bf16 %v432
        %v514 = vunpack.c.l.bf16 %v433
        %v515 = vunpack.c.h.bf16 %v433
        %v516 = vunpack.c.l.bf16 %v434
        %v517 = vunpack.c.h.bf16 %v434
        %v518 = vunpack.c.l.bf16 %v435
        %v519 = vunpack.c.h.bf16 %v435
        %v520 = vunpack.c.l.bf16 %v436
        %v521 = vunpack.c.h.bf16 %v436
        %v522 = vunpack.c.l.bf16 %v437
        %v523 = vunpack.c.h.bf16 %v437
        %v524 = vunpack.c.l.bf16 %v438
        %v525 = vunpack.c.h.bf16 %v438
        %v526 = vunpack.c.l.bf16 %v439
        %v527 = vunpack.c.h.bf16 %v439
        %v528 = vunpack.c.l.bf16 %v440
        %v529 = vunpack.c.h.bf16 %v440
        %v530 = vunpack.c.l.bf16 %v441
        %v531 = vunpack.c.h.bf16 %v441
        %v532 = vunpack.c.l.bf16 %v442
        %v533 = vunpack.c.h.bf16 %v442
        %v534 = vunpack.c.l.bf16 %v443
        %v535 = vunpack.c.h.bf16 %v443
        %v536 = vunpack.c.l.bf16 %v444
        %v537 = vunpack.c.h.bf16 %v444
        %v538 = vunpack.c.l.bf16 %v445
        %v539 = vunpack.c.h.bf16 %v445
        %v540 = vunpack.c.l.bf16 %v446
        %v541 = vunpack.c.h.bf16 %v446
        %v542 = vunpack.c.l.bf16 %v447
        %v543 = vunpack.c.h.bf16 %v447
        %v544 = vunpack.c.l.bf16 %v448
        %v545 = vunpack.c.h.bf16 %v448
        %v546 = vunpack.c.l.bf16 %v449
        %v547 = vunpack.c.h.bf16 %v449
        %v548 = vunpack.c.l.bf16 %v450
        %v549 = vunpack.c.h.bf16 %v450
        %v550 = vunpack.c.l.bf16 %v451
        %v551 = vunpack.c.h.bf16 %v451
        %v552 = vunpack.c.l.bf16 %v452
        %v553 = vunpack.c.h.bf16 %v452
        %v554 = vunpack.c.l.bf16 %v453
        %v555 = vunpack.c.h.bf16 %v453
        %v556 = vunpack.c.l.bf16 %v454
        %v557 = vunpack.c.h.bf16 %v454
        %v558 = vunpack.c.l.bf16 %v455
        %v559 = vunpack.c.h.bf16 %v455
        %v560 = vunpack.c.l.bf16 %v456
        %v561 = vunpack.c.h.bf16 %v456
        %v562 = vunpack.c.l.bf16 %v457
        %v563 = vunpack.c.h.bf16 %v457
        %v564 = vunpack.c.l.bf16 %v458
        %v565 = vunpack.c.h.bf16 %v458
        %v566 = vunpack.c.l.bf16 %v459
        %v567 = vunpack.c.h.bf16 %v459
        %v568 = vpack.c.bf16 %v462, %v460
        %v569 = vpack.c.bf16 %v463, %v461
        %v570 = vpack.c.bf16 %v466, %v464
        %v571 = vpack.c.bf16 %v467, %v465
        %v572 = vpack.c.bf16 %v470, %v468
        %v573 = vpack.c.bf16 %v471, %v469
        %v574 = vpack.c.bf16 %v474, %v472
        %v575 = vpack.c.bf16 %v475, %v473
        %v576 = vpack.c.bf16 %v478, %v476
        %v577 = vpack.c.bf16 %v479, %v477
        %v578 = vpack.c.bf16 %v482, %v480
        %v579 = vpack.c.bf16 %v483, %v481
        %v580 = vpack.c.bf16 %v486, %v484
        %v581 = vpack.c.bf16 %v487, %v485
        %v582 = vpack.c.bf16 %v490, %v488
        %v583 = vpack.c.bf16 %v491, %v489
        %v584 = vpack.c.bf16 %v494, %v492
        %v585 = vpack.c.bf16 %v495, %v493
        %v586 = vpack.c.bf16 %v498, %v496
        %v587 = vpack.c.bf16 %v499, %v497
        %v588 = vpack.c.bf16 %v502, %v500
        %v589 = vpack.c.bf16 %v503, %v501
        %v590 = vpack.c.bf16 %v506, %v504
        %v591 = vpack.c.bf16 %v507, %v505
        %v592 = vpack.c.bf16 %v510, %v508
        %v593 = vpack.c.bf16 %v511, %v509
        %v594 = vpack.c.bf16 %v514, %v512
        %v595 = vpack.c.bf16 %v515, %v513
        %v596 = vpack.c.bf16 %v518, %v516
        %v597 = vpack.c.bf16 %v519, %v517
        %v598 = vpack.c.bf16 %v522, %v520
        %v599 = vpack.c.bf16 %v523, %v521
        %v600 = vpack.c.bf16 %v526, %v524
        %v601 = vpack.c.bf16 %v527, %v525
        %v602 = vpack.c.bf16 %v530, %v528
        %v603 = vpack.c.bf16 %v531, %v529
        %v604 = vpack.c.bf16 %v534, %v532
        %v605 = vpack.c.bf16 %v535, %v533
        %v606 = vpack.c.bf16 %v538, %v536
        %v607 = vpack.c.bf16 %v539, %v537
        %v608 = vpack.c.bf16 %v542, %v540
        %v609 = vpack.c.bf16 %v543, %v541
        %v610 = vpack.c.bf16 %v546, %v544
        %v611 = vpack.c.bf16 %v547, %v545
        %v612 = vpack.c.bf16 %v550, %v548
        %v613 = vpack.c.bf16 %v551, %v549
        %v614 = vpack.c.bf16 %v554, %v552
        %v615 = vpack.c.bf16 %v555, %v553
        %v616 = vpack.c.bf16 %v558, %v556
        %v617 = vpack.c.bf16 %v559, %v557
        %v618 = vpack.c.bf16 %v562, %v560
        %v619 = vpack.c.bf16 %v563, %v561
        %v620 = vpack.c.bf16 %v566, %v564
        %v621 = vpack.c.bf16 %v567, %v565
        %v622 = vld [vmem:[#allocation5] sm:$0xf]
        %v623 = vld [vmem:[#allocation5 + $0x4] sm:$0xf]
        %v624 = vld [vmem:[#allocation5 + $0x8] sm:$0xf]
        %v625 = vld [vmem:[#allocation5 + $0xc] sm:$0xf]
        %v626 = vld [vmem:[#allocation5 + $0x10] sm:$0xf]
        %v627 = vld [vmem:[#allocation5 + $0x14] sm:$0xf]
        %v628 = vld [vmem:[#allocation5 + $0x18] sm:$0xf]
        %v629 = vld [vmem:[#allocation5 + $0x1c] sm:$0xf]
        %v630 = vld [vmem:[#allocation5 + $0x20] sm:$0xf]
        %v631 = vld [vmem:[#allocation5 + $0x24] sm:$0xf]
        %v632 = vld [vmem:[#allocation5 + $0x28] sm:$0xf]
        %v633 = vld [vmem:[#allocation5 + $0x2c] sm:$0xf]
        %v634 = vld [vmem:[#allocation5 + $0x30] sm:$0xf]
        %v635 = vld [vmem:[#allocation5 + $0x34] sm:$0xf]
        %v636 = vld [vmem:[#allocation5 + $0x38] sm:$0xf]
        %v637 = vld [vmem:[#allocation5 + $0x3c] sm:$0xf]
        %v638 = vld [vmem:[#allocation5 + $0x40] sm:$0xf]
        %v639 = vld [vmem:[#allocation5 + $0x44] sm:$0xf]
        %v640 = vld [vmem:[#allocation5 + $0x48] sm:$0xf]
        %v641 = vld [vmem:[#allocation5 + $0x4c] sm:$0xf]
        %v642 = vld [vmem:[#allocation5 + $0x50] sm:$0xf]
        %v643 = vld [vmem:[#allocation5 + $0x54] sm:$0xf]
        %v644 = vld [vmem:[#allocation5 + $0x58] sm:$0xf]
        %v645 = vld [vmem:[#allocation5 + $0x5c] sm:$0xf]
        %v646 = vld [vmem:[#allocation5 + $0x60] sm:$0xf]
        %v647 = vld [vmem:[#allocation5 + $0x64] sm:$0xf]
        %v648 = vld [vmem:[#allocation5 + $0x68] sm:$0xf]
        %v649 = vld [vmem:[#allocation5 + $0x6c] sm:$0xf]
        %v650 = vld [vmem:[#allocation5 + $0x70] sm:$0xf]
        %v651 = vld [vmem:[#allocation5 + $0x74] sm:$0xf]
        %v652 = vld [vmem:[#allocation5 + $0x78] sm:$0xf]
        %v653 = vld [vmem:[#allocation5 + $0x7c] sm:$0xf]
        %v654 = vld [vmem:[#allocation7] sm:$0x1]
        %v656 = vlaneseq
        %v657 = vshrl.u32 %v656, 7
        %v658 = vsub.s32 0, %v657
        %v659 = vrot.slane %v654, %v658
        %v693 = vunpack.c.l.b16 %v622
        %v694 = vunpack.c.l.b16 %v623
        %v695 = vunpack.c.l.b16 %v624
        %v696 = vunpack.c.l.b16 %v625
        %v697 = vunpack.c.l.b16 %v626
        %v698 = vunpack.c.l.b16 %v627
        %v699 = vunpack.c.l.b16 %v628
        %v700 = vunpack.c.l.b16 %v629
        %v701 = vunpack.c.l.b16 %v630
        %v702 = vunpack.c.l.b16 %v631
        %v703 = vunpack.c.l.b16 %v632
        %v704 = vunpack.c.l.b16 %v633
        %v705 = vunpack.c.l.b16 %v634
        %v706 = vunpack.c.l.b16 %v635
        %v707 = vunpack.c.l.b16 %v636
        %v708 = vunpack.c.l.b16 %v637
        %v709 = vunpack.c.l.b16 %v638
        %v710 = vunpack.c.l.b16 %v639
        %v711 = vunpack.c.l.b16 %v640
        %v712 = vunpack.c.l.b16 %v641
        %v713 = vunpack.c.l.b16 %v642
        %v714 = vunpack.c.l.b16 %v643
        %v715 = vunpack.c.l.b16 %v644
        %v716 = vunpack.c.l.b16 %v645
        %v717 = vunpack.c.l.b16 %v646
        %v718 = vunpack.c.l.b16 %v647
        %v719 = vunpack.c.l.b16 %v648
        %v720 = vunpack.c.l.b16 %v649
        %v721 = vunpack.c.l.b16 %v650
        %v722 = vunpack.c.l.b16 %v651
        %v723 = vunpack.c.l.b16 %v652
        %v724 = vunpack.c.l.b16 %v653
        %v725 = vpack.c.b16 %v694, %v693
        %v726 = vpack.c.b16 %v696, %v695
        %v727 = vpack.c.b16 %v698, %v697
        %v728 = vpack.c.b16 %v700, %v699
        %v729 = vpack.c.b16 %v702, %v701
        %v730 = vpack.c.b16 %v704, %v703
        %v731 = vpack.c.b16 %v706, %v705
        %v732 = vpack.c.b16 %v708, %v707
        %v733 = vpack.c.b16 %v710, %v709
        %v734 = vpack.c.b16 %v712, %v711
        %v735 = vpack.c.b16 %v714, %v713
        %v736 = vpack.c.b16 %v716, %v715
        %v737 = vpack.c.b16 %v718, %v717
        %v738 = vpack.c.b16 %v720, %v719
        %v739 = vpack.c.b16 %v722, %v721
        %v740 = vpack.c.b16 %v724, %v723
        %757 = vmatprep.subr.bf16.mxu0 0
        %758 = vmatpush1.bf16.msra.mxu0 %v732
        %759 = vmatprep.subr.bf16.mxu0 0
        %760 = vmatpush1.bf16.msra.mxu0 %v731
        %761 = vmatprep.subr.bf16.mxu0 0
        %762 = vmatpush1.bf16.msra.mxu0 %v730
        %763 = vmatprep.subr.bf16.mxu0 0
        %764 = vmatpush1.bf16.msra.mxu0 %v729
        %765 = vmatprep.subr.bf16.mxu0 0
        %766 = vmatpush1.bf16.msra.mxu0 %v728
        %767 = vmatprep.subr.bf16.mxu0 0
        %768 = vmatpush1.bf16.msra.mxu0 %v727
        %769 = vmatprep.subr.bf16.mxu0 0
        %770 = vmatpush1.bf16.msra.mxu0 %v726
        %771 = vmatprep.subr.bf16.mxu0 0
        %772 = vmatpush1.bf16.msra.mxu0 %v725
        %773 = vmatprep.subr.bf16.mxu0 0
        %774 = vmatpush2.bf16.msra.mxu0 %v740
        %775 = vmatprep.subr.bf16.mxu0 0
        %776 = vmatpush2.bf16.msra.mxu0 %v739
        %777 = vmatprep.subr.bf16.mxu0 0
        %778 = vmatpush2.bf16.msra.mxu0 %v738
        %779 = vmatprep.subr.bf16.mxu0 0
        %780 = vmatpush2.bf16.msra.mxu0 %v737
        %781 = vmatprep.subr.bf16.mxu0 0
        %782 = vmatpush2.bf16.msra.mxu0 %v736
        %783 = vmatprep.subr.bf16.mxu0 0
        %784 = vmatpush2.bf16.msra.mxu0 %v735
        %785 = vmatprep.subr.bf16.mxu0 0
        %786 = vmatpush2.bf16.msra.mxu0 %v734
        %787 = vmatprep.subr.bf16.mxu0 0
        %788 = vmatpush2.bf16.msra.mxu0 %v733
        %789 = vmatprep.mubr.bf16.mxu0 %v569
        %790 = vmatmul.mubr.bf16.gmra.mxu0 %v568
        %v791 = vpop.f32.mrf.mxu0
        %v792 = vadd.f32 %v659, %v791
        %v793 = vpop.f32.mrf.mxu0
        %v794 = vpop.f32.mrf.mxu0
        %v795 = vadd.f32 %v659, %v794
        %v796 = vpop.f32.mrf.mxu0
        %797 = vmatprep.mubr.bf16.mxu0 %v571
        %798 = vmatmul.mubr.bf16.gmra.mxu0 %v570
        %v799 = vpop.f32.mrf.mxu0
        %v800 = vadd.f32 %v659, %v799
        %v801 = vpop.f32.mrf.mxu0
        %v802 = vpop.f32.mrf.mxu0
        %v803 = vadd.f32 %v659, %v802
        %v804 = vpop.f32.mrf.mxu0
        %805 = vmatprep.mubr.bf16.mxu0 %v573
        %806 = vmatmul.mubr.bf16.gmra.mxu0 %v572
        %v807 = vpop.f32.mrf.mxu0
        %v808 = vadd.f32 %v659, %v807
        %v809 = vpop.f32.mrf.mxu0
        %v810 = vpop.f32.mrf.mxu0
        %v811 = vadd.f32 %v659, %v810
        %v812 = vpop.f32.mrf.mxu0
        %813 = vmatprep.mubr.bf16.mxu0 %v575
        %814 = vmatmul.mubr.bf16.gmra.mxu0 %v574
        %v815 = vpop.f32.mrf.mxu0
        %v816 = vadd.f32 %v659, %v815
        %v817 = vpop.f32.mrf.mxu0
        %v818 = vpop.f32.mrf.mxu0
        %v819 = vadd.f32 %v659, %v818
        %v820 = vpop.f32.mrf.mxu0
        %821 = vmatprep.mubr.bf16.mxu0 %v577
        %822 = vmatmul.mubr.bf16.gmra.mxu0 %v576
        %v823 = vpop.f32.mrf.mxu0
        %v824 = vadd.f32 %v659, %v823
        %v825 = vpop.f32.mrf.mxu0
        %v826 = vpop.f32.mrf.mxu0
        %v827 = vadd.f32 %v659, %v826
        %v828 = vpop.f32.mrf.mxu0
        %829 = vmatprep.mubr.bf16.mxu0 %v579
        %830 = vmatmul.mubr.bf16.gmra.mxu0 %v578
        %v831 = vpop.f32.mrf.mxu0
        %v832 = vadd.f32 %v659, %v831
        %v833 = vpop.f32.mrf.mxu0
        %v834 = vpop.f32.mrf.mxu0
        %v835 = vadd.f32 %v659, %v834
        %v836 = vpop.f32.mrf.mxu0
        %837 = vmatprep.mubr.bf16.mxu0 %v581
        %838 = vmatmul.mubr.bf16.gmra.mxu0 %v580
        %v839 = vpop.f32.mrf.mxu0
        %v840 = vadd.f32 %v659, %v839
        %v841 = vpop.f32.mrf.mxu0
        %v842 = vpop.f32.mrf.mxu0
        %v843 = vadd.f32 %v659, %v842
        %v844 = vpop.f32.mrf.mxu0
        %845 = vmatprep.mubr.bf16.mxu0 %v583
        %846 = vmatmul.mubr.bf16.gmra.mxu0 %v582
        %v847 = vpop.f32.mrf.mxu0
        %v848 = vadd.f32 %v659, %v847
        %v849 = vpop.f32.mrf.mxu0
        %v850 = vpop.f32.mrf.mxu0
        %v851 = vadd.f32 %v659, %v850
        %v852 = vpop.f32.mrf.mxu0
        %853 = vmatprep.mubr.bf16.mxu0 %v585
        %854 = vmatmul.mubr.bf16.gmra.mxu0 %v584
        %v855 = vpop.f32.mrf.mxu0
        %v856 = vadd.f32 %v659, %v855
        %v857 = vpop.f32.mrf.mxu0
        %v858 = vpop.f32.mrf.mxu0
        %v859 = vadd.f32 %v659, %v858
        %v860 = vpop.f32.mrf.mxu0
        %861 = vmatprep.mubr.bf16.mxu0 %v587
        %862 = vmatmul.mubr.bf16.gmra.mxu0 %v586
        %v863 = vpop.f32.mrf.mxu0
        %v864 = vadd.f32 %v659, %v863
        %v865 = vpop.f32.mrf.mxu0
        %v866 = vpop.f32.mrf.mxu0
        %v867 = vadd.f32 %v659, %v866
        %v868 = vpop.f32.mrf.mxu0
        %869 = vmatprep.mubr.bf16.mxu0 %v589
        %870 = vmatmul.mubr.bf16.gmra.mxu0 %v588
        %v871 = vpop.f32.mrf.mxu0
        %v872 = vadd.f32 %v659, %v871
        %v873 = vpop.f32.mrf.mxu0
        %v874 = vpop.f32.mrf.mxu0
        %v875 = vadd.f32 %v659, %v874
        %v876 = vpop.f32.mrf.mxu0
        %877 = vmatprep.mubr.bf16.mxu0 %v591
        %878 = vmatmul.mubr.bf16.gmra.mxu0 %v590
        %v879 = vpop.f32.mrf.mxu0
        %v880 = vadd.f32 %v659, %v879
        %v881 = vpop.f32.mrf.mxu0
        %v882 = vpop.f32.mrf.mxu0
        %v883 = vadd.f32 %v659, %v882
        %v884 = vpop.f32.mrf.mxu0
        %885 = vmatprep.mubr.bf16.mxu0 %v593
        %886 = vmatmul.mubr.bf16.gmra.mxu0 %v592
        %v887 = vpop.f32.mrf.mxu0
        %v888 = vadd.f32 %v659, %v887
        %v889 = vpop.f32.mrf.mxu0
        %v890 = vpop.f32.mrf.mxu0
        %v891 = vadd.f32 %v659, %v890
        %v892 = vpop.f32.mrf.mxu0
        %893 = vmatprep.mubr.bf16.mxu0 %v595
        %894 = vmatmul.mubr.bf16.gmra.mxu0 %v594
        %v895 = vpop.f32.mrf.mxu0
        %v896 = vadd.f32 %v659, %v895
        %v897 = vpop.f32.mrf.mxu0
        %v898 = vpop.f32.mrf.mxu0
        %v899 = vadd.f32 %v659, %v898
        %v900 = vpop.f32.mrf.mxu0
        %901 = vmatprep.mubr.bf16.mxu0 %v597
        %902 = vmatmul.mubr.bf16.gmra.mxu0 %v596
        %v903 = vpop.f32.mrf.mxu0
        %v904 = vadd.f32 %v659, %v903
        %v905 = vpop.f32.mrf.mxu0
        %v906 = vpop.f32.mrf.mxu0
        %v907 = vadd.f32 %v659, %v906
        %v908 = vpop.f32.mrf.mxu0
        %909 = vmatprep.mubr.bf16.mxu0 %v599
        %910 = vmatmul.mubr.bf16.gmra.mxu0 %v598
        %v911 = vpop.f32.mrf.mxu0
        %v912 = vadd.f32 %v659, %v911
        %v913 = vpop.f32.mrf.mxu0
        %v914 = vpop.f32.mrf.mxu0
        %v915 = vadd.f32 %v659, %v914
        %v916 = vpop.f32.mrf.mxu0
        %917 = vmatprep.mubr.bf16.mxu0 %v601
        %918 = vmatmul.mubr.bf16.gmra.mxu0 %v600
        %v919 = vpop.f32.mrf.mxu0
        %v920 = vadd.f32 %v659, %v919
        %v921 = vpop.f32.mrf.mxu0
        %v922 = vpop.f32.mrf.mxu0
        %v923 = vadd.f32 %v659, %v922
        %v924 = vpop.f32.mrf.mxu0
        %925 = vmatprep.mubr.bf16.mxu0 %v603
        %926 = vmatmul.mubr.bf16.gmra.mxu0 %v602
        %v927 = vpop.f32.mrf.mxu0
        %v928 = vadd.f32 %v659, %v927
        %v929 = vpop.f32.mrf.mxu0
        %v930 = vpop.f32.mrf.mxu0
        %v931 = vadd.f32 %v659, %v930
        %v932 = vpop.f32.mrf.mxu0
        %933 = vmatprep.mubr.bf16.mxu0 %v605
        %934 = vmatmul.mubr.bf16.gmra.mxu0 %v604
        %v935 = vpop.f32.mrf.mxu0
        %v936 = vadd.f32 %v659, %v935
        %v937 = vpop.f32.mrf.mxu0
        %v938 = vpop.f32.mrf.mxu0
        %v939 = vadd.f32 %v659, %v938
        %v940 = vpop.f32.mrf.mxu0
        %941 = vmatprep.mubr.bf16.mxu0 %v607
        %942 = vmatmul.mubr.bf16.gmra.mxu0 %v606
        %v943 = vpop.f32.mrf.mxu0
        %v944 = vadd.f32 %v659, %v943
        %v945 = vpop.f32.mrf.mxu0
        %v946 = vpop.f32.mrf.mxu0
        %v947 = vadd.f32 %v659, %v946
        %v948 = vpop.f32.mrf.mxu0
        %949 = vmatprep.mubr.bf16.mxu0 %v609
        %950 = vmatmul.mubr.bf16.gmra.mxu0 %v608
        %v951 = vpop.f32.mrf.mxu0
        %v952 = vadd.f32 %v659, %v951
        %v953 = vpop.f32.mrf.mxu0
        %v954 = vpop.f32.mrf.mxu0
        %v955 = vadd.f32 %v659, %v954
        %v956 = vpop.f32.mrf.mxu0
        %957 = vmatprep.mubr.bf16.mxu0 %v611
        %958 = vmatmul.mubr.bf16.gmra.mxu0 %v610
        %v959 = vpop.f32.mrf.mxu0
        %v960 = vadd.f32 %v659, %v959
        %v961 = vpop.f32.mrf.mxu0
        %v962 = vpop.f32.mrf.mxu0
        %v963 = vadd.f32 %v659, %v962
        %v964 = vpop.f32.mrf.mxu0
        %965 = vmatprep.mubr.bf16.mxu0 %v613
        %966 = vmatmul.mubr.bf16.gmra.mxu0 %v612
        %v967 = vpop.f32.mrf.mxu0
        %v968 = vadd.f32 %v659, %v967
        %v969 = vpop.f32.mrf.mxu0
        %v970 = vpop.f32.mrf.mxu0
        %v971 = vadd.f32 %v659, %v970
        %v972 = vpop.f32.mrf.mxu0
        %973 = vmatprep.mubr.bf16.mxu0 %v615
        %974 = vmatmul.mubr.bf16.gmra.mxu0 %v614
        %v975 = vpop.f32.mrf.mxu0
        %v976 = vadd.f32 %v659, %v975
        %v977 = vpop.f32.mrf.mxu0
        %v978 = vpop.f32.mrf.mxu0
        %v979 = vadd.f32 %v659, %v978
        %v980 = vpop.f32.mrf.mxu0
        %981 = vmatprep.mubr.bf16.mxu0 %v617
        %982 = vmatmul.mubr.bf16.gmra.mxu0 %v616
        %v983 = vpop.f32.mrf.mxu0
        %v984 = vadd.f32 %v659, %v983
        %v985 = vpop.f32.mrf.mxu0
        %v986 = vpop.f32.mrf.mxu0
        %v987 = vadd.f32 %v659, %v986
        %v988 = vpop.f32.mrf.mxu0
        %989 = vmatprep.mubr.bf16.mxu0 %v619
        %990 = vmatmul.mubr.bf16.gmra.mxu0 %v618
        %v991 = vpop.f32.mrf.mxu0
        %v992 = vadd.f32 %v659, %v991
        %v993 = vpop.f32.mrf.mxu0
        %v994 = vpop.f32.mrf.mxu0
        %v995 = vadd.f32 %v659, %v994
        %v996 = vpop.f32.mrf.mxu0
        %997 = vmatprep.mubr.bf16.mxu0 %v621
        %998 = vmatmul.mubr.bf16.gmra.mxu0 %v620
        %v999 = vpop.f32.mrf.mxu0
        %v1000 = vadd.f32 %v659, %v999
        %v1001 = vpop.f32.mrf.mxu0
        %v1002 = vpop.f32.mrf.mxu0
        %v1003 = vadd.f32 %v659, %v1002
        %v1004 = vpop.f32.mrf.mxu0
        %1005 = vdwg.mxu0
        %v1006 = vmax.f32 %v792, 0.0
        %v1007 = vmax.f32 %v795, 0.0
        %v1008 = vmax.f32 %v800, 0.0
        %v1009 = vmax.f32 %v803, 0.0
        %v1010 = vmax.f32 %v808, 0.0
        %v1011 = vmax.f32 %v811, 0.0
        %v1012 = vmax.f32 %v816, 0.0
        %v1013 = vmax.f32 %v819, 0.0
        %v1014 = vmax.f32 %v824, 0.0
        %v1015 = vmax.f32 %v827, 0.0
        %v1016 = vmax.f32 %v832, 0.0
        %v1017 = vmax.f32 %v835, 0.0
        %v1018 = vmax.f32 %v840, 0.0
        %v1019 = vmax.f32 %v843, 0.0
        %v1020 = vmax.f32 %v848, 0.0
        %v1021 = vmax.f32 %v851, 0.0
        %v1022 = vmax.f32 %v856, 0.0
        %v1023 = vmax.f32 %v859, 0.0
        %v1024 = vmax.f32 %v864, 0.0
        %v1025 = vmax.f32 %v867, 0.0
        %v1026 = vmax.f32 %v872, 0.0
        %v1027 = vmax.f32 %v875, 0.0
        %v1028 = vmax.f32 %v880, 0.0
        %v1029 = vmax.f32 %v883, 0.0
        %v1030 = vmax.f32 %v888, 0.0
        %v1031 = vmax.f32 %v891, 0.0
        %v1032 = vmax.f32 %v896, 0.0
        %v1033 = vmax.f32 %v899, 0.0
        %v1034 = vmax.f32 %v904, 0.0
        %v1035 = vmax.f32 %v907, 0.0
        %v1036 = vmax.f32 %v912, 0.0
        %v1037 = vmax.f32 %v915, 0.0
        %v1038 = vmax.f32 %v920, 0.0
        %v1039 = vmax.f32 %v923, 0.0
        %v1040 = vmax.f32 %v928, 0.0
        %v1041 = vmax.f32 %v931, 0.0
        %v1042 = vmax.f32 %v936, 0.0
        %v1043 = vmax.f32 %v939, 0.0
        %v1044 = vmax.f32 %v944, 0.0
        %v1045 = vmax.f32 %v947, 0.0
        %v1046 = vmax.f32 %v952, 0.0
        %v1047 = vmax.f32 %v955, 0.0
        %v1048 = vmax.f32 %v960, 0.0
        %v1049 = vmax.f32 %v963, 0.0
        %v1050 = vmax.f32 %v968, 0.0
        %v1051 = vmax.f32 %v971, 0.0
        %v1052 = vmax.f32 %v976, 0.0
        %v1053 = vmax.f32 %v979, 0.0
        %v1054 = vmax.f32 %v984, 0.0
        %v1055 = vmax.f32 %v987, 0.0
        %v1056 = vmax.f32 %v992, 0.0
        %v1057 = vmax.f32 %v995, 0.0
        %v1058 = vmax.f32 %v1000, 0.0
        %v1059 = vmax.f32 %v1003, 0.0
        %v1060 = vld [vmem:[%s1] sm:$0xff]
        %v1061 = vld [vmem:[%s1 + $0x8] sm:$0xff]
        %v1062 = vld [vmem:[%s1 + $0x10] sm:$0xff]
        %v1063 = vld [vmem:[%s1 + $0x18] sm:$0xff]
        %v1064 = vld [vmem:[%s1 + $0x20] sm:$0xff]
        %v1065 = vld [vmem:[%s1 + $0x28] sm:$0xff]
        %v1066 = vld [vmem:[%s1 + $0x30] sm:$0xff]
        %v1067 = vld [vmem:[%s1 + $0x38] sm:$0xff]
        %v1068 = vld [vmem:[%s1 + $0x40] sm:$0xff]
        %v1069 = vld [vmem:[%s1 + $0x48] sm:$0xff]
        %v1070 = vld [vmem:[%s1 + $0x50] sm:$0xff]
        %v1071 = vld [vmem:[%s1 + $0x58] sm:$0xff]
        %v1072 = vld [vmem:[%s1 + $0x60] sm:$0xff]
        %v1073 = vld [vmem:[%s1 + $0x68] sm:$0xff]
        %v1074 = vld [vmem:[%s1 + $0x70] sm:$0xff]
        %v1075 = vld [vmem:[%s1 + $0x78] sm:$0xff]
        %v1076 = vld [vmem:[%s1 + $0x80] sm:$0xff]
        %v1077 = vld [vmem:[%s1 + $0x88] sm:$0xff]
        %v1078 = vld [vmem:[%s1 + $0x90] sm:$0xff]
        %v1079 = vld [vmem:[%s1 + $0x98] sm:$0xff]
        %v1080 = vld [vmem:[%s1 + $0xa0] sm:$0xff]
        %v1081 = vld [vmem:[%s1 + $0xa8] sm:$0xff]
        %v1082 = vld [vmem:[%s1 + $0xb0] sm:$0xff]
        %v1083 = vld [vmem:[%s1 + $0xb8] sm:$0xff]
        %v1084 = vld [vmem:[%s1 + $0xc0] sm:$0xff]
        %v1085 = vld [vmem:[%s1 + $0xc8] sm:$0xff]
        %v1086 = vld [vmem:[%s1 + $0xd0] sm:$0xff]
        %v1087 = vld [vmem:[%s1 + $0xd8] sm:$0xff]
        %v1088 = vld [vmem:[%s1 + $0xe0] sm:$0xff]
        %v1089 = vld [vmem:[%s1 + $0xe8] sm:$0xff]
        %v1090 = vld [vmem:[%s1 + $0xf0] sm:$0xff]
        %v1091 = vld [vmem:[%s1 + $0xf8] sm:$0xff]
        %v1092 = vld [vmem:[%s1 + $0x100] sm:$0xff]
        %v1093 = vld [vmem:[%s1 + $0x108] sm:$0xff]
        %v1094 = vld [vmem:[%s1 + $0x110] sm:$0xff]
        %v1095 = vld [vmem:[%s1 + $0x118] sm:$0xff]
        %v1096 = vld [vmem:[%s1 + $0x120] sm:$0xff]
        %v1097 = vld [vmem:[%s1 + $0x128] sm:$0xff]
        %v1098 = vld [vmem:[%s1 + $0x130] sm:$0xff]
        %v1099 = vld [vmem:[%s1 + $0x138] sm:$0xff]
        %v1100 = vld [vmem:[%s1 + $0x140] sm:$0xff]
        %v1101 = vld [vmem:[%s1 + $0x148] sm:$0xff]
        %v1102 = vld [vmem:[%s1 + $0x150] sm:$0xff]
        %v1103 = vld [vmem:[%s1 + $0x158] sm:$0xff]
        %v1104 = vld [vmem:[%s1 + $0x160] sm:$0xff]
        %v1105 = vld [vmem:[%s1 + $0x168] sm:$0xff]
        %v1106 = vld [vmem:[%s1 + $0x170] sm:$0xff]
        %v1107 = vld [vmem:[%s1 + $0x178] sm:$0xff]
        %v1108 = vld [vmem:[%s1 + $0x180] sm:$0xff]
        %v1109 = vld [vmem:[%s1 + $0x188] sm:$0xff]
        %v1110 = vld [vmem:[%s1 + $0x190] sm:$0xff]
        %v1111 = vld [vmem:[%s1 + $0x198] sm:$0xff]
        %v1112 = vld [vmem:[%s1 + $0x1a0] sm:$0xff]
        %v1113 = vld [vmem:[%s1 + $0x1a8] sm:$0xff]
        %1115 = vset.pattern.permute.xlu0 0
        %1116 = vperm.xlu0 %1115, %v1060
        %v1117 = vpop.permute.xlu0 %1116
        %1120 = vset.pattern.permute.xlu0 0
        %1121 = vperm.xlu0 %1120, %v1061
        %v1122 = vpop.permute.xlu0 %1121
        %1125 = vset.pattern.permute.xlu0 0
        %1126 = vperm.xlu0 %1125, %v1062
        %v1127 = vpop.permute.xlu0 %1126
        %1130 = vset.pattern.permute.xlu0 0
        %1131 = vperm.xlu0 %1130, %v1063
        %v1132 = vpop.permute.xlu0 %1131
        %1135 = vset.pattern.permute.xlu0 0
        %1136 = vperm.xlu0 %1135, %v1064
        %v1137 = vpop.permute.xlu0 %1136
        %1140 = vset.pattern.permute.xlu0 0
        %1141 = vperm.xlu0 %1140, %v1065
        %v1142 = vpop.permute.xlu0 %1141
        %1145 = vset.pattern.permute.xlu0 0
        %1146 = vperm.xlu0 %1145, %v1066
        %v1147 = vpop.permute.xlu0 %1146
        %1150 = vset.pattern.permute.xlu0 0
        %1151 = vperm.xlu0 %1150, %v1067
        %v1152 = vpop.permute.xlu0 %1151
        %1155 = vset.pattern.permute.xlu0 0
        %1156 = vperm.xlu0 %1155, %v1068
        %v1157 = vpop.permute.xlu0 %1156
        %1160 = vset.pattern.permute.xlu0 0
        %1161 = vperm.xlu0 %1160, %v1069
        %v1162 = vpop.permute.xlu0 %1161
        %1165 = vset.pattern.permute.xlu0 0
        %1166 = vperm.xlu0 %1165, %v1070
        %v1167 = vpop.permute.xlu0 %1166
        %1170 = vset.pattern.permute.xlu0 0
        %1171 = vperm.xlu0 %1170, %v1071
        %v1172 = vpop.permute.xlu0 %1171
        %1175 = vset.pattern.permute.xlu0 0
        %1176 = vperm.xlu0 %1175, %v1072
        %v1177 = vpop.permute.xlu0 %1176
        %1180 = vset.pattern.permute.xlu0 0
        %1181 = vperm.xlu0 %1180, %v1073
        %v1182 = vpop.permute.xlu0 %1181
        %1185 = vset.pattern.permute.xlu0 0
        %1186 = vperm.xlu0 %1185, %v1074
        %v1187 = vpop.permute.xlu0 %1186
        %1190 = vset.pattern.permute.xlu0 0
        %1191 = vperm.xlu0 %1190, %v1075
        %v1192 = vpop.permute.xlu0 %1191
        %1195 = vset.pattern.permute.xlu0 0
        %1196 = vperm.xlu0 %1195, %v1076
        %v1197 = vpop.permute.xlu0 %1196
        %1200 = vset.pattern.permute.xlu0 0
        %1201 = vperm.xlu0 %1200, %v1077
        %v1202 = vpop.permute.xlu0 %1201
        %1205 = vset.pattern.permute.xlu0 0
        %1206 = vperm.xlu0 %1205, %v1078
        %v1207 = vpop.permute.xlu0 %1206
        %1210 = vset.pattern.permute.xlu0 0
        %1211 = vperm.xlu0 %1210, %v1079
        %v1212 = vpop.permute.xlu0 %1211
        %1215 = vset.pattern.permute.xlu0 0
        %1216 = vperm.xlu0 %1215, %v1080
        %v1217 = vpop.permute.xlu0 %1216
        %1220 = vset.pattern.permute.xlu0 0
        %1221 = vperm.xlu0 %1220, %v1081
        %v1222 = vpop.permute.xlu0 %1221
        %1225 = vset.pattern.permute.xlu0 0
        %1226 = vperm.xlu0 %1225, %v1082
        %v1227 = vpop.permute.xlu0 %1226
        %1230 = vset.pattern.permute.xlu0 0
        %1231 = vperm.xlu0 %1230, %v1083
        %v1232 = vpop.permute.xlu0 %1231
        %1235 = vset.pattern.permute.xlu0 0
        %1236 = vperm.xlu0 %1235, %v1084
        %v1237 = vpop.permute.xlu0 %1236
        %1240 = vset.pattern.permute.xlu0 0
        %1241 = vperm.xlu0 %1240, %v1085
        %v1242 = vpop.permute.xlu0 %1241
        %1245 = vset.pattern.permute.xlu0 0
        %1246 = vperm.xlu0 %1245, %v1086
        %v1247 = vpop.permute.xlu0 %1246
        %1250 = vset.pattern.permute.xlu0 0
        %1251 = vperm.xlu0 %1250, %v1087
        %v1252 = vpop.permute.xlu0 %1251
        %1255 = vset.pattern.permute.xlu0 0
        %1256 = vperm.xlu0 %1255, %v1088
        %v1257 = vpop.permute.xlu0 %1256
        %1260 = vset.pattern.permute.xlu0 0
        %1261 = vperm.xlu0 %1260, %v1089
        %v1262 = vpop.permute.xlu0 %1261
        %1265 = vset.pattern.permute.xlu0 0
        %1266 = vperm.xlu0 %1265, %v1090
        %v1267 = vpop.permute.xlu0 %1266
        %1270 = vset.pattern.permute.xlu0 0
        %1271 = vperm.xlu0 %1270, %v1091
        %v1272 = vpop.permute.xlu0 %1271
        %1275 = vset.pattern.permute.xlu0 0
        %1276 = vperm.xlu0 %1275, %v1092
        %v1277 = vpop.permute.xlu0 %1276
        %1280 = vset.pattern.permute.xlu0 0
        %1281 = vperm.xlu0 %1280, %v1093
        %v1282 = vpop.permute.xlu0 %1281
        %1285 = vset.pattern.permute.xlu0 0
        %1286 = vperm.xlu0 %1285, %v1094
        %v1287 = vpop.permute.xlu0 %1286
        %1290 = vset.pattern.permute.xlu0 0
        %1291 = vperm.xlu0 %1290, %v1095
        %v1292 = vpop.permute.xlu0 %1291
        %1295 = vset.pattern.permute.xlu0 0
        %1296 = vperm.xlu0 %1295, %v1096
        %v1297 = vpop.permute.xlu0 %1296
        %1300 = vset.pattern.permute.xlu0 0
        %1301 = vperm.xlu0 %1300, %v1097
        %v1302 = vpop.permute.xlu0 %1301
        %1305 = vset.pattern.permute.xlu0 0
        %1306 = vperm.xlu0 %1305, %v1098
        %v1307 = vpop.permute.xlu0 %1306
        %1310 = vset.pattern.permute.xlu0 0
        %1311 = vperm.xlu0 %1310, %v1099
        %v1312 = vpop.permute.xlu0 %1311
        %1315 = vset.pattern.permute.xlu0 0
        %1316 = vperm.xlu0 %1315, %v1100
        %v1317 = vpop.permute.xlu0 %1316
        %1320 = vset.pattern.permute.xlu0 0
        %1321 = vperm.xlu0 %1320, %v1101
        %v1322 = vpop.permute.xlu0 %1321
        %1325 = vset.pattern.permute.xlu0 0
        %1326 = vperm.xlu0 %1325, %v1102
        %v1327 = vpop.permute.xlu0 %1326
        %1330 = vset.pattern.permute.xlu0 0
        %1331 = vperm.xlu0 %1330, %v1103
        %v1332 = vpop.permute.xlu0 %1331
        %1335 = vset.pattern.permute.xlu0 0
        %1336 = vperm.xlu0 %1335, %v1104
        %v1337 = vpop.permute.xlu0 %1336
        %1340 = vset.pattern.permute.xlu0 0
        %1341 = vperm.xlu0 %1340, %v1105
        %v1342 = vpop.permute.xlu0 %1341
        %1345 = vset.pattern.permute.xlu0 0
        %1346 = vperm.xlu0 %1345, %v1106
        %v1347 = vpop.permute.xlu0 %1346
        %1350 = vset.pattern.permute.xlu0 0
        %1351 = vperm.xlu0 %1350, %v1107
        %v1352 = vpop.permute.xlu0 %1351
        %1355 = vset.pattern.permute.xlu0 0
        %1356 = vperm.xlu0 %1355, %v1108
        %v1357 = vpop.permute.xlu0 %1356
        %1360 = vset.pattern.permute.xlu0 0
        %1361 = vperm.xlu0 %1360, %v1109
        %v1362 = vpop.permute.xlu0 %1361
        %1365 = vset.pattern.permute.xlu0 0
        %1366 = vperm.xlu0 %1365, %v1110
        %v1367 = vpop.permute.xlu0 %1366
        %1370 = vset.pattern.permute.xlu0 0
        %1371 = vperm.xlu0 %1370, %v1111
        %v1372 = vpop.permute.xlu0 %1371
        %1375 = vset.pattern.permute.xlu0 0
        %1376 = vperm.xlu0 %1375, %v1112
        %v1377 = vpop.permute.xlu0 %1376
        %1380 = vset.pattern.permute.xlu0 0
        %1381 = vperm.xlu0 %1380, %v1113
        %v1382 = vpop.permute.xlu0 %1381
        %v1384 = vmul.f32 %v1006, %v1117
        %v1385 = vmul.f32 %v1007, %v1122
        %v1386 = vmul.f32 %v1008, %v1127
        %v1387 = vmul.f32 %v1009, %v1132
        %v1388 = vmul.f32 %v1010, %v1137
        %v1389 = vmul.f32 %v1011, %v1142
        %v1390 = vmul.f32 %v1012, %v1147
        %v1391 = vmul.f32 %v1013, %v1152
        %v1392 = vmul.f32 %v1014, %v1157
        %v1393 = vmul.f32 %v1015, %v1162
        %v1394 = vmul.f32 %v1016, %v1167
        %v1395 = vmul.f32 %v1017, %v1172
        %v1396 = vmul.f32 %v1018, %v1177
        %v1397 = vmul.f32 %v1019, %v1182
        %v1398 = vmul.f32 %v1020, %v1187
        %v1399 = vmul.f32 %v1021, %v1192
        %v1400 = vmul.f32 %v1022, %v1197
        %v1401 = vmul.f32 %v1023, %v1202
        %v1402 = vmul.f32 %v1024, %v1207
        %v1403 = vmul.f32 %v1025, %v1212
        %v1404 = vmul.f32 %v1026, %v1217
        %v1405 = vmul.f32 %v1027, %v1222
        %v1406 = vmul.f32 %v1028, %v1227
        %v1407 = vmul.f32 %v1029, %v1232
        %v1408 = vmul.f32 %v1030, %v1237
        %v1409 = vmul.f32 %v1031, %v1242
        %v1410 = vmul.f32 %v1032, %v1247
        %v1411 = vmul.f32 %v1033, %v1252
        %v1412 = vmul.f32 %v1034, %v1257
        %v1413 = vmul.f32 %v1035, %v1262
        %v1414 = vmul.f32 %v1036, %v1267
        %v1415 = vmul.f32 %v1037, %v1272
        %v1416 = vmul.f32 %v1038, %v1277
        %v1417 = vmul.f32 %v1039, %v1282
        %v1418 = vmul.f32 %v1040, %v1287
        %v1419 = vmul.f32 %v1041, %v1292
        %v1420 = vmul.f32 %v1042, %v1297
        %v1421 = vmul.f32 %v1043, %v1302
        %v1422 = vmul.f32 %v1044, %v1307
        %v1423 = vmul.f32 %v1045, %v1312
        %v1424 = vmul.f32 %v1046, %v1317
        %v1425 = vmul.f32 %v1047, %v1322
        %v1426 = vmul.f32 %v1048, %v1327
        %v1427 = vmul.f32 %v1049, %v1332
        %v1428 = vmul.f32 %v1050, %v1337
        %v1429 = vmul.f32 %v1051, %v1342
        %v1430 = vmul.f32 %v1052, %v1347
        %v1431 = vmul.f32 %v1053, %v1352
        %v1432 = vmul.f32 %v1054, %v1357
        %v1433 = vmul.f32 %v1055, %v1362
        %v1434 = vmul.f32 %v1056, %v1367
        %v1435 = vmul.f32 %v1057, %v1372
        %v1436 = vmul.f32 %v1058, %v1377
        %v1437 = vmul.f32 %v1059, %v1382
        %vm1492 = vcmask 1046528
        %v1493 = vrot.slane %v1384, 1
        %v1494 = vrot.slane %v1385, 1
        %v1495 = vsel %vm1492, %v1493, %v1494
        %v1496 = vrot.slane %v1386, 1
        %v1497 = vsel %vm1492, %v1494, %v1496
        %v1498 = vrot.slane %v1387, 1
        %v1499 = vrot.slane %v1388, 1
        %v1500 = vsel %vm1492, %v1498, %v1499
        %v1501 = vrot.slane %v1389, 1
        %v1502 = vsel %vm1492, %v1499, %v1501
        %v1503 = vrot.slane %v1390, 1
        %v1504 = vrot.slane %v1391, 1
        %v1505 = vsel %vm1492, %v1503, %v1504
        %v1506 = vrot.slane %v1392, 1
        %v1507 = vsel %vm1492, %v1504, %v1506
        %v1508 = vrot.slane %v1393, 1
        %v1509 = vrot.slane %v1394, 1
        %v1510 = vsel %vm1492, %v1508, %v1509
        %v1511 = vrot.slane %v1395, 1
        %v1512 = vsel %vm1492, %v1509, %v1511
        %v1513 = vrot.slane %v1396, 1
        %v1514 = vrot.slane %v1397, 1
        %v1515 = vsel %vm1492, %v1513, %v1514
        %v1516 = vrot.slane %v1398, 1
        %v1517 = vsel %vm1492, %v1514, %v1516
        %v1518 = vrot.slane %v1399, 1
        %v1519 = vrot.slane %v1400, 1
        %v1520 = vsel %vm1492, %v1518, %v1519
        %v1521 = vrot.slane %v1401, 1
        %v1522 = vsel %vm1492, %v1519, %v1521
        %v1523 = vrot.slane %v1402, 1
        %v1524 = vrot.slane %v1403, 1
        %v1525 = vsel %vm1492, %v1523, %v1524
        %v1526 = vrot.slane %v1404, 1
        %v1527 = vsel %vm1492, %v1524, %v1526
        %v1528 = vrot.slane %v1405, 1
        %v1529 = vrot.slane %v1406, 1
        %v1530 = vsel %vm1492, %v1528, %v1529
        %v1531 = vrot.slane %v1407, 1
        %v1532 = vsel %vm1492, %v1529, %v1531
        %v1533 = vrot.slane %v1408, 1
        %v1534 = vrot.slane %v1409, 1
        %v1535 = vsel %vm1492, %v1533, %v1534
        %v1536 = vrot.slane %v1410, 1
        %v1537 = vsel %vm1492, %v1534, %v1536
        %v1538 = vrot.slane %v1411, 1
        %v1539 = vrot.slane %v1412, 1
        %v1540 = vsel %vm1492, %v1538, %v1539
        %v1541 = vrot.slane %v1413, 1
        %v1542 = vsel %vm1492, %v1539, %v1541
        %v1543 = vrot.slane %v1414, 1
        %v1544 = vrot.slane %v1415, 1
        %v1545 = vsel %vm1492, %v1543, %v1544
        %v1546 = vrot.slane %v1416, 1
        %v1547 = vsel %vm1492, %v1544, %v1546
        %v1548 = vrot.slane %v1417, 1
        %v1549 = vrot.slane %v1418, 1
        %v1550 = vsel %vm1492, %v1548, %v1549
        %v1551 = vrot.slane %v1419, 1
        %v1552 = vsel %vm1492, %v1549, %v1551
        %v1553 = vrot.slane %v1420, 1
        %v1554 = vrot.slane %v1421, 1
        %v1555 = vsel %vm1492, %v1553, %v1554
        %v1556 = vrot.slane %v1422, 1
        %v1557 = vsel %vm1492, %v1554, %v1556
        %v1558 = vrot.slane %v1423, 1
        %v1559 = vrot.slane %v1424, 1
        %v1560 = vsel %vm1492, %v1558, %v1559
        %v1561 = vrot.slane %v1425, 1
        %v1562 = vsel %vm1492, %v1559, %v1561
        %v1563 = vrot.slane %v1426, 1
        %v1564 = vrot.slane %v1427, 1
        %v1565 = vsel %vm1492, %v1563, %v1564
        %v1566 = vrot.slane %v1428, 1
        %v1567 = vsel %vm1492, %v1564, %v1566
        %v1568 = vrot.slane %v1429, 1
        %v1569 = vrot.slane %v1430, 1
        %v1570 = vsel %vm1492, %v1568, %v1569
        %v1571 = vrot.slane %v1431, 1
        %v1572 = vsel %vm1492, %v1569, %v1571
        %v1573 = vrot.slane %v1432, 1
        %v1574 = vrot.slane %v1433, 1
        %v1575 = vsel %vm1492, %v1573, %v1574
        %v1576 = vrot.slane %v1434, 1
        %v1577 = vsel %vm1492, %v1574, %v1576
        %v1578 = vrot.slane %v1435, 1
        %v1579 = vrot.slane %v1436, 1
        %v1580 = vsel %vm1492, %v1578, %v1579
        %v1581 = vrot.slane %v1437, 1
        %v1582 = vsel %vm1492, %v1579, %v1581
        %vm1619 = vcmask 1045504
        %v1620 = vrot.slane %v1384, 2
        %v1621 = vrot.slane %v1385, 2
        %v1622 = vsel %vm1619, %v1620, %v1621
        %v1623 = vrot.slane %v1386, 2
        %v1624 = vsel %vm1619, %v1621, %v1623
        %v1625 = vrot.slane %v1387, 2
        %v1626 = vrot.slane %v1388, 2
        %v1627 = vsel %vm1619, %v1625, %v1626
        %v1628 = vrot.slane %v1389, 2
        %v1629 = vsel %vm1619, %v1626, %v1628
        %v1630 = vrot.slane %v1390, 2
        %v1631 = vrot.slane %v1391, 2
        %v1632 = vsel %vm1619, %v1630, %v1631
        %v1633 = vrot.slane %v1392, 2
        %v1634 = vsel %vm1619, %v1631, %v1633
        %v1635 = vrot.slane %v1393, 2
        %v1636 = vrot.slane %v1394, 2
        %v1637 = vsel %vm1619, %v1635, %v1636
        %v1638 = vrot.slane %v1395, 2
        %v1639 = vsel %vm1619, %v1636, %v1638
        %v1640 = vrot.slane %v1396, 2
        %v1641 = vrot.slane %v1397, 2
        %v1642 = vsel %vm1619, %v1640, %v1641
        %v1643 = vrot.slane %v1398, 2
        %v1644 = vsel %vm1619, %v1641, %v1643
        %v1645 = vrot.slane %v1399, 2
        %v1646 = vrot.slane %v1400, 2
        %v1647 = vsel %vm1619, %v1645, %v1646
        %v1648 = vrot.slane %v1401, 2
        %v1649 = vsel %vm1619, %v1646, %v1648
        %v1650 = vrot.slane %v1402, 2
        %v1651 = vrot.slane %v1403, 2
        %v1652 = vsel %vm1619, %v1650, %v1651
        %v1653 = vrot.slane %v1404, 2
        %v1654 = vsel %vm1619, %v1651, %v1653
        %v1655 = vrot.slane %v1405, 2
        %v1656 = vrot.slane %v1406, 2
        %v1657 = vsel %vm1619, %v1655, %v1656
        %v1658 = vrot.slane %v1407, 2
        %v1659 = vsel %vm1619, %v1656, %v1658
        %v1660 = vrot.slane %v1408, 2
        %v1661 = vrot.slane %v1409, 2
        %v1662 = vsel %vm1619, %v1660, %v1661
        %v1663 = vrot.slane %v1410, 2
        %v1664 = vsel %vm1619, %v1661, %v1663
        %v1665 = vrot.slane %v1411, 2
        %v1666 = vrot.slane %v1412, 2
        %v1667 = vsel %vm1619, %v1665, %v1666
        %v1668 = vrot.slane %v1413, 2
        %v1669 = vsel %vm1619, %v1666, %v1668
        %v1670 = vrot.slane %v1414, 2
        %v1671 = vrot.slane %v1415, 2
        %v1672 = vsel %vm1619, %v1670, %v1671
        %v1673 = vrot.slane %v1416, 2
        %v1674 = vsel %vm1619, %v1671, %v1673
        %v1675 = vrot.slane %v1417, 2
        %v1676 = vrot.slane %v1418, 2
        %v1677 = vsel %vm1619, %v1675, %v1676
        %v1678 = vrot.slane %v1419, 2
        %v1679 = vsel %vm1619, %v1676, %v1678
        %v1680 = vrot.slane %v1420, 2
        %v1681 = vrot.slane %v1421, 2
        %v1682 = vsel %vm1619, %v1680, %v1681
        %v1683 = vrot.slane %v1422, 2
        %v1684 = vsel %vm1619, %v1681, %v1683
        %v1685 = vrot.slane %v1423, 2
        %v1686 = vrot.slane %v1424, 2
        %v1687 = vsel %vm1619, %v1685, %v1686
        %v1688 = vrot.slane %v1425, 2
        %v1689 = vsel %vm1619, %v1686, %v1688
        %v1690 = vrot.slane %v1426, 2
        %v1691 = vrot.slane %v1427, 2
        %v1692 = vsel %vm1619, %v1690, %v1691
        %v1693 = vrot.slane %v1428, 2
        %v1694 = vsel %vm1619, %v1691, %v1693
        %v1695 = vrot.slane %v1429, 2
        %v1696 = vrot.slane %v1430, 2
        %v1697 = vsel %vm1619, %v1695, %v1696
        %v1698 = vrot.slane %v1431, 2
        %v1699 = vsel %vm1619, %v1696, %v1698
        %v1700 = vrot.slane %v1432, 2
        %v1701 = vrot.slane %v1433, 2
        %v1702 = vsel %vm1619, %v1700, %v1701
        %v1703 = vrot.slane %v1434, 2
        %v1704 = vsel %vm1619, %v1701, %v1703
        %v1705 = vrot.slane %v1435, 2
        %v1706 = vrot.slane %v1436, 2
        %v1707 = vsel %vm1619, %v1705, %v1706
        %v1708 = vrot.slane %v1437, 2
        %v1709 = vsel %vm1619, %v1706, %v1708
        %v1746 = vpack.c.bf16 %v1385, %v1384
        %v1747 = vpack.c.bf16 %v1497, %v1495
        %v1748 = vpack.c.bf16 %v1624, %v1622
        %v1749 = vpack.c.bf16 %v1388, %v1387
        %v1750 = vpack.c.bf16 %v1502, %v1500
        %v1751 = vpack.c.bf16 %v1629, %v1627
        %v1752 = vpack.c.bf16 %v1391, %v1390
        %v1753 = vpack.c.bf16 %v1507, %v1505
        %v1754 = vpack.c.bf16 %v1634, %v1632
        %v1755 = vpack.c.bf16 %v1394, %v1393
        %v1756 = vpack.c.bf16 %v1512, %v1510
        %v1757 = vpack.c.bf16 %v1639, %v1637
        %v1758 = vpack.c.bf16 %v1397, %v1396
        %v1759 = vpack.c.bf16 %v1517, %v1515
        %v1760 = vpack.c.bf16 %v1644, %v1642
        %v1761 = vpack.c.bf16 %v1400, %v1399
        %v1762 = vpack.c.bf16 %v1522, %v1520
        %v1763 = vpack.c.bf16 %v1649, %v1647
        %v1764 = vpack.c.bf16 %v1403, %v1402
        %v1765 = vpack.c.bf16 %v1527, %v1525
        %v1766 = vpack.c.bf16 %v1654, %v1652
        %v1767 = vpack.c.bf16 %v1406, %v1405
        %v1768 = vpack.c.bf16 %v1532, %v1530
        %v1769 = vpack.c.bf16 %v1659, %v1657
        %v1770 = vpack.c.bf16 %v1409, %v1408
        %v1771 = vpack.c.bf16 %v1537, %v1535
        %v1772 = vpack.c.bf16 %v1664, %v1662
        %v1773 = vpack.c.bf16 %v1412, %v1411
        %v1774 = vpack.c.bf16 %v1542, %v1540
        %v1775 = vpack.c.bf16 %v1669, %v1667
        %v1776 = vpack.c.bf16 %v1415, %v1414
        %v1777 = vpack.c.bf16 %v1547, %v1545
        %v1778 = vpack.c.bf16 %v1674, %v1672
        %v1779 = vpack.c.bf16 %v1418, %v1417
        %v1780 = vpack.c.bf16 %v1552, %v1550
        %v1781 = vpack.c.bf16 %v1679, %v1677
        %v1782 = vpack.c.bf16 %v1421, %v1420
        %v1783 = vpack.c.bf16 %v1557, %v1555
        %v1784 = vpack.c.bf16 %v1684, %v1682
        %v1785 = vpack.c.bf16 %v1424, %v1423
        %v1786 = vpack.c.bf16 %v1562, %v1560
        %v1787 = vpack.c.bf16 %v1689, %v1687
        %v1788 = vpack.c.bf16 %v1427, %v1426
        %v1789 = vpack.c.bf16 %v1567, %v1565
        %v1790 = vpack.c.bf16 %v1694, %v1692
        %v1791 = vpack.c.bf16 %v1430, %v1429
        %v1792 = vpack.c.bf16 %v1572, %v1570
        %v1793 = vpack.c.bf16 %v1699, %v1697
        %v1794 = vpack.c.bf16 %v1433, %v1432
        %v1795 = vpack.c.bf16 %v1577, %v1575
        %v1796 = vpack.c.bf16 %v1704, %v1702
        %v1797 = vpack.c.bf16 %v1436, %v1435
        %v1798 = vpack.c.bf16 %v1582, %v1580
        %v1799 = vpack.c.bf16 %v1709, %v1707
        %v1800 = vld [vmem:[#allocation8] sm:$0xf]
        %v1801 = vld [vmem:[#allocation8 + $0x4] sm:$0xf]
        %v1802 = vld [vmem:[#allocation8 + $0x8] sm:$0xf]
        %v1803 = vld [vmem:[#allocation8 + $0xc] sm:$0xf]
        %v1804 = vld [vmem:[#allocation8 + $0x10] sm:$0xf]
        %v1805 = vld [vmem:[#allocation8 + $0x14] sm:$0xf]
        %v1806 = vld [vmem:[#allocation8 + $0x18] sm:$0xf]
        %v1807 = vld [vmem:[#allocation8 + $0x1c] sm:$0xf]
        %v1808 = vld [vmem:[#allocation8 + $0x20] sm:$0xf]
        %v1809 = vld [vmem:[#allocation8 + $0x24] sm:$0xf]
        %v1810 = vld [vmem:[#allocation8 + $0x28] sm:$0xf]
        %v1811 = vld [vmem:[#allocation8 + $0x2c] sm:$0xf]
        %v1812 = vld [vmem:[#allocation8 + $0x30] sm:$0xf]
        %v1813 = vld [vmem:[#allocation8 + $0x34] sm:$0xf]
        %v1814 = vld [vmem:[#allocation8 + $0x38] sm:$0xf]
        %v1815 = vld [vmem:[#allocation8 + $0x3c] sm:$0xf]
        %v1816 = vld [vmem:[#allocation8 + $0x40] sm:$0xf]
        %v1817 = vld [vmem:[#allocation8 + $0x44] sm:$0xf]
        %v1818 = vld [vmem:[#allocation8 + $0x48] sm:$0xf]
        %v1819 = vld [vmem:[#allocation8 + $0x4c] sm:$0xf]
        %v1820 = vld [vmem:[#allocation8 + $0x50] sm:$0xf]
        %v1821 = vld [vmem:[#allocation8 + $0x54] sm:$0xf]
        %v1822 = vld [vmem:[#allocation8 + $0x58] sm:$0xf]
        %v1823 = vld [vmem:[#allocation8 + $0x5c] sm:$0xf]
        %v1824 = vld [vmem:[#allocation8 + $0x60] sm:$0xf]
        %v1825 = vld [vmem:[#allocation8 + $0x64] sm:$0xf]
        %v1826 = vld [vmem:[#allocation8 + $0x68] sm:$0xf]
        %v1827 = vld [vmem:[#allocation8 + $0x6c] sm:$0xf]
        %v1828 = vld [vmem:[#allocation8 + $0x70] sm:$0xf]
        %v1829 = vld [vmem:[#allocation8 + $0x74] sm:$0xf]
        %v1830 = vld [vmem:[#allocation8 + $0x78] sm:$0xf]
        %v1831 = vld [vmem:[#allocation8 + $0x7c] sm:$0xf]
        %v1832 = vld [vmem:[#allocation8 + $0x80] sm:$0xf]
        %v1833 = vld [vmem:[#allocation8 + $0x84] sm:$0xf]
        %v1834 = vld [vmem:[#allocation8 + $0x88] sm:$0xf]
        %v1835 = vld [vmem:[#allocation8 + $0x8c] sm:$0xf]
        %v1836 = vld [vmem:[#allocation8 + $0x90] sm:$0xf]
        %v1837 = vld [vmem:[#allocation8 + $0x94] sm:$0xf]
        %v1838 = vld [vmem:[#allocation8 + $0x98] sm:$0xf]
        %v1839 = vld [vmem:[#allocation8 + $0x9c] sm:$0xf]
        %v1840 = vld [vmem:[#allocation8 + $0xa0] sm:$0xf]
        %v1841 = vld [vmem:[#allocation8 + $0xa4] sm:$0xf]
        %v1842 = vld [vmem:[#allocation8 + $0xa8] sm:$0xf]
        %v1843 = vld [vmem:[#allocation8 + $0xac] sm:$0xf]
        %v1844 = vld [vmem:[#allocation8 + $0xb0] sm:$0xf]
        %v1845 = vld [vmem:[#allocation8 + $0xb4] sm:$0xf]
        %v1846 = vld [vmem:[#allocation8 + $0xb8] sm:$0xf]
        %v1847 = vld [vmem:[#allocation8 + $0xbc] sm:$0xf]
        %v1848 = vld [vmem:[#allocation8 + $0xc0] sm:$0xf]
        %v1849 = vld [vmem:[#allocation8 + $0xc4] sm:$0xf]
        %v1850 = vld [vmem:[#allocation8 + $0xc8] sm:$0xf]
        %v1851 = vld [vmem:[#allocation8 + $0xcc] sm:$0xf]
        %v1852 = vld [vmem:[#allocation8 + $0xd0] sm:$0xf]
        %v1853 = vld [vmem:[#allocation8 + $0xd4] sm:$0xf]
        %v1854 = vld [vmem:[#allocation8 + $0xd8] sm:$0xf]
        %v1855 = vld [vmem:[#allocation8 + $0xdc] sm:$0xf]
        %v1856 = vld [vmem:[#allocation8 + $0xe0] sm:$0xf]
        %v1857 = vld [vmem:[#allocation8 + $0xe4] sm:$0xf]
        %v1858 = vld [vmem:[#allocation8 + $0xe8] sm:$0xf]
        %v1859 = vld [vmem:[#allocation8 + $0xec] sm:$0xf]
        %v1860 = vld [vmem:[#allocation8 + $0xf0] sm:$0xf]
        %v1861 = vld [vmem:[#allocation8 + $0xf4] sm:$0xf]
        %v1862 = vld [vmem:[#allocation8 + $0xf8] sm:$0xf]
        %v1863 = vld [vmem:[#allocation8 + $0xfc] sm:$0xf]
        %v1864 = vld [vmem:[#allocation8 + $0x100] sm:$0xf]
        %v1865 = vld [vmem:[#allocation8 + $0x104] sm:$0xf]
        %v1866 = vld [vmem:[#allocation8 + $0x108] sm:$0xf]
        %v1867 = vld [vmem:[#allocation8 + $0x10c] sm:$0xf]
        %v1868 = vld [vmem:[#allocation8 + $0x110] sm:$0xf]
        %v1869 = vld [vmem:[#allocation8 + $0x114] sm:$0xf]
        %v1870 = vld [vmem:[#allocation8 + $0x118] sm:$0xf]
        %v1871 = vld [vmem:[#allocation8 + $0x11c] sm:$0xf]
        %v1872 = vld [vmem:[#allocation8 + $0x120] sm:$0xf]
        %v1873 = vld [vmem:[#allocation8 + $0x124] sm:$0xf]
        %v1874 = vld [vmem:[#allocation8 + $0x128] sm:$0xf]
        %v1875 = vld [vmem:[#allocation8 + $0x12c] sm:$0xf]
        %v1876 = vld [vmem:[#allocation8 + $0x130] sm:$0xf]
        %v1877 = vld [vmem:[#allocation8 + $0x134] sm:$0xf]
        %v1878 = vld [vmem:[#allocation8 + $0x138] sm:$0xf]
        %v1879 = vld [vmem:[#allocation8 + $0x13c] sm:$0xf]
        %v1880 = vld [vmem:[#allocation8 + $0x140] sm:$0xf]
        %v1881 = vld [vmem:[#allocation8 + $0x144] sm:$0xf]
        %v1882 = vld [vmem:[#allocation8 + $0x148] sm:$0xf]
        %v1883 = vld [vmem:[#allocation8 + $0x14c] sm:$0xf]
        %v1884 = vld [vmem:[#allocation8 + $0x150] sm:$0xf]
        %v1885 = vld [vmem:[#allocation8 + $0x154] sm:$0xf]
        %v1886 = vld [vmem:[#allocation8 + $0x158] sm:$0xf]
        %v1887 = vld [vmem:[#allocation8 + $0x15c] sm:$0xf]
        %v1888 = vld [vmem:[#allocation8 + $0x160] sm:$0xf]
        %v1889 = vld [vmem:[#allocation8 + $0x164] sm:$0xf]
        %v1890 = vld [vmem:[#allocation8 + $0x168] sm:$0xf]
        %v1891 = vld [vmem:[#allocation8 + $0x16c] sm:$0xf]
        %v1892 = vld [vmem:[#allocation8 + $0x170] sm:$0xf]
        %v1893 = vld [vmem:[#allocation8 + $0x174] sm:$0xf]
        %v1894 = vld [vmem:[#allocation8 + $0x178] sm:$0xf]
        %v1895 = vld [vmem:[#allocation8 + $0x17c] sm:$0xf]
        %v1896 = vld [vmem:[#allocation8 + $0x180] sm:$0xf]
        %v1897 = vld [vmem:[#allocation8 + $0x184] sm:$0xf]
        %v1898 = vld [vmem:[#allocation8 + $0x188] sm:$0xf]
        %v1899 = vld [vmem:[#allocation8 + $0x18c] sm:$0xf]
        %v1900 = vld [vmem:[#allocation8 + $0x190] sm:$0xf]
        %v1901 = vld [vmem:[#allocation8 + $0x194] sm:$0xf]
        %v1902 = vld [vmem:[#allocation8 + $0x198] sm:$0xf]
        %v1903 = vld [vmem:[#allocation8 + $0x19c] sm:$0xf]
        %v1904 = vld [vmem:[#allocation8 + $0x1a0] sm:$0xf]
        %v1905 = vld [vmem:[#allocation8 + $0x1a4] sm:$0xf]
        %v1906 = vld [vmem:[#allocation8 + $0x1a8] sm:$0xf]
        %v1907 = vld [vmem:[#allocation8 + $0x1ac] sm:$0xf]
        %v1908 = vld [vmem:[#allocation8 + $0x1b0] sm:$0xf]
        %v1909 = vld [vmem:[#allocation8 + $0x1b4] sm:$0xf]
        %v1910 = vld [vmem:[#allocation8 + $0x1b8] sm:$0xf]
        %v1911 = vld [vmem:[#allocation8 + $0x1bc] sm:$0xf]
        %v1912 = vld [vmem:[#allocation8 + $0x1c0] sm:$0xf]
        %v1913 = vld [vmem:[#allocation8 + $0x1c4] sm:$0xf]
        %v1914 = vld [vmem:[#allocation8 + $0x1c8] sm:$0xf]
        %v1915 = vld [vmem:[#allocation8 + $0x1cc] sm:$0xf]
        %v1916 = vld [vmem:[#allocation8 + $0x1d0] sm:$0xf]
        %v1917 = vld [vmem:[#allocation8 + $0x1d4] sm:$0xf]
        %v1918 = vld [vmem:[#allocation8 + $0x1d8] sm:$0xf]
        %v1919 = vld [vmem:[#allocation8 + $0x1dc] sm:$0xf]
        %v1920 = vld [vmem:[#allocation8 + $0x1e0] sm:$0xf]
        %v1921 = vld [vmem:[#allocation8 + $0x1e4] sm:$0xf]
        %v1922 = vld [vmem:[#allocation8 + $0x1e8] sm:$0xf]
        %v1923 = vld [vmem:[#allocation8 + $0x1ec] sm:$0xf]
        %v1924 = vld [vmem:[#allocation8 + $0x1f0] sm:$0xf]
        %v1925 = vld [vmem:[#allocation8 + $0x1f4] sm:$0xf]
        %v1926 = vld [vmem:[#allocation8 + $0x1f8] sm:$0xf]
        %v1927 = vld [vmem:[#allocation8 + $0x1fc] sm:$0xf]
        %v1928 = vld [vmem:[#allocation8 + $0x200] sm:$0xf]
        %v1929 = vld [vmem:[#allocation8 + $0x204] sm:$0xf]
        %v1930 = vld [vmem:[#allocation8 + $0x208] sm:$0xf]
        %v1931 = vld [vmem:[#allocation8 + $0x20c] sm:$0xf]
        %v1932 = vld [vmem:[#allocation8 + $0x210] sm:$0xf]
        %v1933 = vld [vmem:[#allocation8 + $0x214] sm:$0xf]
        %v1934 = vld [vmem:[#allocation8 + $0x218] sm:$0xf]
        %v1935 = vld [vmem:[#allocation8 + $0x21c] sm:$0xf]
        %v1936 = vld [vmem:[#allocation8 + $0x220] sm:$0xf]
        %v1937 = vld [vmem:[#allocation8 + $0x224] sm:$0xf]
        %v1938 = vld [vmem:[#allocation8 + $0x228] sm:$0xf]
        %v1939 = vld [vmem:[#allocation8 + $0x22c] sm:$0xf]
        %v1940 = vld [vmem:[#allocation8 + $0x230] sm:$0xf]
        %v1941 = vld [vmem:[#allocation8 + $0x234] sm:$0xf]
        %v1942 = vld [vmem:[#allocation8 + $0x238] sm:$0xf]
        %v1943 = vld [vmem:[#allocation8 + $0x23c] sm:$0xf]
        %v1944 = vld [vmem:[#allocation10] sm:$0x1]
        %v1946 = vlaneseq
        %v1947 = vshrl.u32 %v1946, 7
        %v1948 = vsub.s32 0, %v1947
        %v1949 = vrot.slane %v1944, %v1948
        %v2095 = vunpack.c.l.b16 %v1800
        %v2096 = vunpack.c.l.b16 %v1801
        %v2097 = vunpack.c.l.b16 %v1802
        %v2098 = vunpack.c.l.b16 %v1803
        %v2099 = vunpack.c.l.b16 %v1804
        %v2100 = vunpack.c.l.b16 %v1805
        %v2101 = vunpack.c.l.b16 %v1806
        %v2102 = vunpack.c.l.b16 %v1807
        %v2103 = vunpack.c.l.b16 %v1808
        %v2104 = vunpack.c.l.b16 %v1809
        %v2105 = vunpack.c.l.b16 %v1810
        %v2106 = vunpack.c.l.b16 %v1811
        %v2107 = vunpack.c.l.b16 %v1812
        %v2108 = vunpack.c.l.b16 %v1813
        %v2109 = vunpack.c.l.b16 %v1814
        %v2110 = vunpack.c.l.b16 %v1815
        %v2111 = vunpack.c.l.b16 %v1816
        %v2112 = vunpack.c.l.b16 %v1817
        %v2113 = vunpack.c.l.b16 %v1818
        %v2114 = vunpack.c.l.b16 %v1819
        %v2115 = vunpack.c.l.b16 %v1820
        %v2116 = vunpack.c.l.b16 %v1821
        %v2117 = vunpack.c.l.b16 %v1822
        %v2118 = vunpack.c.l.b16 %v1823
        %v2119 = vunpack.c.l.b16 %v1824
        %v2120 = vunpack.c.l.b16 %v1825
        %v2121 = vunpack.c.l.b16 %v1826
        %v2122 = vunpack.c.l.b16 %v1827
        %v2123 = vunpack.c.l.b16 %v1828
        %v2124 = vunpack.c.l.b16 %v1829
        %v2125 = vunpack.c.l.b16 %v1830
        %v2126 = vunpack.c.l.b16 %v1831
        %v2127 = vunpack.c.l.b16 %v1832
        %v2128 = vunpack.c.l.b16 %v1833
        %v2129 = vunpack.c.l.b16 %v1834
        %v2130 = vunpack.c.l.b16 %v1835
        %v2131 = vunpack.c.l.b16 %v1836
        %v2132 = vunpack.c.l.b16 %v1837
        %v2133 = vunpack.c.l.b16 %v1838
        %v2134 = vunpack.c.l.b16 %v1839
        %v2135 = vunpack.c.l.b16 %v1840
        %v2136 = vunpack.c.l.b16 %v1841
        %v2137 = vunpack.c.l.b16 %v1842
        %v2138 = vunpack.c.l.b16 %v1843
        %v2139 = vunpack.c.l.b16 %v1844
        %v2140 = vunpack.c.l.b16 %v1845
        %v2141 = vunpack.c.l.b16 %v1846
        %v2142 = vunpack.c.l.b16 %v1847
        %v2143 = vunpack.c.l.b16 %v1848
        %v2144 = vunpack.c.l.b16 %v1849
        %v2145 = vunpack.c.l.b16 %v1850
        %v2146 = vunpack.c.l.b16 %v1851
        %v2147 = vunpack.c.l.b16 %v1852
        %v2148 = vunpack.c.l.b16 %v1853
        %v2149 = vunpack.c.l.b16 %v1854
        %v2150 = vunpack.c.l.b16 %v1855
        %v2151 = vunpack.c.l.b16 %v1856
        %v2152 = vunpack.c.l.b16 %v1857
        %v2153 = vunpack.c.l.b16 %v1858
        %v2154 = vunpack.c.l.b16 %v1859
        %v2155 = vunpack.c.l.b16 %v1860
        %v2156 = vunpack.c.l.b16 %v1861
        %v2157 = vunpack.c.l.b16 %v1862
        %v2158 = vunpack.c.l.b16 %v1863
        %v2159 = vunpack.c.l.b16 %v1864
        %v2160 = vunpack.c.l.b16 %v1865
        %v2161 = vunpack.c.l.b16 %v1866
        %v2162 = vunpack.c.l.b16 %v1867
        %v2163 = vunpack.c.l.b16 %v1868
        %v2164 = vunpack.c.l.b16 %v1869
        %v2165 = vunpack.c.l.b16 %v1870
        %v2166 = vunpack.c.l.b16 %v1871
        %v2167 = vunpack.c.l.b16 %v1872
        %v2168 = vunpack.c.l.b16 %v1873
        %v2169 = vunpack.c.l.b16 %v1874
        %v2170 = vunpack.c.l.b16 %v1875
        %v2171 = vunpack.c.l.b16 %v1876
        %v2172 = vunpack.c.l.b16 %v1877
        %v2173 = vunpack.c.l.b16 %v1878
        %v2174 = vunpack.c.l.b16 %v1879
        %v2175 = vunpack.c.l.b16 %v1880
        %v2176 = vunpack.c.l.b16 %v1881
        %v2177 = vunpack.c.l.b16 %v1882
        %v2178 = vunpack.c.l.b16 %v1883
        %v2179 = vunpack.c.l.b16 %v1884
        %v2180 = vunpack.c.l.b16 %v1885
        %v2181 = vunpack.c.l.b16 %v1886
        %v2182 = vunpack.c.l.b16 %v1887
        %v2183 = vunpack.c.l.b16 %v1888
        %v2184 = vunpack.c.l.b16 %v1889
        %v2185 = vunpack.c.l.b16 %v1890
        %v2186 = vunpack.c.l.b16 %v1891
        %v2187 = vunpack.c.l.b16 %v1892
        %v2188 = vunpack.c.l.b16 %v1893
        %v2189 = vunpack.c.l.b16 %v1894
        %v2190 = vunpack.c.l.b16 %v1895
        %v2191 = vunpack.c.l.b16 %v1896
        %v2192 = vunpack.c.l.b16 %v1897
        %v2193 = vunpack.c.l.b16 %v1898
        %v2194 = vunpack.c.l.b16 %v1899
        %v2195 = vunpack.c.l.b16 %v1900
        %v2196 = vunpack.c.l.b16 %v1901
        %v2197 = vunpack.c.l.b16 %v1902
        %v2198 = vunpack.c.l.b16 %v1903
        %v2199 = vunpack.c.l.b16 %v1904
        %v2200 = vunpack.c.l.b16 %v1905
        %v2201 = vunpack.c.l.b16 %v1906
        %v2202 = vunpack.c.l.b16 %v1907
        %v2203 = vunpack.c.l.b16 %v1908
        %v2204 = vunpack.c.l.b16 %v1909
        %v2205 = vunpack.c.l.b16 %v1910
        %v2206 = vunpack.c.l.b16 %v1911
        %v2207 = vunpack.c.l.b16 %v1912
        %v2208 = vunpack.c.l.b16 %v1913
        %v2209 = vunpack.c.l.b16 %v1914
        %v2210 = vunpack.c.l.b16 %v1915
        %v2211 = vunpack.c.l.b16 %v1916
        %v2212 = vunpack.c.l.b16 %v1917
        %v2213 = vunpack.c.l.b16 %v1918
        %v2214 = vunpack.c.l.b16 %v1919
        %v2215 = vunpack.c.l.b16 %v1920
        %v2216 = vunpack.c.l.b16 %v1921
        %v2217 = vunpack.c.l.b16 %v1922
        %v2218 = vunpack.c.l.b16 %v1923
        %v2219 = vunpack.c.l.b16 %v1924
        %v2220 = vunpack.c.l.b16 %v1925
        %v2221 = vunpack.c.l.b16 %v1926
        %v2222 = vunpack.c.l.b16 %v1927
        %v2223 = vunpack.c.l.b16 %v1928
        %v2224 = vunpack.c.l.b16 %v1929
        %v2225 = vunpack.c.l.b16 %v1930
        %v2226 = vunpack.c.l.b16 %v1931
        %v2227 = vunpack.c.l.b16 %v1932
        %v2228 = vunpack.c.l.b16 %v1933
        %v2229 = vunpack.c.l.b16 %v1934
        %v2230 = vunpack.c.l.b16 %v1935
        %v2231 = vunpack.c.l.b16 %v1936
        %v2232 = vunpack.c.l.b16 %v1937
        %v2233 = vunpack.c.l.b16 %v1938
        %v2234 = vunpack.c.l.b16 %v1939
        %v2235 = vunpack.c.l.b16 %v1940
        %v2236 = vunpack.c.l.b16 %v1941
        %v2237 = vunpack.c.l.b16 %v1942
        %v2238 = vunpack.c.l.b16 %v1943
        %v2239 = vpack.c.b16 %v2096, %v2095
        %v2240 = vpack.c.b16 %v2098, %v2097
        %v2241 = vpack.c.b16 %v2100, %v2099
        %v2242 = vpack.c.b16 %v2102, %v2101
        %v2243 = vpack.c.b16 %v2104, %v2103
        %v2244 = vpack.c.b16 %v2106, %v2105
        %v2245 = vpack.c.b16 %v2108, %v2107
        %v2246 = vpack.c.b16 %v2110, %v2109
        %v2247 = vpack.c.b16 %v2112, %v2111
        %v2248 = vpack.c.b16 %v2114, %v2113
        %v2249 = vpack.c.b16 %v2116, %v2115
        %v2250 = vpack.c.b16 %v2118, %v2117
        %v2251 = vpack.c.b16 %v2120, %v2119
        %v2252 = vpack.c.b16 %v2122, %v2121
        %v2253 = vpack.c.b16 %v2124, %v2123
        %v2254 = vpack.c.b16 %v2126, %v2125
        %v2255 = vpack.c.b16 %v2128, %v2127
        %v2256 = vpack.c.b16 %v2130, %v2129
        %v2257 = vpack.c.b16 %v2132, %v2131
        %v2258 = vpack.c.b16 %v2134, %v2133
        %v2259 = vpack.c.b16 %v2136, %v2135
        %v2260 = vpack.c.b16 %v2138, %v2137
        %v2261 = vpack.c.b16 %v2140, %v2139
        %v2262 = vpack.c.b16 %v2142, %v2141
        %v2263 = vpack.c.b16 %v2144, %v2143
        %v2264 = vpack.c.b16 %v2146, %v2145
        %v2265 = vpack.c.b16 %v2148, %v2147
        %v2266 = vpack.c.b16 %v2150, %v2149
        %v2267 = vpack.c.b16 %v2152, %v2151
        %v2268 = vpack.c.b16 %v2154, %v2153
        %v2269 = vpack.c.b16 %v2156, %v2155
        %v2270 = vpack.c.b16 %v2158, %v2157
        %v2271 = vpack.c.b16 %v2160, %v2159
        %v2272 = vpack.c.b16 %v2162, %v2161
        %v2273 = vpack.c.b16 %v2164, %v2163
        %v2274 = vpack.c.b16 %v2166, %v2165
        %v2275 = vpack.c.b16 %v2168, %v2167
        %v2276 = vpack.c.b16 %v2170, %v2169
        %v2277 = vpack.c.b16 %v2172, %v2171
        %v2278 = vpack.c.b16 %v2174, %v2173
        %v2279 = vpack.c.b16 %v2176, %v2175
        %v2280 = vpack.c.b16 %v2178, %v2177
        %v2281 = vpack.c.b16 %v2180, %v2179
        %v2282 = vpack.c.b16 %v2182, %v2181
        %v2283 = vpack.c.b16 %v2184, %v2183
        %v2284 = vpack.c.b16 %v2186, %v2185
        %v2285 = vpack.c.b16 %v2188, %v2187
        %v2286 = vpack.c.b16 %v2190, %v2189
        %v2287 = vpack.c.b16 %v2192, %v2191
        %v2288 = vpack.c.b16 %v2194, %v2193
        %v2289 = vpack.c.b16 %v2196, %v2195
        %v2290 = vpack.c.b16 %v2198, %v2197
        %v2291 = vpack.c.b16 %v2200, %v2199
        %v2292 = vpack.c.b16 %v2202, %v2201
        %v2293 = vpack.c.b16 %v2204, %v2203
        %v2294 = vpack.c.b16 %v2206, %v2205
        %v2295 = vpack.c.b16 %v2208, %v2207
        %v2296 = vpack.c.b16 %v2210, %v2209
        %v2297 = vpack.c.b16 %v2212, %v2211
        %v2298 = vpack.c.b16 %v2214, %v2213
        %v2299 = vpack.c.b16 %v2216, %v2215
        %v2300 = vpack.c.b16 %v2218, %v2217
        %v2301 = vpack.c.b16 %v2220, %v2219
        %v2302 = vpack.c.b16 %v2222, %v2221
        %v2303 = vpack.c.b16 %v2224, %v2223
        %v2304 = vpack.c.b16 %v2226, %v2225
        %v2305 = vpack.c.b16 %v2228, %v2227
        %v2306 = vpack.c.b16 %v2230, %v2229
        %v2307 = vpack.c.b16 %v2232, %v2231
        %v2308 = vpack.c.b16 %v2234, %v2233
        %v2309 = vpack.c.b16 %v2236, %v2235
        %v2310 = vpack.c.b16 %v2238, %v2237
        %2383 = vmatprep.subr.bf16.mxu0 0
        %2384 = vmatpush1.bf16.msra.mxu0 %v2246
        %2385 = vmatprep.subr.bf16.mxu0 0
        %2386 = vmatpush1.bf16.msra.mxu0 %v2245
        %2387 = vmatprep.subr.bf16.mxu0 0
        %2388 = vmatpush1.bf16.msra.mxu0 %v2244
        %2389 = vmatprep.subr.bf16.mxu0 0
        %2390 = vmatpush1.bf16.msra.mxu0 %v2243
        %2391 = vmatprep.subr.bf16.mxu0 0
        %2392 = vmatpush1.bf16.msra.mxu0 %v2242
        %2393 = vmatprep.subr.bf16.mxu0 0
        %2394 = vmatpush1.bf16.msra.mxu0 %v2241
        %2395 = vmatprep.subr.bf16.mxu0 0
        %2396 = vmatpush1.bf16.msra.mxu0 %v2240
        %2397 = vmatprep.subr.bf16.mxu0 0
        %2398 = vmatpush1.bf16.msra.mxu0 %v2239
        %2399 = vmatprep.subr.bf16.mxu0 0
        %2400 = vmatpush2.bf16.msra.mxu0 %v2254
        %2401 = vmatprep.subr.bf16.mxu0 0
        %2402 = vmatpush2.bf16.msra.mxu0 %v2253
        %2403 = vmatprep.subr.bf16.mxu0 0
        %2404 = vmatpush2.bf16.msra.mxu0 %v2252
        %2405 = vmatprep.subr.bf16.mxu0 0
        %2406 = vmatpush2.bf16.msra.mxu0 %v2251
        %2407 = vmatprep.subr.bf16.mxu0 0
        %2408 = vmatpush2.bf16.msra.mxu0 %v2250
        %2409 = vmatprep.subr.bf16.mxu0 0
        %2410 = vmatpush2.bf16.msra.mxu0 %v2249
        %2411 = vmatprep.subr.bf16.mxu0 0
        %2412 = vmatpush2.bf16.msra.mxu0 %v2248
        %2413 = vmatprep.subr.bf16.mxu0 0
        %2414 = vmatpush2.bf16.msra.mxu0 %v2247
        %2415 = vmatprep.mubr.bf16.mxu0 %v1747
        %2416 = vmatmul.mubr.bf16.gmra.mxu0 %v1746
        %v2417 = vpop.f32.mrf.mxu0
        %v2418 = vadd.f32 %v1949, %v2417
        %v2419 = vpop.f32.mrf.mxu0
        %v2420 = vpop.f32.mrf.mxu0
        %v2421 = vadd.f32 %v1949, %v2420
        %v2422 = vpop.f32.mrf.mxu0
        %2423 = vmatprep.mubr.bf16.mxu0 %v1750
        %2424 = vmatmul.mubr.bf16.gmra.mxu0 %v1749
        %v2425 = vpop.f32.mrf.mxu0
        %v2426 = vadd.f32 %v1949, %v2425
        %v2427 = vpop.f32.mrf.mxu0
        %v2428 = vpop.f32.mrf.mxu0
        %v2429 = vadd.f32 %v1949, %v2428
        %v2430 = vpop.f32.mrf.mxu0
        %2431 = vmatprep.mubr.bf16.mxu0 %v1753
        %2432 = vmatmul.mubr.bf16.gmra.mxu0 %v1752
        %v2433 = vpop.f32.mrf.mxu0
        %v2434 = vadd.f32 %v1949, %v2433
        %v2435 = vpop.f32.mrf.mxu0
        %v2436 = vpop.f32.mrf.mxu0
        %v2437 = vadd.f32 %v1949, %v2436
        %v2438 = vpop.f32.mrf.mxu0
        %2439 = vmatprep.mubr.bf16.mxu0 %v1756
        %2440 = vmatmul.mubr.bf16.gmra.mxu0 %v1755
        %v2441 = vpop.f32.mrf.mxu0
        %v2442 = vadd.f32 %v1949, %v2441
        %v2443 = vpop.f32.mrf.mxu0
        %v2444 = vpop.f32.mrf.mxu0
        %v2445 = vadd.f32 %v1949, %v2444
        %v2446 = vpop.f32.mrf.mxu0
        %2447 = vmatprep.mubr.bf16.mxu0 %v1759
        %2448 = vmatmul.mubr.bf16.gmra.mxu0 %v1758
        %v2449 = vpop.f32.mrf.mxu0
        %v2450 = vadd.f32 %v1949, %v2449
        %v2451 = vpop.f32.mrf.mxu0
        %v2452 = vpop.f32.mrf.mxu0
        %v2453 = vadd.f32 %v1949, %v2452
        %v2454 = vpop.f32.mrf.mxu0
        %2455 = vmatprep.mubr.bf16.mxu0 %v1762
        %2456 = vmatmul.mubr.bf16.gmra.mxu0 %v1761
        %v2457 = vpop.f32.mrf.mxu0
        %v2458 = vadd.f32 %v1949, %v2457
        %v2459 = vpop.f32.mrf.mxu0
        %v2460 = vpop.f32.mrf.mxu0
        %v2461 = vadd.f32 %v1949, %v2460
        %v2462 = vpop.f32.mrf.mxu0
        %2463 = vmatprep.mubr.bf16.mxu0 %v1765
        %2464 = vmatmul.mubr.bf16.gmra.mxu0 %v1764
        %v2465 = vpop.f32.mrf.mxu0
        %v2466 = vadd.f32 %v1949, %v2465
        %v2467 = vpop.f32.mrf.mxu0
        %v2468 = vpop.f32.mrf.mxu0
        %v2469 = vadd.f32 %v1949, %v2468
        %v2470 = vpop.f32.mrf.mxu0
        %2471 = vmatprep.mubr.bf16.mxu0 %v1768
        %2472 = vmatmul.mubr.bf16.gmra.mxu0 %v1767
        %v2473 = vpop.f32.mrf.mxu0
        %v2474 = vadd.f32 %v1949, %v2473
        %v2475 = vpop.f32.mrf.mxu0
        %v2476 = vpop.f32.mrf.mxu0
        %v2477 = vadd.f32 %v1949, %v2476
        %v2478 = vpop.f32.mrf.mxu0
        %2479 = vmatprep.mubr.bf16.mxu0 %v1771
        %2480 = vmatmul.mubr.bf16.gmra.mxu0 %v1770
        %v2481 = vpop.f32.mrf.mxu0
        %v2482 = vadd.f32 %v1949, %v2481
        %v2483 = vpop.f32.mrf.mxu0
        %v2484 = vpop.f32.mrf.mxu0
        %v2485 = vadd.f32 %v1949, %v2484
        %v2486 = vpop.f32.mrf.mxu0
        %2487 = vmatprep.mubr.bf16.mxu0 %v1774
        %2488 = vmatmul.mubr.bf16.gmra.mxu0 %v1773
        %v2489 = vpop.f32.mrf.mxu0
        %v2490 = vadd.f32 %v1949, %v2489
        %v2491 = vpop.f32.mrf.mxu0
        %v2492 = vpop.f32.mrf.mxu0
        %v2493 = vadd.f32 %v1949, %v2492
        %v2494 = vpop.f32.mrf.mxu0
        %2495 = vmatprep.mubr.bf16.mxu0 %v1777
        %2496 = vmatmul.mubr.bf16.gmra.mxu0 %v1776
        %v2497 = vpop.f32.mrf.mxu0
        %v2498 = vadd.f32 %v1949, %v2497
        %v2499 = vpop.f32.mrf.mxu0
        %v2500 = vpop.f32.mrf.mxu0
        %v2501 = vadd.f32 %v1949, %v2500
        %v2502 = vpop.f32.mrf.mxu0
        %2503 = vmatprep.mubr.bf16.mxu0 %v1780
        %2504 = vmatmul.mubr.bf16.gmra.mxu0 %v1779
        %v2505 = vpop.f32.mrf.mxu0
        %v2506 = vadd.f32 %v1949, %v2505
        %v2507 = vpop.f32.mrf.mxu0
        %v2508 = vpop.f32.mrf.mxu0
        %v2509 = vadd.f32 %v1949, %v2508
        %v2510 = vpop.f32.mrf.mxu0
        %2511 = vmatprep.mubr.bf16.mxu0 %v1783
        %2512 = vmatmul.mubr.bf16.gmra.mxu0 %v1782
        %v2513 = vpop.f32.mrf.mxu0
        %v2514 = vadd.f32 %v1949, %v2513
        %v2515 = vpop.f32.mrf.mxu0
        %v2516 = vpop.f32.mrf.mxu0
        %v2517 = vadd.f32 %v1949, %v2516
        %v2518 = vpop.f32.mrf.mxu0
        %2519 = vmatprep.mubr.bf16.mxu0 %v1786
        %2520 = vmatmul.mubr.bf16.gmra.mxu0 %v1785
        %v2521 = vpop.f32.mrf.mxu0
        %v2522 = vadd.f32 %v1949, %v2521
        %v2523 = vpop.f32.mrf.mxu0
        %v2524 = vpop.f32.mrf.mxu0
        %v2525 = vadd.f32 %v1949, %v2524
        %v2526 = vpop.f32.mrf.mxu0
        %2527 = vmatprep.mubr.bf16.mxu0 %v1789
        %2528 = vmatmul.mubr.bf16.gmra.mxu0 %v1788
        %v2529 = vpop.f32.mrf.mxu0
        %v2530 = vadd.f32 %v1949, %v2529
        %v2531 = vpop.f32.mrf.mxu0
        %v2532 = vpop.f32.mrf.mxu0
        %v2533 = vadd.f32 %v1949, %v2532
        %v2534 = vpop.f32.mrf.mxu0
        %2535 = vmatprep.mubr.bf16.mxu0 %v1792
        %2536 = vmatmul.mubr.bf16.gmra.mxu0 %v1791
        %v2537 = vpop.f32.mrf.mxu0
        %v2538 = vadd.f32 %v1949, %v2537
        %v2539 = vpop.f32.mrf.mxu0
        %v2540 = vpop.f32.mrf.mxu0
        %v2541 = vadd.f32 %v1949, %v2540
        %v2542 = vpop.f32.mrf.mxu0
        %2543 = vdwg.mxu0
        %2544 = vmatprep.subr.bf16.mxu0 0
        %2545 = vmatpush1.bf16.msra.mxu0 %v2262
        %2546 = vmatprep.subr.bf16.mxu0 0
        %2547 = vmatpush1.bf16.msra.mxu0 %v2261
        %2548 = vmatprep.subr.bf16.mxu0 0
        %2549 = vmatpush1.bf16.msra.mxu0 %v2260
        %2550 = vmatprep.subr.bf16.mxu0 0
        %2551 = vmatpush1.bf16.msra.mxu0 %v2259
        %2552 = vmatprep.subr.bf16.mxu0 0
        %2553 = vmatpush1.bf16.msra.mxu0 %v2258
        %2554 = vmatprep.subr.bf16.mxu0 0
        %2555 = vmatpush1.bf16.msra.mxu0 %v2257
        %2556 = vmatprep.subr.bf16.mxu0 0
        %2557 = vmatpush1.bf16.msra.mxu0 %v2256
        %2558 = vmatprep.subr.bf16.mxu0 0
        %2559 = vmatpush1.bf16.msra.mxu0 %v2255
        %2560 = vmatprep.subr.bf16.mxu0 0
        %2561 = vmatpush2.bf16.msra.mxu0 %v2270
        %2562 = vmatprep.subr.bf16.mxu0 0
        %2563 = vmatpush2.bf16.msra.mxu0 %v2269
        %2564 = vmatprep.subr.bf16.mxu0 0
        %2565 = vmatpush2.bf16.msra.mxu0 %v2268
        %2566 = vmatprep.subr.bf16.mxu0 0
        %2567 = vmatpush2.bf16.msra.mxu0 %v2267
        %2568 = vmatprep.subr.bf16.mxu0 0
        %2569 = vmatpush2.bf16.msra.mxu0 %v2266
        %2570 = vmatprep.subr.bf16.mxu0 0
        %2571 = vmatpush2.bf16.msra.mxu0 %v2265
        %2572 = vmatprep.subr.bf16.mxu0 0
        %2573 = vmatpush2.bf16.msra.mxu0 %v2264
        %2574 = vmatprep.subr.bf16.mxu0 0
        %2575 = vmatpush2.bf16.msra.mxu0 %v2263
        %2576 = vmatprep.mubr.bf16.mxu0 %v1749
        %2577 = vmatmul.mubr.bf16.gmra.mxu0 %v1748
        %v2578 = vpop.f32.mrf.mxu0
        %v2579 = vadd.f32 %v2418, %v2578
        %v2580 = vpop.f32.mrf.mxu0
        %v2581 = vpop.f32.mrf.mxu0
        %v2582 = vadd.f32 %v2421, %v2581
        %v2583 = vpop.f32.mrf.mxu0
        %2584 = vmatprep.mubr.bf16.mxu0 %v1752
        %2585 = vmatmul.mubr.bf16.gmra.mxu0 %v1751
        %v2586 = vpop.f32.mrf.mxu0
        %v2587 = vadd.f32 %v2426, %v2586
        %v2588 = vpop.f32.mrf.mxu0
        %v2589 = vpop.f32.mrf.mxu0
        %v2590 = vadd.f32 %v2429, %v2589
        %v2591 = vpop.f32.mrf.mxu0
        %2592 = vmatprep.mubr.bf16.mxu0 %v1755
        %2593 = vmatmul.mubr.bf16.gmra.mxu0 %v1754
        %v2594 = vpop.f32.mrf.mxu0
        %v2595 = vadd.f32 %v2434, %v2594
        %v2596 = vpop.f32.mrf.mxu0
        %v2597 = vpop.f32.mrf.mxu0
        %v2598 = vadd.f32 %v2437, %v2597
        %v2599 = vpop.f32.mrf.mxu0
        %2600 = vmatprep.mubr.bf16.mxu0 %v1758
        %2601 = vmatmul.mubr.bf16.gmra.mxu0 %v1757
        %v2602 = vpop.f32.mrf.mxu0
        %v2603 = vadd.f32 %v2442, %v2602
        %v2604 = vpop.f32.mrf.mxu0
        %v2605 = vpop.f32.mrf.mxu0
        %v2606 = vadd.f32 %v2445, %v2605
        %v2607 = vpop.f32.mrf.mxu0
        %2608 = vmatprep.mubr.bf16.mxu0 %v1761
        %2609 = vmatmul.mubr.bf16.gmra.mxu0 %v1760
        %v2610 = vpop.f32.mrf.mxu0
        %v2611 = vadd.f32 %v2450, %v2610
        %v2612 = vpop.f32.mrf.mxu0
        %v2613 = vpop.f32.mrf.mxu0
        %v2614 = vadd.f32 %v2453, %v2613
        %v2615 = vpop.f32.mrf.mxu0
        %2616 = vmatprep.mubr.bf16.mxu0 %v1764
        %2617 = vmatmul.mubr.bf16.gmra.mxu0 %v1763
        %v2618 = vpop.f32.mrf.mxu0
        %v2619 = vadd.f32 %v2458, %v2618
        %v2620 = vpop.f32.mrf.mxu0
        %v2621 = vpop.f32.mrf.mxu0
        %v2622 = vadd.f32 %v2461, %v2621
        %v2623 = vpop.f32.mrf.mxu0
        %2624 = vmatprep.mubr.bf16.mxu0 %v1767
        %2625 = vmatmul.mubr.bf16.gmra.mxu0 %v1766
        %v2626 = vpop.f32.mrf.mxu0
        %v2627 = vadd.f32 %v2466, %v2626
        %v2628 = vpop.f32.mrf.mxu0
        %v2629 = vpop.f32.mrf.mxu0
        %v2630 = vadd.f32 %v2469, %v2629
        %v2631 = vpop.f32.mrf.mxu0
        %2632 = vmatprep.mubr.bf16.mxu0 %v1770
        %2633 = vmatmul.mubr.bf16.gmra.mxu0 %v1769
        %v2634 = vpop.f32.mrf.mxu0
        %v2635 = vadd.f32 %v2474, %v2634
        %v2636 = vpop.f32.mrf.mxu0
        %v2637 = vpop.f32.mrf.mxu0
        %v2638 = vadd.f32 %v2477, %v2637
        %v2639 = vpop.f32.mrf.mxu0
        %2640 = vmatprep.mubr.bf16.mxu0 %v1773
        %2641 = vmatmul.mubr.bf16.gmra.mxu0 %v1772
        %v2642 = vpop.f32.mrf.mxu0
        %v2643 = vadd.f32 %v2482, %v2642
        %v2644 = vpop.f32.mrf.mxu0
        %v2645 = vpop.f32.mrf.mxu0
        %v2646 = vadd.f32 %v2485, %v2645
        %v2647 = vpop.f32.mrf.mxu0
        %2648 = vmatprep.mubr.bf16.mxu0 %v1776
        %2649 = vmatmul.mubr.bf16.gmra.mxu0 %v1775
        %v2650 = vpop.f32.mrf.mxu0
        %v2651 = vadd.f32 %v2490, %v2650
        %v2652 = vpop.f32.mrf.mxu0
        %v2653 = vpop.f32.mrf.mxu0
        %v2654 = vadd.f32 %v2493, %v2653
        %v2655 = vpop.f32.mrf.mxu0
        %2656 = vmatprep.mubr.bf16.mxu0 %v1779
        %2657 = vmatmul.mubr.bf16.gmra.mxu0 %v1778
        %v2658 = vpop.f32.mrf.mxu0
        %v2659 = vadd.f32 %v2498, %v2658
        %v2660 = vpop.f32.mrf.mxu0
        %v2661 = vpop.f32.mrf.mxu0
        %v2662 = vadd.f32 %v2501, %v2661
        %v2663 = vpop.f32.mrf.mxu0
        %2664 = vmatprep.mubr.bf16.mxu0 %v1782
        %2665 = vmatmul.mubr.bf16.gmra.mxu0 %v1781
        %v2666 = vpop.f32.mrf.mxu0
        %v2667 = vadd.f32 %v2506, %v2666
        %v2668 = vpop.f32.mrf.mxu0
        %v2669 = vpop.f32.mrf.mxu0
        %v2670 = vadd.f32 %v2509, %v2669
        %v2671 = vpop.f32.mrf.mxu0
        %2672 = vmatprep.mubr.bf16.mxu0 %v1785
        %2673 = vmatmul.mubr.bf16.gmra.mxu0 %v1784
        %v2674 = vpop.f32.mrf.mxu0
        %v2675 = vadd.f32 %v2514, %v2674
        %v2676 = vpop.f32.mrf.mxu0
        %v2677 = vpop.f32.mrf.mxu0
        %v2678 = vadd.f32 %v2517, %v2677
        %v2679 = vpop.f32.mrf.mxu0
        %2680 = vmatprep.mubr.bf16.mxu0 %v1788
        %2681 = vmatmul.mubr.bf16.gmra.mxu0 %v1787
        %v2682 = vpop.f32.mrf.mxu0
        %v2683 = vadd.f32 %v2522, %v2682
        %v2684 = vpop.f32.mrf.mxu0
        %v2685 = vpop.f32.mrf.mxu0
        %v2686 = vadd.f32 %v2525, %v2685
        %v2687 = vpop.f32.mrf.mxu0
        %2688 = vmatprep.mubr.bf16.mxu0 %v1791
        %2689 = vmatmul.mubr.bf16.gmra.mxu0 %v1790
        %v2690 = vpop.f32.mrf.mxu0
        %v2691 = vadd.f32 %v2530, %v2690
        %v2692 = vpop.f32.mrf.mxu0
        %v2693 = vpop.f32.mrf.mxu0
        %v2694 = vadd.f32 %v2533, %v2693
        %v2695 = vpop.f32.mrf.mxu0
        %2696 = vmatprep.mubr.bf16.mxu0 %v1794
        %2697 = vmatmul.mubr.bf16.gmra.mxu0 %v1793
        %v2698 = vpop.f32.mrf.mxu0
        %v2699 = vadd.f32 %v2538, %v2698
        %v2700 = vpop.f32.mrf.mxu0
        %v2701 = vpop.f32.mrf.mxu0
        %v2702 = vadd.f32 %v2541, %v2701
        %v2703 = vpop.f32.mrf.mxu0
        %2704 = vdwg.mxu0
        %2705 = vmatprep.subr.bf16.mxu0 0
        %2706 = vmatpush1.bf16.msra.mxu0 %v2278
        %2707 = vmatprep.subr.bf16.mxu0 0
        %2708 = vmatpush1.bf16.msra.mxu0 %v2277
        %2709 = vmatprep.subr.bf16.mxu0 0
        %2710 = vmatpush1.bf16.msra.mxu0 %v2276
        %2711 = vmatprep.subr.bf16.mxu0 0
        %2712 = vmatpush1.bf16.msra.mxu0 %v2275
        %2713 = vmatprep.subr.bf16.mxu0 0
        %2714 = vmatpush1.bf16.msra.mxu0 %v2274
        %2715 = vmatprep.subr.bf16.mxu0 0
        %2716 = vmatpush1.bf16.msra.mxu0 %v2273
        %2717 = vmatprep.subr.bf16.mxu0 0
        %2718 = vmatpush1.bf16.msra.mxu0 %v2272
        %2719 = vmatprep.subr.bf16.mxu0 0
        %2720 = vmatpush1.bf16.msra.mxu0 %v2271
        %2721 = vmatprep.subr.bf16.mxu0 0
        %2722 = vmatpush2.bf16.msra.mxu0 %v2286
        %2723 = vmatprep.subr.bf16.mxu0 0
        %2724 = vmatpush2.bf16.msra.mxu0 %v2285
        %2725 = vmatprep.subr.bf16.mxu0 0
        %2726 = vmatpush2.bf16.msra.mxu0 %v2284
        %2727 = vmatprep.subr.bf16.mxu0 0
        %2728 = vmatpush2.bf16.msra.mxu0 %v2283
        %2729 = vmatprep.subr.bf16.mxu0 0
        %2730 = vmatpush2.bf16.msra.mxu0 %v2282
        %2731 = vmatprep.subr.bf16.mxu0 0
        %2732 = vmatpush2.bf16.msra.mxu0 %v2281
        %2733 = vmatprep.subr.bf16.mxu0 0
        %2734 = vmatpush2.bf16.msra.mxu0 %v2280
        %2735 = vmatprep.subr.bf16.mxu0 0
        %2736 = vmatpush2.bf16.msra.mxu0 %v2279
        %2737 = vmatprep.mubr.bf16.mxu0 %v1751
        %2738 = vmatmul.mubr.bf16.gmra.mxu0 %v1750
        %v2739 = vpop.f32.mrf.mxu0
        %v2740 = vadd.f32 %v2579, %v2739
        %v2741 = vpop.f32.mrf.mxu0
        %v2742 = vpop.f32.mrf.mxu0
        %v2743 = vadd.f32 %v2582, %v2742
        %v2744 = vpop.f32.mrf.mxu0
        %2745 = vmatprep.mubr.bf16.mxu0 %v1754
        %2746 = vmatmul.mubr.bf16.gmra.mxu0 %v1753
        %v2747 = vpop.f32.mrf.mxu0
        %v2748 = vadd.f32 %v2587, %v2747
        %v2749 = vpop.f32.mrf.mxu0
        %v2750 = vpop.f32.mrf.mxu0
        %v2751 = vadd.f32 %v2590, %v2750
        %v2752 = vpop.f32.mrf.mxu0
        %2753 = vmatprep.mubr.bf16.mxu0 %v1757
        %2754 = vmatmul.mubr.bf16.gmra.mxu0 %v1756
        %v2755 = vpop.f32.mrf.mxu0
        %v2756 = vadd.f32 %v2595, %v2755
        %v2757 = vpop.f32.mrf.mxu0
        %v2758 = vpop.f32.mrf.mxu0
        %v2759 = vadd.f32 %v2598, %v2758
        %v2760 = vpop.f32.mrf.mxu0
        %2761 = vmatprep.mubr.bf16.mxu0 %v1760
        %2762 = vmatmul.mubr.bf16.gmra.mxu0 %v1759
        %v2763 = vpop.f32.mrf.mxu0
        %v2764 = vadd.f32 %v2603, %v2763
        %v2765 = vpop.f32.mrf.mxu0
        %v2766 = vpop.f32.mrf.mxu0
        %v2767 = vadd.f32 %v2606, %v2766
        %v2768 = vpop.f32.mrf.mxu0
        %2769 = vmatprep.mubr.bf16.mxu0 %v1763
        %2770 = vmatmul.mubr.bf16.gmra.mxu0 %v1762
        %v2771 = vpop.f32.mrf.mxu0
        %v2772 = vadd.f32 %v2611, %v2771
        %v2773 = vpop.f32.mrf.mxu0
        %v2774 = vpop.f32.mrf.mxu0
        %v2775 = vadd.f32 %v2614, %v2774
        %v2776 = vpop.f32.mrf.mxu0
        %2777 = vmatprep.mubr.bf16.mxu0 %v1766
        %2778 = vmatmul.mubr.bf16.gmra.mxu0 %v1765
        %v2779 = vpop.f32.mrf.mxu0
        %v2780 = vadd.f32 %v2619, %v2779
        %v2781 = vpop.f32.mrf.mxu0
        %v2782 = vpop.f32.mrf.mxu0
        %v2783 = vadd.f32 %v2622, %v2782
        %v2784 = vpop.f32.mrf.mxu0
        %2785 = vmatprep.mubr.bf16.mxu0 %v1769
        %2786 = vmatmul.mubr.bf16.gmra.mxu0 %v1768
        %v2787 = vpop.f32.mrf.mxu0
        %v2788 = vadd.f32 %v2627, %v2787
        %v2789 = vpop.f32.mrf.mxu0
        %v2790 = vpop.f32.mrf.mxu0
        %v2791 = vadd.f32 %v2630, %v2790
        %v2792 = vpop.f32.mrf.mxu0
        %2793 = vmatprep.mubr.bf16.mxu0 %v1772
        %2794 = vmatmul.mubr.bf16.gmra.mxu0 %v1771
        %v2795 = vpop.f32.mrf.mxu0
        %v2796 = vadd.f32 %v2635, %v2795
        %v2797 = vpop.f32.mrf.mxu0
        %v2798 = vpop.f32.mrf.mxu0
        %v2799 = vadd.f32 %v2638, %v2798
        %v2800 = vpop.f32.mrf.mxu0
        %2801 = vmatprep.mubr.bf16.mxu0 %v1775
        %2802 = vmatmul.mubr.bf16.gmra.mxu0 %v1774
        %v2803 = vpop.f32.mrf.mxu0
        %v2804 = vadd.f32 %v2643, %v2803
        %v2805 = vpop.f32.mrf.mxu0
        %v2806 = vpop.f32.mrf.mxu0
        %v2807 = vadd.f32 %v2646, %v2806
        %v2808 = vpop.f32.mrf.mxu0
        %2809 = vmatprep.mubr.bf16.mxu0 %v1778
        %2810 = vmatmul.mubr.bf16.gmra.mxu0 %v1777
        %v2811 = vpop.f32.mrf.mxu0
        %v2812 = vadd.f32 %v2651, %v2811
        %v2813 = vpop.f32.mrf.mxu0
        %v2814 = vpop.f32.mrf.mxu0
        %v2815 = vadd.f32 %v2654, %v2814
        %v2816 = vpop.f32.mrf.mxu0
        %2817 = vmatprep.mubr.bf16.mxu0 %v1781
        %2818 = vmatmul.mubr.bf16.gmra.mxu0 %v1780
        %v2819 = vpop.f32.mrf.mxu0
        %v2820 = vadd.f32 %v2659, %v2819
        %v2821 = vpop.f32.mrf.mxu0
        %v2822 = vpop.f32.mrf.mxu0
        %v2823 = vadd.f32 %v2662, %v2822
        %v2824 = vpop.f32.mrf.mxu0
        %2825 = vmatprep.mubr.bf16.mxu0 %v1784
        %2826 = vmatmul.mubr.bf16.gmra.mxu0 %v1783
        %v2827 = vpop.f32.mrf.mxu0
        %v2828 = vadd.f32 %v2667, %v2827
        %v2829 = vpop.f32.mrf.mxu0
        %v2830 = vpop.f32.mrf.mxu0
        %v2831 = vadd.f32 %v2670, %v2830
        %v2832 = vpop.f32.mrf.mxu0
        %2833 = vmatprep.mubr.bf16.mxu0 %v1787
        %2834 = vmatmul.mubr.bf16.gmra.mxu0 %v1786
        %v2835 = vpop.f32.mrf.mxu0
        %v2836 = vadd.f32 %v2675, %v2835
        %v2837 = vpop.f32.mrf.mxu0
        %v2838 = vpop.f32.mrf.mxu0
        %v2839 = vadd.f32 %v2678, %v2838
        %v2840 = vpop.f32.mrf.mxu0
        %2841 = vmatprep.mubr.bf16.mxu0 %v1790
        %2842 = vmatmul.mubr.bf16.gmra.mxu0 %v1789
        %v2843 = vpop.f32.mrf.mxu0
        %v2844 = vadd.f32 %v2683, %v2843
        %v2845 = vpop.f32.mrf.mxu0
        %v2846 = vpop.f32.mrf.mxu0
        %v2847 = vadd.f32 %v2686, %v2846
        %v2848 = vpop.f32.mrf.mxu0
        %2849 = vmatprep.mubr.bf16.mxu0 %v1793
        %2850 = vmatmul.mubr.bf16.gmra.mxu0 %v1792
        %v2851 = vpop.f32.mrf.mxu0
        %v2852 = vadd.f32 %v2691, %v2851
        %v2853 = vpop.f32.mrf.mxu0
        %v2854 = vpop.f32.mrf.mxu0
        %v2855 = vadd.f32 %v2694, %v2854
        %v2856 = vpop.f32.mrf.mxu0
        %2857 = vmatprep.mubr.bf16.mxu0 %v1796
        %2858 = vmatmul.mubr.bf16.gmra.mxu0 %v1795
        %v2859 = vpop.f32.mrf.mxu0
        %v2860 = vadd.f32 %v2699, %v2859
        %v2861 = vpop.f32.mrf.mxu0
        %v2862 = vpop.f32.mrf.mxu0
        %v2863 = vadd.f32 %v2702, %v2862
        %v2864 = vpop.f32.mrf.mxu0
        %2865 = vdwg.mxu0
        %2866 = vmatprep.subr.bf16.mxu0 0
        %2867 = vmatpush1.bf16.msra.mxu0 %v2294
        %2868 = vmatprep.subr.bf16.mxu0 0
        %2869 = vmatpush1.bf16.msra.mxu0 %v2293
        %2870 = vmatprep.subr.bf16.mxu0 0
        %2871 = vmatpush1.bf16.msra.mxu0 %v2292
        %2872 = vmatprep.subr.bf16.mxu0 0
        %2873 = vmatpush1.bf16.msra.mxu0 %v2291
        %2874 = vmatprep.subr.bf16.mxu0 0
        %2875 = vmatpush1.bf16.msra.mxu0 %v2290
        %2876 = vmatprep.subr.bf16.mxu0 0
        %2877 = vmatpush1.bf16.msra.mxu0 %v2289
        %2878 = vmatprep.subr.bf16.mxu0 0
        %2879 = vmatpush1.bf16.msra.mxu0 %v2288
        %2880 = vmatprep.subr.bf16.mxu0 0
        %2881 = vmatpush1.bf16.msra.mxu0 %v2287
        %2882 = vmatprep.subr.bf16.mxu0 0
        %2883 = vmatpush2.bf16.msra.mxu0 %v2302
        %2884 = vmatprep.subr.bf16.mxu0 0
        %2885 = vmatpush2.bf16.msra.mxu0 %v2301
        %2886 = vmatprep.subr.bf16.mxu0 0
        %2887 = vmatpush2.bf16.msra.mxu0 %v2300
        %2888 = vmatprep.subr.bf16.mxu0 0
        %2889 = vmatpush2.bf16.msra.mxu0 %v2299
        %2890 = vmatprep.subr.bf16.mxu0 0
        %2891 = vmatpush2.bf16.msra.mxu0 %v2298
        %2892 = vmatprep.subr.bf16.mxu0 0
        %2893 = vmatpush2.bf16.msra.mxu0 %v2297
        %2894 = vmatprep.subr.bf16.mxu0 0
        %2895 = vmatpush2.bf16.msra.mxu0 %v2296
        %2896 = vmatprep.subr.bf16.mxu0 0
        %2897 = vmatpush2.bf16.msra.mxu0 %v2295
        %2898 = vmatprep.mubr.bf16.mxu0 %v1753
        %2899 = vmatmul.mubr.bf16.gmra.mxu0 %v1752
        %v2900 = vpop.f32.mrf.mxu0
        %v2901 = vadd.f32 %v2740, %v2900
        %v2902 = vpop.f32.mrf.mxu0
        %v2903 = vpop.f32.mrf.mxu0
        %v2904 = vadd.f32 %v2743, %v2903
        %v2905 = vpop.f32.mrf.mxu0
        %2906 = vmatprep.mubr.bf16.mxu0 %v1756
        %2907 = vmatmul.mubr.bf16.gmra.mxu0 %v1755
        %v2908 = vpop.f32.mrf.mxu0
        %v2909 = vadd.f32 %v2748, %v2908
        %v2910 = vpop.f32.mrf.mxu0
        %v2911 = vpop.f32.mrf.mxu0
        %v2912 = vadd.f32 %v2751, %v2911
        %v2913 = vpop.f32.mrf.mxu0
        %2914 = vmatprep.mubr.bf16.mxu0 %v1759
        %2915 = vmatmul.mubr.bf16.gmra.mxu0 %v1758
        %v2916 = vpop.f32.mrf.mxu0
        %v2917 = vadd.f32 %v2756, %v2916
        %v2918 = vpop.f32.mrf.mxu0
        %v2919 = vpop.f32.mrf.mxu0
        %v2920 = vadd.f32 %v2759, %v2919
        %v2921 = vpop.f32.mrf.mxu0
        %2922 = vmatprep.mubr.bf16.mxu0 %v1762
        %2923 = vmatmul.mubr.bf16.gmra.mxu0 %v1761
        %v2924 = vpop.f32.mrf.mxu0
        %v2925 = vadd.f32 %v2764, %v2924
        %v2926 = vpop.f32.mrf.mxu0
        %v2927 = vpop.f32.mrf.mxu0
        %v2928 = vadd.f32 %v2767, %v2927
        %v2929 = vpop.f32.mrf.mxu0
        %2930 = vmatprep.mubr.bf16.mxu0 %v1765
        %2931 = vmatmul.mubr.bf16.gmra.mxu0 %v1764
        %v2932 = vpop.f32.mrf.mxu0
        %v2933 = vadd.f32 %v2772, %v2932
        %v2934 = vpop.f32.mrf.mxu0
        %v2935 = vpop.f32.mrf.mxu0
        %v2936 = vadd.f32 %v2775, %v2935
        %v2937 = vpop.f32.mrf.mxu0
        %2938 = vmatprep.mubr.bf16.mxu0 %v1768
        %2939 = vmatmul.mubr.bf16.gmra.mxu0 %v1767
        %v2940 = vpop.f32.mrf.mxu0
        %v2941 = vadd.f32 %v2780, %v2940
        %v2942 = vpop.f32.mrf.mxu0
        %v2943 = vpop.f32.mrf.mxu0
        %v2944 = vadd.f32 %v2783, %v2943
        %v2945 = vpop.f32.mrf.mxu0
        %2946 = vmatprep.mubr.bf16.mxu0 %v1771
        %2947 = vmatmul.mubr.bf16.gmra.mxu0 %v1770
        %v2948 = vpop.f32.mrf.mxu0
        %v2949 = vadd.f32 %v2788, %v2948
        %v2950 = vpop.f32.mrf.mxu0
        %v2951 = vpop.f32.mrf.mxu0
        %v2952 = vadd.f32 %v2791, %v2951
        %v2953 = vpop.f32.mrf.mxu0
        %2954 = vmatprep.mubr.bf16.mxu0 %v1774
        %2955 = vmatmul.mubr.bf16.gmra.mxu0 %v1773
        %v2956 = vpop.f32.mrf.mxu0
        %v2957 = vadd.f32 %v2796, %v2956
        %v2958 = vpop.f32.mrf.mxu0
        %v2959 = vpop.f32.mrf.mxu0
        %v2960 = vadd.f32 %v2799, %v2959
        %v2961 = vpop.f32.mrf.mxu0
        %2962 = vmatprep.mubr.bf16.mxu0 %v1777
        %2963 = vmatmul.mubr.bf16.gmra.mxu0 %v1776
        %v2964 = vpop.f32.mrf.mxu0
        %v2965 = vadd.f32 %v2804, %v2964
        %v2966 = vpop.f32.mrf.mxu0
        %v2967 = vpop.f32.mrf.mxu0
        %v2968 = vadd.f32 %v2807, %v2967
        %v2969 = vpop.f32.mrf.mxu0
        %2970 = vmatprep.mubr.bf16.mxu0 %v1780
        %2971 = vmatmul.mubr.bf16.gmra.mxu0 %v1779
        %v2972 = vpop.f32.mrf.mxu0
        %v2973 = vadd.f32 %v2812, %v2972
        %v2974 = vpop.f32.mrf.mxu0
        %v2975 = vpop.f32.mrf.mxu0
        %v2976 = vadd.f32 %v2815, %v2975
        %v2977 = vpop.f32.mrf.mxu0
        %2978 = vmatprep.mubr.bf16.mxu0 %v1783
        %2979 = vmatmul.mubr.bf16.gmra.mxu0 %v1782
        %v2980 = vpop.f32.mrf.mxu0
        %v2981 = vadd.f32 %v2820, %v2980
        %v2982 = vpop.f32.mrf.mxu0
        %v2983 = vpop.f32.mrf.mxu0
        %v2984 = vadd.f32 %v2823, %v2983
        %v2985 = vpop.f32.mrf.mxu0
        %2986 = vmatprep.mubr.bf16.mxu0 %v1786
        %2987 = vmatmul.mubr.bf16.gmra.mxu0 %v1785
        %v2988 = vpop.f32.mrf.mxu0
        %v2989 = vadd.f32 %v2828, %v2988
        %v2990 = vpop.f32.mrf.mxu0
        %v2991 = vpop.f32.mrf.mxu0
        %v2992 = vadd.f32 %v2831, %v2991
        %v2993 = vpop.f32.mrf.mxu0
        %2994 = vmatprep.mubr.bf16.mxu0 %v1789
        %2995 = vmatmul.mubr.bf16.gmra.mxu0 %v1788
        %v2996 = vpop.f32.mrf.mxu0
        %v2997 = vadd.f32 %v2836, %v2996
        %v2998 = vpop.f32.mrf.mxu0
        %v2999 = vpop.f32.mrf.mxu0
        %v3000 = vadd.f32 %v2839, %v2999
        %v3001 = vpop.f32.mrf.mxu0
        %3002 = vmatprep.mubr.bf16.mxu0 %v1792
        %3003 = vmatmul.mubr.bf16.gmra.mxu0 %v1791
        %v3004 = vpop.f32.mrf.mxu0
        %v3005 = vadd.f32 %v2844, %v3004
        %v3006 = vpop.f32.mrf.mxu0
        %v3007 = vpop.f32.mrf.mxu0
        %v3008 = vadd.f32 %v2847, %v3007
        %v3009 = vpop.f32.mrf.mxu0
        %3010 = vmatprep.mubr.bf16.mxu0 %v1795
        %3011 = vmatmul.mubr.bf16.gmra.mxu0 %v1794
        %v3012 = vpop.f32.mrf.mxu0
        %v3013 = vadd.f32 %v2852, %v3012
        %v3014 = vpop.f32.mrf.mxu0
        %v3015 = vpop.f32.mrf.mxu0
        %v3016 = vadd.f32 %v2855, %v3015
        %v3017 = vpop.f32.mrf.mxu0
        %3018 = vmatprep.mubr.bf16.mxu0 %v1798
        %3019 = vmatmul.mubr.bf16.gmra.mxu0 %v1797
        %v3020 = vpop.f32.mrf.mxu0
        %v3021 = vadd.f32 %v2860, %v3020
        %v3022 = vpop.f32.mrf.mxu0
        %v3023 = vpop.f32.mrf.mxu0
        %v3024 = vadd.f32 %v2863, %v3023
        %v3025 = vpop.f32.mrf.mxu0
        %3026 = vdwg.mxu0
        %3027 = vmatprep.subr.bf16.mxu0 0
        %3028 = vmatpush1.bf16.msra.mxu0 %v2310
        %3029 = vmatprep.subr.bf16.mxu0 0
        %3030 = vmatpush1.bf16.msra.mxu0 %v2309
        %3031 = vmatprep.subr.bf16.mxu0 0
        %3032 = vmatpush1.bf16.msra.mxu0 %v2308
        %3033 = vmatprep.subr.bf16.mxu0 0
        %3034 = vmatpush1.bf16.msra.mxu0 %v2307
        %3035 = vmatprep.subr.bf16.mxu0 0
        %3036 = vmatpush1.bf16.msra.mxu0 %v2306
        %3037 = vmatprep.subr.bf16.mxu0 0
        %3038 = vmatpush1.bf16.msra.mxu0 %v2305
        %3039 = vmatprep.subr.bf16.mxu0 0
        %3040 = vmatpush1.bf16.msra.mxu0 %v2304
        %3041 = vmatprep.subr.bf16.mxu0 0
        %3042 = vmatpush1.bf16.msra.mxu0 %v2303
        %3043 = vmatprep.subr.bf16.mxu0 0
        %3044 = vmatpush2.bf16.msra.mxu0 0
        %3045 = vmatprep.subr.bf16.mxu0 0
        %3046 = vmatpush2.bf16.msra.mxu0 0
        %3047 = vmatprep.subr.bf16.mxu0 0
        %3048 = vmatpush2.bf16.msra.mxu0 0
        %3049 = vmatprep.subr.bf16.mxu0 0
        %3050 = vmatpush2.bf16.msra.mxu0 0
        %3051 = vmatprep.subr.bf16.mxu0 0
        %3052 = vmatpush2.bf16.msra.mxu0 0
        %3053 = vmatprep.subr.bf16.mxu0 0
        %3054 = vmatpush2.bf16.msra.mxu0 0
        %3055 = vmatprep.subr.bf16.mxu0 0
        %3056 = vmatpush2.bf16.msra.mxu0 0
        %3057 = vmatprep.subr.bf16.mxu0 0
        %3058 = vmatpush2.bf16.msra.mxu0 0
        %3059 = vmatprep.mubr.bf16.mxu0 0
        %3060 = vmatmul.mubr.bf16.gmra.mxu0 %v1754
        %v3061 = vpop.f32.mrf.mxu0
        %v3062 = vadd.f32 %v2901, %v3061
        %v3063 = vpop.f32.mrf.mxu0
        %v3064 = vpop.f32.mrf.mxu0
        %v3065 = vadd.f32 %v2904, %v3064
        %v3066 = vpop.f32.mrf.mxu0
        %3067 = vmatprep.mubr.bf16.mxu0 0
        %3068 = vmatmul.mubr.bf16.gmra.mxu0 %v1757
        %v3069 = vpop.f32.mrf.mxu0
        %v3070 = vadd.f32 %v2909, %v3069
        %v3071 = vpop.f32.mrf.mxu0
        %v3072 = vpop.f32.mrf.mxu0
        %v3073 = vadd.f32 %v2912, %v3072
        %v3074 = vpop.f32.mrf.mxu0
        %3075 = vmatprep.mubr.bf16.mxu0 0
        %3076 = vmatmul.mubr.bf16.gmra.mxu0 %v1760
        %v3077 = vpop.f32.mrf.mxu0
        %v3078 = vadd.f32 %v2917, %v3077
        %v3079 = vpop.f32.mrf.mxu0
        %v3080 = vpop.f32.mrf.mxu0
        %v3081 = vadd.f32 %v2920, %v3080
        %v3082 = vpop.f32.mrf.mxu0
        %3083 = vmatprep.mubr.bf16.mxu0 0
        %3084 = vmatmul.mubr.bf16.gmra.mxu0 %v1763
        %v3085 = vpop.f32.mrf.mxu0
        %v3086 = vadd.f32 %v2925, %v3085
        %v3087 = vpop.f32.mrf.mxu0
        %v3088 = vpop.f32.mrf.mxu0
        %v3089 = vadd.f32 %v2928, %v3088
        %v3090 = vpop.f32.mrf.mxu0
        %3091 = vmatprep.mubr.bf16.mxu0 0
        %3092 = vmatmul.mubr.bf16.gmra.mxu0 %v1766
        %v3093 = vpop.f32.mrf.mxu0
        %v3094 = vadd.f32 %v2933, %v3093
        %v3095 = vpop.f32.mrf.mxu0
        %v3096 = vpop.f32.mrf.mxu0
        %v3097 = vadd.f32 %v2936, %v3096
        %v3098 = vpop.f32.mrf.mxu0
        %3099 = vmatprep.mubr.bf16.mxu0 0
        %3100 = vmatmul.mubr.bf16.gmra.mxu0 %v1769
        %v3101 = vpop.f32.mrf.mxu0
        %v3102 = vadd.f32 %v2941, %v3101
        %v3103 = vpop.f32.mrf.mxu0
        %v3104 = vpop.f32.mrf.mxu0
        %v3105 = vadd.f32 %v2944, %v3104
        %v3106 = vpop.f32.mrf.mxu0
        %3107 = vmatprep.mubr.bf16.mxu0 0
        %3108 = vmatmul.mubr.bf16.gmra.mxu0 %v1772
        %v3109 = vpop.f32.mrf.mxu0
        %v3110 = vadd.f32 %v2949, %v3109
        %v3111 = vpop.f32.mrf.mxu0
        %v3112 = vpop.f32.mrf.mxu0
        %v3113 = vadd.f32 %v2952, %v3112
        %v3114 = vpop.f32.mrf.mxu0
        %3115 = vmatprep.mubr.bf16.mxu0 0
        %3116 = vmatmul.mubr.bf16.gmra.mxu0 %v1775
        %v3117 = vpop.f32.mrf.mxu0
        %v3118 = vadd.f32 %v2957, %v3117
        %v3119 = vpop.f32.mrf.mxu0
        %v3120 = vpop.f32.mrf.mxu0
        %v3121 = vadd.f32 %v2960, %v3120
        %v3122 = vpop.f32.mrf.mxu0
        %3123 = vmatprep.mubr.bf16.mxu0 0
        %3124 = vmatmul.mubr.bf16.gmra.mxu0 %v1778
        %v3125 = vpop.f32.mrf.mxu0
        %v3126 = vadd.f32 %v2965, %v3125
        %v3127 = vpop.f32.mrf.mxu0
        %v3128 = vpop.f32.mrf.mxu0
        %v3129 = vadd.f32 %v2968, %v3128
        %v3130 = vpop.f32.mrf.mxu0
        %3131 = vmatprep.mubr.bf16.mxu0 0
        %3132 = vmatmul.mubr.bf16.gmra.mxu0 %v1781
        %v3133 = vpop.f32.mrf.mxu0
        %v3134 = vadd.f32 %v2973, %v3133
        %v3135 = vpop.f32.mrf.mxu0
        %v3136 = vpop.f32.mrf.mxu0
        %v3137 = vadd.f32 %v2976, %v3136
        %v3138 = vpop.f32.mrf.mxu0
        %3139 = vmatprep.mubr.bf16.mxu0 0
        %3140 = vmatmul.mubr.bf16.gmra.mxu0 %v1784
        %v3141 = vpop.f32.mrf.mxu0
        %v3142 = vadd.f32 %v2981, %v3141
        %v3143 = vpop.f32.mrf.mxu0
        %v3144 = vpop.f32.mrf.mxu0
        %v3145 = vadd.f32 %v2984, %v3144
        %v3146 = vpop.f32.mrf.mxu0
        %3147 = vmatprep.mubr.bf16.mxu0 0
        %3148 = vmatmul.mubr.bf16.gmra.mxu0 %v1787
        %v3149 = vpop.f32.mrf.mxu0
        %v3150 = vadd.f32 %v2989, %v3149
        %v3151 = vpop.f32.mrf.mxu0
        %v3152 = vpop.f32.mrf.mxu0
        %v3153 = vadd.f32 %v2992, %v3152
        %v3154 = vpop.f32.mrf.mxu0
        %3155 = vmatprep.mubr.bf16.mxu0 0
        %3156 = vmatmul.mubr.bf16.gmra.mxu0 %v1790
        %v3157 = vpop.f32.mrf.mxu0
        %v3158 = vadd.f32 %v2997, %v3157
        %v3159 = vpop.f32.mrf.mxu0
        %v3160 = vpop.f32.mrf.mxu0
        %v3161 = vadd.f32 %v3000, %v3160
        %v3162 = vpop.f32.mrf.mxu0
        %3163 = vmatprep.mubr.bf16.mxu0 0
        %3164 = vmatmul.mubr.bf16.gmra.mxu0 %v1793
        %v3165 = vpop.f32.mrf.mxu0
        %v3166 = vadd.f32 %v3005, %v3165
        %v3167 = vpop.f32.mrf.mxu0
        %v3168 = vpop.f32.mrf.mxu0
        %v3169 = vadd.f32 %v3008, %v3168
        %v3170 = vpop.f32.mrf.mxu0
        %3171 = vmatprep.mubr.bf16.mxu0 0
        %3172 = vmatmul.mubr.bf16.gmra.mxu0 %v1796
        %v3173 = vpop.f32.mrf.mxu0
        %v3174 = vadd.f32 %v3013, %v3173
        %v3175 = vpop.f32.mrf.mxu0
        %v3176 = vpop.f32.mrf.mxu0
        %v3177 = vadd.f32 %v3016, %v3176
        %v3178 = vpop.f32.mrf.mxu0
        %3179 = vmatprep.mubr.bf16.mxu0 0
        %3180 = vmatmul.mubr.bf16.gmra.mxu0 %v1799
        %v3181 = vpop.f32.mrf.mxu0
        %v3182 = vadd.f32 %v3021, %v3181
        %v3183 = vpop.f32.mrf.mxu0
        %v3184 = vpop.f32.mrf.mxu0
        %v3185 = vadd.f32 %v3024, %v3184
        %v3186 = vpop.f32.mrf.mxu0
        %3187 = vdwg.mxu0
        %v3188 = vmax.f32 %v3062, 0.0
        %v3189 = vmax.f32 %v3065, 0.0
        %v3190 = vmax.f32 %v3070, 0.0
        %v3191 = vmax.f32 %v3073, 0.0
        %v3192 = vmax.f32 %v3078, 0.0
        %v3193 = vmax.f32 %v3081, 0.0
        %v3194 = vmax.f32 %v3086, 0.0
        %v3195 = vmax.f32 %v3089, 0.0
        %v3196 = vmax.f32 %v3094, 0.0
        %v3197 = vmax.f32 %v3097, 0.0
        %v3198 = vmax.f32 %v3102, 0.0
        %v3199 = vmax.f32 %v3105, 0.0
        %v3200 = vmax.f32 %v3110, 0.0
        %v3201 = vmax.f32 %v3113, 0.0
        %v3202 = vmax.f32 %v3118, 0.0
        %v3203 = vmax.f32 %v3121, 0.0
        %v3204 = vmax.f32 %v3126, 0.0
        %v3205 = vmax.f32 %v3129, 0.0
        %v3206 = vmax.f32 %v3134, 0.0
        %v3207 = vmax.f32 %v3137, 0.0
        %v3208 = vmax.f32 %v3142, 0.0
        %v3209 = vmax.f32 %v3145, 0.0
        %v3210 = vmax.f32 %v3150, 0.0
        %v3211 = vmax.f32 %v3153, 0.0
        %v3212 = vmax.f32 %v3158, 0.0
        %v3213 = vmax.f32 %v3161, 0.0
        %v3214 = vmax.f32 %v3166, 0.0
        %v3215 = vmax.f32 %v3169, 0.0
        %v3216 = vmax.f32 %v3174, 0.0
        %v3217 = vmax.f32 %v3177, 0.0
        %v3218 = vmax.f32 %v3182, 0.0
        %v3219 = vmax.f32 %v3185, 0.0
        %v3220 = vpack.c.bf16 %v3189, %v3188
        %v3221 = vpack.c.bf16 %v3191, %v3190
        %v3222 = vpack.c.bf16 %v3193, %v3192
        %v3223 = vpack.c.bf16 %v3195, %v3194
        %v3224 = vpack.c.bf16 %v3197, %v3196
        %v3225 = vpack.c.bf16 %v3199, %v3198
        %v3226 = vpack.c.bf16 %v3201, %v3200
        %v3227 = vpack.c.bf16 %v3203, %v3202
        %v3228 = vpack.c.bf16 %v3205, %v3204
        %v3229 = vpack.c.bf16 %v3207, %v3206
        %v3230 = vpack.c.bf16 %v3209, %v3208
        %v3231 = vpack.c.bf16 %v3211, %v3210
        %v3232 = vpack.c.bf16 %v3213, %v3212
        %v3233 = vpack.c.bf16 %v3215, %v3214
        %v3234 = vpack.c.bf16 %v3217, %v3216
        %v3235 = vpack.c.bf16 %v3219, %v3218
        %v3332 = vrot.slane %v466, 1
        %v3333 = vrot.slane %v468, 1
        %v3334 = vsel %vm1492, %v3332, %v3333
        %v3335 = vrot.slane %v467, 1
        %v3336 = vrot.slane %v469, 1
        %v3337 = vsel %vm1492, %v3335, %v3336
        %v3338 = vrot.slane %v470, 1
        %v3339 = vsel %vm1492, %v3333, %v3338
        %v3340 = vrot.slane %v471, 1
        %v3341 = vsel %vm1492, %v3336, %v3340
        %v3342 = vrot.slane %v472, 1
        %v3343 = vrot.slane %v474, 1
        %v3344 = vsel %vm1492, %v3342, %v3343
        %v3345 = vrot.slane %v473, 1
        %v3346 = vrot.slane %v475, 1
        %v3347 = vsel %vm1492, %v3345, %v3346
        %v3348 = vrot.slane %v476, 1
        %v3349 = vsel %vm1492, %v3343, %v3348
        %v3350 = vrot.slane %v477, 1
        %v3351 = vsel %vm1492, %v3346, %v3350
        %v3352 = vrot.slane %v478, 1
        %v3353 = vrot.slane %v480, 1
        %v3354 = vsel %vm1492, %v3352, %v3353
        %v3355 = vrot.slane %v479, 1
        %v3356 = vrot.slane %v481, 1
        %v3357 = vsel %vm1492, %v3355, %v3356
        %v3358 = vrot.slane %v482, 1
        %v3359 = vsel %vm1492, %v3353, %v3358
        %v3360 = vrot.slane %v483, 1
        %v3361 = vsel %vm1492, %v3356, %v3360
        %v3362 = vrot.slane %v484, 1
        %v3363 = vrot.slane %v486, 1
        %v3364 = vsel %vm1492, %v3362, %v3363
        %v3365 = vrot.slane %v485, 1
        %v3366 = vrot.slane %v487, 1
        %v3367 = vsel %vm1492, %v3365, %v3366
        %v3368 = vrot.slane %v488, 1
        %v3369 = vsel %vm1492, %v3363, %v3368
        %v3370 = vrot.slane %v489, 1
        %v3371 = vsel %vm1492, %v3366, %v3370
        %v3372 = vrot.slane %v490, 1
        %v3373 = vrot.slane %v492, 1
        %v3374 = vsel %vm1492, %v3372, %v3373
        %v3375 = vrot.slane %v491, 1
        %v3376 = vrot.slane %v493, 1
        %v3377 = vsel %vm1492, %v3375, %v3376
        %v3378 = vrot.slane %v494, 1
        %v3379 = vsel %vm1492, %v3373, %v3378
        %v3380 = vrot.slane %v495, 1
        %v3381 = vsel %vm1492, %v3376, %v3380
        %v3382 = vrot.slane %v496, 1
        %v3383 = vrot.slane %v498, 1
        %v3384 = vsel %vm1492, %v3382, %v3383
        %v3385 = vrot.slane %v497, 1
        %v3386 = vrot.slane %v499, 1
        %v3387 = vsel %vm1492, %v3385, %v3386
        %v3388 = vrot.slane %v500, 1
        %v3389 = vsel %vm1492, %v3383, %v3388
        %v3390 = vrot.slane %v501, 1
        %v3391 = vsel %vm1492, %v3386, %v3390
        %v3392 = vrot.slane %v502, 1
        %v3393 = vrot.slane %v504, 1
        %v3394 = vsel %vm1492, %v3392, %v3393
        %v3395 = vrot.slane %v503, 1
        %v3396 = vrot.slane %v505, 1
        %v3397 = vsel %vm1492, %v3395, %v3396
        %v3398 = vrot.slane %v506, 1
        %v3399 = vsel %vm1492, %v3393, %v3398
        %v3400 = vrot.slane %v507, 1
        %v3401 = vsel %vm1492, %v3396, %v3400
        %v3402 = vrot.slane %v508, 1
        %v3403 = vrot.slane %v510, 1
        %v3404 = vsel %vm1492, %v3402, %v3403
        %v3405 = vrot.slane %v509, 1
        %v3406 = vrot.slane %v511, 1
        %v3407 = vsel %vm1492, %v3405, %v3406
        %v3408 = vrot.slane %v512, 1
        %v3409 = vsel %vm1492, %v3403, %v3408
        %v3410 = vrot.slane %v513, 1
        %v3411 = vsel %vm1492, %v3406, %v3410
        %v3412 = vrot.slane %v514, 1
        %v3413 = vrot.slane %v516, 1
        %v3414 = vsel %vm1492, %v3412, %v3413
        %v3415 = vrot.slane %v515, 1
        %v3416 = vrot.slane %v517, 1
        %v3417 = vsel %vm1492, %v3415, %v3416
        %v3418 = vrot.slane %v518, 1
        %v3419 = vsel %vm1492, %v3413, %v3418
        %v3420 = vrot.slane %v519, 1
        %v3421 = vsel %vm1492, %v3416, %v3420
        %v3422 = vrot.slane %v520, 1
        %v3423 = vrot.slane %v522, 1
        %v3424 = vsel %vm1492, %v3422, %v3423
        %v3425 = vrot.slane %v521, 1
        %v3426 = vrot.slane %v523, 1
        %v3427 = vsel %vm1492, %v3425, %v3426
        %v3428 = vrot.slane %v524, 1
        %v3429 = vsel %vm1492, %v3423, %v3428
        %v3430 = vrot.slane %v525, 1
        %v3431 = vsel %vm1492, %v3426, %v3430
        %v3432 = vrot.slane %v526, 1
        %v3433 = vrot.slane %v528, 1
        %v3434 = vsel %vm1492, %v3432, %v3433
        %v3435 = vrot.slane %v527, 1
        %v3436 = vrot.slane %v529, 1
        %v3437 = vsel %vm1492, %v3435, %v3436
        %v3438 = vrot.slane %v530, 1
        %v3439 = vsel %vm1492, %v3433, %v3438
        %v3440 = vrot.slane %v531, 1
        %v3441 = vsel %vm1492, %v3436, %v3440
        %v3442 = vrot.slane %v532, 1
        %v3443 = vrot.slane %v534, 1
        %v3444 = vsel %vm1492, %v3442, %v3443
        %v3445 = vrot.slane %v533, 1
        %v3446 = vrot.slane %v535, 1
        %v3447 = vsel %vm1492, %v3445, %v3446
        %v3448 = vrot.slane %v536, 1
        %v3449 = vsel %vm1492, %v3443, %v3448
        %v3450 = vrot.slane %v537, 1
        %v3451 = vsel %vm1492, %v3446, %v3450
        %v3452 = vrot.slane %v538, 1
        %v3453 = vrot.slane %v540, 1
        %v3454 = vsel %vm1492, %v3452, %v3453
        %v3455 = vrot.slane %v539, 1
        %v3456 = vrot.slane %v541, 1
        %v3457 = vsel %vm1492, %v3455, %v3456
        %v3458 = vrot.slane %v542, 1
        %v3459 = vsel %vm1492, %v3453, %v3458
        %v3460 = vrot.slane %v543, 1
        %v3461 = vsel %vm1492, %v3456, %v3460
        %v3462 = vrot.slane %v544, 1
        %v3463 = vrot.slane %v546, 1
        %v3464 = vsel %vm1492, %v3462, %v3463
        %v3465 = vrot.slane %v545, 1
        %v3466 = vrot.slane %v547, 1
        %v3467 = vsel %vm1492, %v3465, %v3466
        %v3468 = vrot.slane %v548, 1
        %v3469 = vsel %vm1492, %v3463, %v3468
        %v3470 = vrot.slane %v549, 1
        %v3471 = vsel %vm1492, %v3466, %v3470
        %v3472 = vrot.slane %v550, 1
        %v3473 = vrot.slane %v552, 1
        %v3474 = vsel %vm1492, %v3472, %v3473
        %v3475 = vrot.slane %v551, 1
        %v3476 = vrot.slane %v553, 1
        %v3477 = vsel %vm1492, %v3475, %v3476
        %v3478 = vrot.slane %v554, 1
        %v3479 = vsel %vm1492, %v3473, %v3478
        %v3480 = vrot.slane %v555, 1
        %v3481 = vsel %vm1492, %v3476, %v3480
        %v3482 = vrot.slane %v556, 1
        %v3483 = vrot.slane %v558, 1
        %v3484 = vsel %vm1492, %v3482, %v3483
        %v3485 = vrot.slane %v557, 1
        %v3486 = vrot.slane %v559, 1
        %v3487 = vsel %vm1492, %v3485, %v3486
        %v3488 = vrot.slane %v560, 1
        %v3489 = vsel %vm1492, %v3483, %v3488
        %v3490 = vrot.slane %v561, 1
        %v3491 = vsel %vm1492, %v3486, %v3490
        %v3556 = vld [vmem:[#allocation11] sm:$0xff]
        %v3557 = vld [vmem:[#allocation11 + $0x8] sm:$0xff]
        %v3558 = vld [vmem:[#allocation11 + $0x10] sm:$0xff]
        %v3559 = vld [vmem:[#allocation11 + $0x18] sm:$0xff]
        %v3560 = vld [vmem:[#allocation11 + $0x20] sm:$0xff]
        %v3561 = vld [vmem:[#allocation11 + $0x28] sm:$0xff]
        %v3562 = vld [vmem:[#allocation11 + $0x30] sm:$0xff]
        %v3563 = vld [vmem:[#allocation11 + $0x38] sm:$0xff]
        %v3564 = vld [vmem:[#allocation11 + $0x40] sm:$0xff]
        %v3565 = vld [vmem:[#allocation11 + $0x48] sm:$0xff]
        %v3566 = vld [vmem:[#allocation11 + $0x50] sm:$0xff]
        %v3567 = vld [vmem:[#allocation11 + $0x58] sm:$0xff]
        %v3568 = vld [vmem:[#allocation11 + $0x60] sm:$0xff]
        %v3569 = vld [vmem:[#allocation11 + $0x68] sm:$0xff]
        %v3570 = vld [vmem:[#allocation11 + $0x70] sm:$0xff]
        %v3571 = vld [vmem:[#allocation11 + $0x78] sm:$0xff]
        %v3572 = vld [vmem:[#allocation13] sm:$0x3]
        %v3574 = vlaneseq
        %v3575 = vshrl.u32 %v3574, 7
        %v3576 = vsub.s32 0, %v3575
        %v3577 = vrot.slane %v3572, %v3576
        %v3578 = vlaneseq
        %v3579 = vshrl.u32 %v3578, 7
        %v3580 = vsub.s32 1, %v3579
        %v3581 = vrot.slane %v3572, %v3580
        %v3600 = vunpack.c.l.b16 %v3556
        %v3601 = vunpack.c.h.b16 %v3556
        %v3602 = vunpack.c.l.b16 %v3557
        %v3603 = vunpack.c.h.b16 %v3557
        %v3604 = vunpack.c.l.b16 %v3558
        %v3605 = vunpack.c.h.b16 %v3558
        %v3606 = vunpack.c.l.b16 %v3559
        %v3607 = vunpack.c.h.b16 %v3559
        %v3608 = vunpack.c.l.b16 %v3560
        %v3609 = vunpack.c.h.b16 %v3560
        %v3610 = vunpack.c.l.b16 %v3561
        %v3611 = vunpack.c.h.b16 %v3561
        %v3612 = vunpack.c.l.b16 %v3562
        %v3613 = vunpack.c.h.b16 %v3562
        %v3614 = vunpack.c.l.b16 %v3563
        %v3615 = vunpack.c.h.b16 %v3563
        %v3616 = vunpack.c.l.b16 %v3564
        %v3617 = vunpack.c.h.b16 %v3564
        %v3618 = vunpack.c.l.b16 %v3565
        %v3619 = vunpack.c.h.b16 %v3565
        %v3620 = vunpack.c.l.b16 %v3566
        %v3621 = vunpack.c.h.b16 %v3566
        %v3622 = vunpack.c.l.b16 %v3567
        %v3623 = vunpack.c.h.b16 %v3567
        %v3624 = vunpack.c.l.b16 %v3568
        %v3625 = vunpack.c.h.b16 %v3568
        %v3626 = vunpack.c.l.b16 %v3569
        %v3627 = vunpack.c.h.b16 %v3569
        %v3628 = vunpack.c.l.b16 %v3570
        %v3629 = vunpack.c.h.b16 %v3570
        %v3630 = vunpack.c.l.b16 %v3571
        %v3631 = vunpack.c.h.b16 %v3571
        %v3632 = vpack.c.b16 %v3602, %v3600
        %v3633 = vpack.c.b16 %v3603, %v3601
        %v3634 = vpack.c.b16 %v3606, %v3604
        %v3635 = vpack.c.b16 %v3607, %v3605
        %v3636 = vpack.c.b16 %v3610, %v3608
        %v3637 = vpack.c.b16 %v3611, %v3609
        %v3638 = vpack.c.b16 %v3614, %v3612
        %v3639 = vpack.c.b16 %v3615, %v3613
        %v3640 = vpack.c.b16 %v3618, %v3616
        %v3641 = vpack.c.b16 %v3619, %v3617
        %v3642 = vpack.c.b16 %v3622, %v3620
        %v3643 = vpack.c.b16 %v3623, %v3621
        %v3644 = vpack.c.b16 %v3626, %v3624
        %v3645 = vpack.c.b16 %v3627, %v3625
        %v3646 = vpack.c.b16 %v3630, %v3628
        %v3647 = vpack.c.b16 %v3631, %v3629
        %3664 = vmatprep.subr.bf16.mxu0 %v3647
        %3665 = vmatpush1.bf16.msra.mxu0 %v3646
        %3666 = vmatprep.subr.bf16.mxu0 %v3645
        %3667 = vmatpush1.bf16.msra.mxu0 %v3644
        %3668 = vmatprep.subr.bf16.mxu0 %v3643
        %3669 = vmatpush1.bf16.msra.mxu0 %v3642
        %3670 = vmatprep.subr.bf16.mxu0 %v3641
        %3671 = vmatpush1.bf16.msra.mxu0 %v3640
        %3672 = vmatprep.subr.bf16.mxu0 %v3639
        %3673 = vmatpush1.bf16.msra.mxu0 %v3638
        %3674 = vmatprep.subr.bf16.mxu0 %v3637
        %3675 = vmatpush1.bf16.msra.mxu0 %v3636
        %3676 = vmatprep.subr.bf16.mxu0 %v3635
        %3677 = vmatpush1.bf16.msra.mxu0 %v3634
        %3678 = vmatprep.subr.bf16.mxu0 %v3633
        %3679 = vmatpush1.bf16.msra.mxu0 %v3632
        %3680 = vmatprep.subr.bf16.mxu0 0
        %3681 = vmatpush2.bf16.msra.mxu0 0
        %3682 = vmatprep.subr.bf16.mxu0 0
        %3683 = vmatpush2.bf16.msra.mxu0 0
        %3684 = vmatprep.subr.bf16.mxu0 0
        %3685 = vmatpush2.bf16.msra.mxu0 0
        %3686 = vmatprep.subr.bf16.mxu0 0
        %3687 = vmatpush2.bf16.msra.mxu0 0
        %3688 = vmatprep.subr.bf16.mxu0 0
        %3689 = vmatpush2.bf16.msra.mxu0 0
        %3690 = vmatprep.subr.bf16.mxu0 0
        %3691 = vmatpush2.bf16.msra.mxu0 0
        %3692 = vmatprep.subr.bf16.mxu0 0
        %3693 = vmatpush2.bf16.msra.mxu0 0
        %3694 = vmatprep.subr.bf16.mxu0 0
        %3695 = vmatpush2.bf16.msra.mxu0 0
        %3696 = vmatprep.mubr.bf16.mxu0 0
        %3697 = vmatmul.mubr.bf16.gmra.mxu0 %v3220
        %v3698 = vpop.f32.mrf.mxu0
        %v3699 = vadd.f32 %v3577, %v3698
        %v3700 = vpop.f32.mrf.mxu0
        %v3701 = vadd.f32 %v3581, %v3700
        %v3702 = vpop.f32.mrf.mxu0
        %v3703 = vadd.f32 %v3577, %v3702
        %v3704 = vpop.f32.mrf.mxu0
        %v3705 = vadd.f32 %v3581, %v3704
        %3706 = vmatprep.mubr.bf16.mxu0 0
        %3707 = vmatmul.mubr.bf16.gmra.mxu0 %v3221
        %v3708 = vpop.f32.mrf.mxu0
        %v3709 = vadd.f32 %v3577, %v3708
        %v3710 = vpop.f32.mrf.mxu0
        %v3711 = vadd.f32 %v3581, %v3710
        %v3712 = vpop.f32.mrf.mxu0
        %v3713 = vadd.f32 %v3577, %v3712
        %v3714 = vpop.f32.mrf.mxu0
        %v3715 = vadd.f32 %v3581, %v3714
        %3716 = vmatprep.mubr.bf16.mxu0 0
        %3717 = vmatmul.mubr.bf16.gmra.mxu0 %v3222
        %v3718 = vpop.f32.mrf.mxu0
        %v3719 = vadd.f32 %v3577, %v3718
        %v3720 = vpop.f32.mrf.mxu0
        %v3721 = vadd.f32 %v3581, %v3720
        %v3722 = vpop.f32.mrf.mxu0
        %v3723 = vadd.f32 %v3577, %v3722
        %v3724 = vpop.f32.mrf.mxu0
        %v3725 = vadd.f32 %v3581, %v3724
        %3726 = vmatprep.mubr.bf16.mxu0 0
        %3727 = vmatmul.mubr.bf16.gmra.mxu0 %v3223
        %v3728 = vpop.f32.mrf.mxu0
        %v3729 = vadd.f32 %v3577, %v3728
        %v3730 = vpop.f32.mrf.mxu0
        %v3731 = vadd.f32 %v3581, %v3730
        %v3732 = vpop.f32.mrf.mxu0
        %v3733 = vadd.f32 %v3577, %v3732
        %v3734 = vpop.f32.mrf.mxu0
        %v3735 = vadd.f32 %v3581, %v3734
        %3736 = vmatprep.mubr.bf16.mxu0 0
        %3737 = vmatmul.mubr.bf16.gmra.mxu0 %v3224
        %v3738 = vpop.f32.mrf.mxu0
        %v3739 = vadd.f32 %v3577, %v3738
        %v3740 = vpop.f32.mrf.mxu0
        %v3741 = vadd.f32 %v3581, %v3740
        %v3742 = vpop.f32.mrf.mxu0
        %v3743 = vadd.f32 %v3577, %v3742
        %v3744 = vpop.f32.mrf.mxu0
        %v3745 = vadd.f32 %v3581, %v3744
        %3746 = vmatprep.mubr.bf16.mxu0 0
        %3747 = vmatmul.mubr.bf16.gmra.mxu0 %v3225
        %v3748 = vpop.f32.mrf.mxu0
        %v3749 = vadd.f32 %v3577, %v3748
        %v3750 = vpop.f32.mrf.mxu0
        %v3751 = vadd.f32 %v3581, %v3750
        %v3752 = vpop.f32.mrf.mxu0
        %v3753 = vadd.f32 %v3577, %v3752
        %v3754 = vpop.f32.mrf.mxu0
        %v3755 = vadd.f32 %v3581, %v3754
        %3756 = vmatprep.mubr.bf16.mxu0 0
        %3757 = vmatmul.mubr.bf16.gmra.mxu0 %v3226
        %v3758 = vpop.f32.mrf.mxu0
        %v3759 = vadd.f32 %v3577, %v3758
        %v3760 = vpop.f32.mrf.mxu0
        %v3761 = vadd.f32 %v3581, %v3760
        %v3762 = vpop.f32.mrf.mxu0
        %v3763 = vadd.f32 %v3577, %v3762
        %v3764 = vpop.f32.mrf.mxu0
        %v3765 = vadd.f32 %v3581, %v3764
        %3766 = vmatprep.mubr.bf16.mxu0 0
        %3767 = vmatmul.mubr.bf16.gmra.mxu0 %v3227
        %v3768 = vpop.f32.mrf.mxu0
        %v3769 = vadd.f32 %v3577, %v3768
        %v3770 = vpop.f32.mrf.mxu0
        %v3771 = vadd.f32 %v3581, %v3770
        %v3772 = vpop.f32.mrf.mxu0
        %v3773 = vadd.f32 %v3577, %v3772
        %v3774 = vpop.f32.mrf.mxu0
        %v3775 = vadd.f32 %v3581, %v3774
        %3776 = vmatprep.mubr.bf16.mxu0 0
        %3777 = vmatmul.mubr.bf16.gmra.mxu0 %v3228
        %v3778 = vpop.f32.mrf.mxu0
        %v3779 = vadd.f32 %v3577, %v3778
        %v3780 = vpop.f32.mrf.mxu0
        %v3781 = vadd.f32 %v3581, %v3780
        %v3782 = vpop.f32.mrf.mxu0
        %v3783 = vadd.f32 %v3577, %v3782
        %v3784 = vpop.f32.mrf.mxu0
        %v3785 = vadd.f32 %v3581, %v3784
        %3786 = vmatprep.mubr.bf16.mxu0 0
        %3787 = vmatmul.mubr.bf16.gmra.mxu0 %v3229
        %v3788 = vpop.f32.mrf.mxu0
        %v3789 = vadd.f32 %v3577, %v3788
        %v3790 = vpop.f32.mrf.mxu0
        %v3791 = vadd.f32 %v3581, %v3790
        %v3792 = vpop.f32.mrf.mxu0
        %v3793 = vadd.f32 %v3577, %v3792
        %v3794 = vpop.f32.mrf.mxu0
        %v3795 = vadd.f32 %v3581, %v3794
        %3796 = vmatprep.mubr.bf16.mxu0 0
        %3797 = vmatmul.mubr.bf16.gmra.mxu0 %v3230
        %v3798 = vpop.f32.mrf.mxu0
        %v3799 = vadd.f32 %v3577, %v3798
        %v3800 = vpop.f32.mrf.mxu0
        %v3801 = vadd.f32 %v3581, %v3800
        %v3802 = vpop.f32.mrf.mxu0
        %v3803 = vadd.f32 %v3577, %v3802
        %v3804 = vpop.f32.mrf.mxu0
        %v3805 = vadd.f32 %v3581, %v3804
        %3806 = vmatprep.mubr.bf16.mxu0 0
        %3807 = vmatmul.mubr.bf16.gmra.mxu0 %v3231
        %v3808 = vpop.f32.mrf.mxu0
        %v3809 = vadd.f32 %v3577, %v3808
        %v3810 = vpop.f32.mrf.mxu0
        %v3811 = vadd.f32 %v3581, %v3810
        %v3812 = vpop.f32.mrf.mxu0
        %v3813 = vadd.f32 %v3577, %v3812
        %v3814 = vpop.f32.mrf.mxu0
        %v3815 = vadd.f32 %v3581, %v3814
        %3816 = vmatprep.mubr.bf16.mxu0 0
        %3817 = vmatmul.mubr.bf16.gmra.mxu0 %v3232
        %v3818 = vpop.f32.mrf.mxu0
        %v3819 = vadd.f32 %v3577, %v3818
        %v3820 = vpop.f32.mrf.mxu0
        %v3821 = vadd.f32 %v3581, %v3820
        %v3822 = vpop.f32.mrf.mxu0
        %v3823 = vadd.f32 %v3577, %v3822
        %v3824 = vpop.f32.mrf.mxu0
        %v3825 = vadd.f32 %v3581, %v3824
        %3826 = vmatprep.mubr.bf16.mxu0 0
        %3827 = vmatmul.mubr.bf16.gmra.mxu0 %v3233
        %v3828 = vpop.f32.mrf.mxu0
        %v3829 = vadd.f32 %v3577, %v3828
        %v3830 = vpop.f32.mrf.mxu0
        %v3831 = vadd.f32 %v3581, %v3830
        %v3832 = vpop.f32.mrf.mxu0
        %v3833 = vadd.f32 %v3577, %v3832
        %v3834 = vpop.f32.mrf.mxu0
        %v3835 = vadd.f32 %v3581, %v3834
        %3836 = vmatprep.mubr.bf16.mxu0 0
        %3837 = vmatmul.mubr.bf16.gmra.mxu0 %v3234
        %v3838 = vpop.f32.mrf.mxu0
        %v3839 = vadd.f32 %v3577, %v3838
        %v3840 = vpop.f32.mrf.mxu0
        %v3841 = vadd.f32 %v3581, %v3840
        %v3842 = vpop.f32.mrf.mxu0
        %v3843 = vadd.f32 %v3577, %v3842
        %v3844 = vpop.f32.mrf.mxu0
        %v3845 = vadd.f32 %v3581, %v3844
        %3846 = vmatprep.mubr.bf16.mxu0 0
        %3847 = vmatmul.mubr.bf16.gmra.mxu0 %v3235
        %v3848 = vpop.f32.mrf.mxu0
        %v3849 = vadd.f32 %v3577, %v3848
        %v3850 = vpop.f32.mrf.mxu0
        %v3851 = vadd.f32 %v3581, %v3850
        %v3852 = vpop.f32.mrf.mxu0
        %v3853 = vadd.f32 %v3577, %v3852
        %v3854 = vpop.f32.mrf.mxu0
        %v3855 = vadd.f32 %v3581, %v3854
        %3856 = vdwg.mxu0
        %v3857 = vadd.f32 %v3699, %v3334
        %v3858 = vadd.f32 %v3701, %v3337
        %v3859 = vadd.f32 %v3703, %v3339
        %v3860 = vadd.f32 %v3705, %v3341
        %v3861 = vadd.f32 %v3709, %v3344
        %v3862 = vadd.f32 %v3711, %v3347
        %v3863 = vadd.f32 %v3713, %v3349
        %v3864 = vadd.f32 %v3715, %v3351
        %v3865 = vadd.f32 %v3719, %v3354
        %v3866 = vadd.f32 %v3721, %v3357
        %v3867 = vadd.f32 %v3723, %v3359
        %v3868 = vadd.f32 %v3725, %v3361
        %v3869 = vadd.f32 %v3729, %v3364
        %v3870 = vadd.f32 %v3731, %v3367
        %v3871 = vadd.f32 %v3733, %v3369
        %v3872 = vadd.f32 %v3735, %v3371
        %v3873 = vadd.f32 %v3739, %v3374
        %v3874 = vadd.f32 %v3741, %v3377
        %v3875 = vadd.f32 %v3743, %v3379
        %v3876 = vadd.f32 %v3745, %v3381
        %v3877 = vadd.f32 %v3749, %v3384
        %v3878 = vadd.f32 %v3751, %v3387
        %v3879 = vadd.f32 %v3753, %v3389
        %v3880 = vadd.f32 %v3755, %v3391
        %v3881 = vadd.f32 %v3759, %v3394
        %v3882 = vadd.f32 %v3761, %v3397
        %v3883 = vadd.f32 %v3763, %v3399
        %v3884 = vadd.f32 %v3765, %v3401
        %v3885 = vadd.f32 %v3769, %v3404
        %v3886 = vadd.f32 %v3771, %v3407
        %v3887 = vadd.f32 %v3773, %v3409
        %v3888 = vadd.f32 %v3775, %v3411
        %v3889 = vadd.f32 %v3779, %v3414
        %v3890 = vadd.f32 %v3781, %v3417
        %v3891 = vadd.f32 %v3783, %v3419
        %v3892 = vadd.f32 %v3785, %v3421
        %v3893 = vadd.f32 %v3789, %v3424
        %v3894 = vadd.f32 %v3791, %v3427
        %v3895 = vadd.f32 %v3793, %v3429
        %v3896 = vadd.f32 %v3795, %v3431
        %v3897 = vadd.f32 %v3799, %v3434
        %v3898 = vadd.f32 %v3801, %v3437
        %v3899 = vadd.f32 %v3803, %v3439
        %v3900 = vadd.f32 %v3805, %v3441
        %v3901 = vadd.f32 %v3809, %v3444
        %v3902 = vadd.f32 %v3811, %v3447
        %v3903 = vadd.f32 %v3813, %v3449
        %v3904 = vadd.f32 %v3815, %v3451
        %v3905 = vadd.f32 %v3819, %v3454
        %v3906 = vadd.f32 %v3821, %v3457
        %v3907 = vadd.f32 %v3823, %v3459
        %v3908 = vadd.f32 %v3825, %v3461
        %v3909 = vadd.f32 %v3829, %v3464
        %v3910 = vadd.f32 %v3831, %v3467
        %v3911 = vadd.f32 %v3833, %v3469
        %v3912 = vadd.f32 %v3835, %v3471
        %v3913 = vadd.f32 %v3839, %v3474
        %v3914 = vadd.f32 %v3841, %v3477
        %v3915 = vadd.f32 %v3843, %v3479
        %v3916 = vadd.f32 %v3845, %v3481
        %v3917 = vadd.f32 %v3849, %v3484
        %v3918 = vadd.f32 %v3851, %v3487
        %v3919 = vadd.f32 %v3853, %v3489
        %v3920 = vadd.f32 %v3855, %v3491
        %v3921 = vmax.f32 %v3857, 0.0
        %v3922 = vmax.f32 %v3858, 0.0
        %v3923 = vmax.f32 %v3859, 0.0
        %v3924 = vmax.f32 %v3860, 0.0
        %v3925 = vmax.f32 %v3861, 0.0
        %v3926 = vmax.f32 %v3862, 0.0
        %v3927 = vmax.f32 %v3863, 0.0
        %v3928 = vmax.f32 %v3864, 0.0
        %v3929 = vmax.f32 %v3865, 0.0
        %v3930 = vmax.f32 %v3866, 0.0
        %v3931 = vmax.f32 %v3867, 0.0
        %v3932 = vmax.f32 %v3868, 0.0
        %v3933 = vmax.f32 %v3869, 0.0
        %v3934 = vmax.f32 %v3870, 0.0
        %v3935 = vmax.f32 %v3871, 0.0
        %v3936 = vmax.f32 %v3872, 0.0
        %v3937 = vmax.f32 %v3873, 0.0
        %v3938 = vmax.f32 %v3874, 0.0
        %v3939 = vmax.f32 %v3875, 0.0
        %v3940 = vmax.f32 %v3876, 0.0
        %v3941 = vmax.f32 %v3877, 0.0
        %v3942 = vmax.f32 %v3878, 0.0
        %v3943 = vmax.f32 %v3879, 0.0
        %v3944 = vmax.f32 %v3880, 0.0
        %v3945 = vmax.f32 %v3881, 0.0
        %v3946 = vmax.f32 %v3882, 0.0
        %v3947 = vmax.f32 %v3883, 0.0
        %v3948 = vmax.f32 %v3884, 0.0
        %v3949 = vmax.f32 %v3885, 0.0
        %v3950 = vmax.f32 %v3886, 0.0
        %v3951 = vmax.f32 %v3887, 0.0
        %v3952 = vmax.f32 %v3888, 0.0
        %v3953 = vmax.f32 %v3889, 0.0
        %v3954 = vmax.f32 %v3890, 0.0
        %v3955 = vmax.f32 %v3891, 0.0
        %v3956 = vmax.f32 %v3892, 0.0
        %v3957 = vmax.f32 %v3893, 0.0
        %v3958 = vmax.f32 %v3894, 0.0
        %v3959 = vmax.f32 %v3895, 0.0
        %v3960 = vmax.f32 %v3896, 0.0
        %v3961 = vmax.f32 %v3897, 0.0
        %v3962 = vmax.f32 %v3898, 0.0
        %v3963 = vmax.f32 %v3899, 0.0
        %v3964 = vmax.f32 %v3900, 0.0
        %v3965 = vmax.f32 %v3901, 0.0
        %v3966 = vmax.f32 %v3902, 0.0
        %v3967 = vmax.f32 %v3903, 0.0
        %v3968 = vmax.f32 %v3904, 0.0
        %v3969 = vmax.f32 %v3905, 0.0
        %v3970 = vmax.f32 %v3906, 0.0
        %v3971 = vmax.f32 %v3907, 0.0
        %v3972 = vmax.f32 %v3908, 0.0
        %v3973 = vmax.f32 %v3909, 0.0
        %v3974 = vmax.f32 %v3910, 0.0
        %v3975 = vmax.f32 %v3911, 0.0
        %v3976 = vmax.f32 %v3912, 0.0
        %v3977 = vmax.f32 %v3913, 0.0
        %v3978 = vmax.f32 %v3914, 0.0
        %v3979 = vmax.f32 %v3915, 0.0
        %v3980 = vmax.f32 %v3916, 0.0
        %v3981 = vmax.f32 %v3917, 0.0
        %v3982 = vmax.f32 %v3918, 0.0
        %v3983 = vmax.f32 %v3919, 0.0
        %v3984 = vmax.f32 %v3920, 0.0
        %3985 = vst [vmem:[%s404] sm:$0xff] %v3921
        %3986 = vst [vmem:[%s404 + $0x8] sm:$0xff] %v3922
        %3987 = vst [vmem:[%s404 + $0x10] sm:$0xff] %v3923
        %3988 = vst [vmem:[%s404 + $0x18] sm:$0xff] %v3924
        %3989 = vst [vmem:[%s404 + $0x20] sm:$0xff] %v3925
        %3990 = vst [vmem:[%s404 + $0x28] sm:$0xff] %v3926
        %3991 = vst [vmem:[%s404 + $0x30] sm:$0xff] %v3927
        %3992 = vst [vmem:[%s404 + $0x38] sm:$0xff] %v3928
        %3993 = vst [vmem:[%s404 + $0x40] sm:$0xff] %v3929
        %3994 = vst [vmem:[%s404 + $0x48] sm:$0xff] %v3930
        %3995 = vst [vmem:[%s404 + $0x50] sm:$0xff] %v3931
        %3996 = vst [vmem:[%s404 + $0x58] sm:$0xff] %v3932
        %3997 = vst [vmem:[%s404 + $0x60] sm:$0xff] %v3933
        %3998 = vst [vmem:[%s404 + $0x68] sm:$0xff] %v3934
        %3999 = vst [vmem:[%s404 + $0x70] sm:$0xff] %v3935
        %4000 = vst [vmem:[%s404 + $0x78] sm:$0xff] %v3936
        %4001 = vst [vmem:[%s404 + $0x80] sm:$0xff] %v3937
        %4002 = vst [vmem:[%s404 + $0x88] sm:$0xff] %v3938
        %4003 = vst [vmem:[%s404 + $0x90] sm:$0xff] %v3939
        %4004 = vst [vmem:[%s404 + $0x98] sm:$0xff] %v3940
        %4005 = vst [vmem:[%s404 + $0xa0] sm:$0xff] %v3941
        %4006 = vst [vmem:[%s404 + $0xa8] sm:$0xff] %v3942
        %4007 = vst [vmem:[%s404 + $0xb0] sm:$0xff] %v3943
        %4008 = vst [vmem:[%s404 + $0xb8] sm:$0xff] %v3944
        %4009 = vst [vmem:[%s404 + $0xc0] sm:$0xff] %v3945
        %4010 = vst [vmem:[%s404 + $0xc8] sm:$0xff] %v3946
        %4011 = vst [vmem:[%s404 + $0xd0] sm:$0xff] %v3947
        %4012 = vst [vmem:[%s404 + $0xd8] sm:$0xff] %v3948
        %4013 = vst [vmem:[%s404 + $0xe0] sm:$0xff] %v3949
        %4014 = vst [vmem:[%s404 + $0xe8] sm:$0xff] %v3950
        %4015 = vst [vmem:[%s404 + $0xf0] sm:$0xff] %v3951
        %4016 = vst [vmem:[%s404 + $0xf8] sm:$0xff] %v3952
        %4017 = vst [vmem:[%s404 + $0x100] sm:$0xff] %v3953
        %4018 = vst [vmem:[%s404 + $0x108] sm:$0xff] %v3954
        %4019 = vst [vmem:[%s404 + $0x110] sm:$0xff] %v3955
        %4020 = vst [vmem:[%s404 + $0x118] sm:$0xff] %v3956
        %4021 = vst [vmem:[%s404 + $0x120] sm:$0xff] %v3957
        %4022 = vst [vmem:[%s404 + $0x128] sm:$0xff] %v3958
        %4023 = vst [vmem:[%s404 + $0x130] sm:$0xff] %v3959
        %4024 = vst [vmem:[%s404 + $0x138] sm:$0xff] %v3960
        %4025 = vst [vmem:[%s404 + $0x140] sm:$0xff] %v3961
        %4026 = vst [vmem:[%s404 + $0x148] sm:$0xff] %v3962
        %4027 = vst [vmem:[%s404 + $0x150] sm:$0xff] %v3963
        %4028 = vst [vmem:[%s404 + $0x158] sm:$0xff] %v3964
        %4029 = vst [vmem:[%s404 + $0x160] sm:$0xff] %v3965
        %4030 = vst [vmem:[%s404 + $0x168] sm:$0xff] %v3966
        %4031 = vst [vmem:[%s404 + $0x170] sm:$0xff] %v3967
        %4032 = vst [vmem:[%s404 + $0x178] sm:$0xff] %v3968
        %4033 = vst [vmem:[%s404 + $0x180] sm:$0xff] %v3969
        %4034 = vst [vmem:[%s404 + $0x188] sm:$0xff] %v3970
        %4035 = vst [vmem:[%s404 + $0x190] sm:$0xff] %v3971
        %4036 = vst [vmem:[%s404 + $0x198] sm:$0xff] %v3972
        %4037 = vst [vmem:[%s404 + $0x1a0] sm:$0xff] %v3973
        %4038 = vst [vmem:[%s404 + $0x1a8] sm:$0xff] %v3974
        %4039 = vst [vmem:[%s404 + $0x1b0] sm:$0xff] %v3975
        %4040 = vst [vmem:[%s404 + $0x1b8] sm:$0xff] %v3976
        %4041 = vst [vmem:[%s404 + $0x1c0] sm:$0xff] %v3977
        %4042 = vst [vmem:[%s404 + $0x1c8] sm:$0xff] %v3978
        %4043 = vst [vmem:[%s404 + $0x1d0] sm:$0xff] %v3979
        %4044 = vst [vmem:[%s404 + $0x1d8] sm:$0xff] %v3980
        %4045 = vst [vmem:[%s404 + $0x1e0] sm:$0xff] %v3981
        %4046 = vst [vmem:[%s404 + $0x1e8] sm:$0xff] %v3982
        %4047 = vst [vmem:[%s404 + $0x1f0] sm:$0xff] %v3983
        %4048 = vst [vmem:[%s404 + $0x1f8] sm:$0xff] %v3984
        %s4049 = sand.u32 %s209, 1
        %s4050 = scalar_lea.sflag [#allocation4], %s4049
        %s4051 = sand.u32 %s209, 1
        %s4052 = smul.addr %s4051, 512
        %s4053 = scalar_lea.vmem [#allocation14], %s4052
        // Predicated region
        $region81: #{tpu_custom_call.1} parent=51 // pred_check
          %p4054 = pneg %p219
        $region82: #{tpu_custom_call.1} parent=51 // pred_check_branch
          %4056 = sbr.rel (%p4054) target = $region84
        $region83: #{tpu_custom_call.1} parent=51 // pred_region
          %s4058 = ssub.s32 8192, 8192
          %4059 = vsyncadd %s4050, %s4058
          %s4060 = smul.addr %s28, 64
          %s4061 = smul.addr %s4060, 128
          %s4062 = scalar_lea.hbm %s8, %s4061
          %s4063 = sshll.u32 %s4053, 4
          %s4064 = int_to_ptr.vmem [resolvable:$true] %s4063
          %4069 = dma.vmem_to_hbm [thread:$0]  %s4064, 8192, %s4062, %s4050, 256, 256, 16
        $region84: #{tpu_custom_call.1} parent=51 // pred_fallthru
          _
      $region52: #{tpu_custom_call.1} parent=5 // pred_fallthru
        _
      %p4070 = scmp.le.s32.totalorder 2, %s23
      // Predicated region
      $region85: #{tpu_custom_call.1} parent=5 // pred_check
        %p4071 = pneg %p4070
      $region86: #{tpu_custom_call.1} parent=5 // pred_check_branch
        %4073 = sbr.rel (%p4071) target = $region88
      $region87: #{tpu_custom_call.1} parent=5 // pred_region
        %s4074 = ssub.s32 %s23, 2
        // Predicated region
        $region89: #{tpu_custom_call.1} parent=87 // pred_check
          %p4075 = pneg %p225
        $region90: #{tpu_custom_call.1} parent=87 // pred_check_branch
          %4077 = sbr.rel (%p4075) target = $region92
        $region91: #{tpu_custom_call.1} parent=87 // pred_region
          %s4078 = sand.u32 %s210, 1
          %s4079 = scalar_lea.sflag [#allocation4], %s4078
          %s4080 = sand.u32 %s210, 1
          %s4081 = smul.addr %s4080, 512
          %s4082 = scalar_lea.vmem [#allocation14], %s4081
          %4083 = dma.done %s4079, 8192
        $region92: #{tpu_custom_call.1} parent=87 // pred_fallthru
          _
      $region88: #{tpu_custom_call.1} parent=5 // pred_fallthru
        _
    $region6: #{tpu_custom_call.1} parent=1 // loop_footer
      %s27 = sadd.s32 1, %s23
    $region7: #{tpu_custom_call.1} parent=1 // loop_footer_branch
      %22 = sbr.rel target = $region3
    $region8: #{tpu_custom_call.1} parent=1 // loop_exit
      _
    %4084 = vsyncpa [#allocation3], 1
    %s4085 = scalar_lea.sflag [#allocation3], 1
    %4086 = vsyncpa %s4085, 1
    %4087 = vsyncpa [#allocation6], 1
    %4088 = vsyncpa [#allocation9], 1
    %4089 = vsyncpa [#allocation12], 1
    %4090 = vsyncpa [#allocation4], 1
    %s4091 = scalar_lea.sflag [#allocation4], 1
    %4092 = vsyncpa %s4091, 1

</llo_original>
